<compile_context>
chip_gen: v7x
topology: tpu7x:2x2x1
jax: 0.10.0
libtpu: 0.0.40
codegen_flags: <defaults>
</compile_context>

<pallas_src>
import jax
import jax.numpy as jnp
from jax.experimental import pallas as pl
from jax.experimental.pallas import tpu as pltpu

# ---- static hyper-parameters (small test config of the TCN module) ----------
B = 2            # batch
IN_DIM = 16      # TCN input_dim
OUT_DIM = 16     # TCN output_dim
BN_DIM = 16      # bottleneck dim (DepthConv1d input_channel)
H = 32           # hidden_channel
T = 128          # time steps
K = 3            # depthwise kernel size
LAYER = 2
STACK = 2
NB = LAYER * STACK                                            # 4 DepthConv1d blocks
DILATIONS = tuple(2 ** i for _ in range(STACK) for i in range(LAYER))   # (1, 2, 1, 2)
EPS = 1e-8
PCOLS = 16       # packed per-channel columns: [b1,g1,be1,db,g2,be2,dw0..dw{K-1},0...]

# roll+mask depthwise trick is only valid while every shift stays inside one period.
for _d in DILATIONS:
    assert max(abs(_k * _d - _d) for _k in range(K)) < T, "depthwise shift wraps T"
assert 6 + K <= PCOLS


def _sum_and_sumsq(a):
    """(sum(a), sum(a*a)) via one stacked cross-lane reduction."""
    r = a.shape[0]
    z = jnp.concatenate([a, a * a], axis=0)         # (2r, T)  sublane-aligned concat
    rows = jnp.sum(z, axis=1, keepdims=True)        # single lane reduce -> (2r, 1)
    return jnp.sum(rows[:r]), jnp.sum(rows[r:])


def _tcn_kernel(x_ref, ln_ref, bnwb_ref, w1_ref, pvec_ref, wrs_ref, brs_ref,
                outwb_ref, alpha_ref, out_ref):
    # x_ref: (IN_DIM, T)           [batch squeezed by BlockSpec]
    # ln_ref: (IN_DIM, 2)          [front GroupNorm gamma | beta]
    # bnwb_ref: (BN_DIM, IN_DIM+1) [BN conv weight | bias]
    # w1_ref: (NB, H, BN_DIM)      per-block 1x1 conv weights
    # pvec_ref: (NB, H, PCOLS)     [b1,g1,be1,db,g2,be2,dw taps, pad]
    # wrs_ref: (NB, 2*BN_DIM, H)   stacked [res_out; skip_out] weights
    # brs_ref: (NB, 2*BN_DIM, 1)   stacked biases
    # outwb_ref: (OUT_DIM, BN_DIM+1) [output conv weight | bias]
    # alpha_ref: (2*NB+1,) SMEM    [a1_blk0, a2_blk0, ..., a_out]
    x = x_ref[...]

    # ---- TCN.LN: GroupNorm(1, IN_DIM), stats in one pass, norm folded to one FMA ----
    s, ss = _sum_and_sumsq(x)
    inv_n = 1.0 / (IN_DIM * T)
    mean = s * inv_n
    var = jnp.maximum(ss * inv_n - mean * mean, 0.0)
    ln = ln_ref[...]
    scale = ln[:, 0:1] * jax.lax.rsqrt(var + EPS)
    xn = x * scale + (ln[:, 1:2] - mean * scale)

    # ---- TCN.BN: 1x1 conv (BN_DIM, IN_DIM) @ (IN_DIM, T) ----
    bnwb = bnwb_ref[...]
    output = jnp.dot(bnwb[:, :IN_DIM], xn,
                     preferred_element_type=jnp.float32) + bnwb[:, IN_DIM:IN_DIM + 1]

    skip_acc = jnp.zeros((BN_DIM, T), jnp.float32)
    iota_t = jax.lax.broadcasted_iota(jnp.int32, (H, T), 1)     # hoisted once
    inv_nh = 1.0 / (H * T)

    # ---- stack of DepthConv1d blocks (static unroll; all weights stay in VMEM) ----
    for blk in range(NB):
        dil = DILATIONS[blk]
        pad = dil                                               # TCN: padding == dilation
        a1 = alpha_ref[2 * blk]
        a2 = alpha_ref[2 * blk + 1]
        pvec = pvec_ref[blk]                                    # (H, PCOLS)
        b1, g1, be1 = pvec[:, 0:1], pvec[:, 1:2], pvec[:, 2:3]
        db, g2, be2 = pvec[:, 3:4], pvec[:, 4:5], pvec[:, 5:6]

        # 1x1 conv into hidden + PReLU #1
        y = jnp.dot(w1_ref[blk], output, preferred_element_type=jnp.float32) + b1
        y = jnp.where(y >= 0.0, y, a1 * y)

        # GroupNorm(1, H) #1
        s1, ss1 = _sum_and_sumsq(y)
        m1 = s1 * inv_nh
        v1 = jnp.maximum(ss1 * inv_nh - m1 * m1, 0.0)
        sc1 = g1 * jax.lax.rsqrt(v1 + EPS)
        y = y * sc1 + (be1 - m1 * sc1)

        # depthwise conv1d: groups=H, kernel K, dilation dil, 'same' zero pad.
        # tap_k[t] = y[t + k*dil - pad]  (zero outside [0, T)); XLU rolls + edge masks.
        dconv = jnp.broadcast_to(db, (H, T))
        for k in range(K):
            sft = k * dil - pad
            tap = y if sft == 0 else pltpu.roll(y, (-sft) % T, axis=1)
            if sft < 0:
                tap = jnp.where(iota_t >= -sft, tap, 0.0)
            elif sft > 0:
                tap = jnp.where(iota_t < T - sft, tap, 0.0)
            dconv = dconv + pvec[:, 6 + k:7 + k] * tap

        # PReLU #2 + GroupNorm(1, H) #2
        y2 = jnp.where(dconv >= 0.0, dconv, a2 * dconv)
        s2, ss2 = _sum_and_sumsq(y2)
        m2 = s2 * inv_nh
        v2 = jnp.maximum(ss2 * inv_nh - m2 * m2, 0.0)
        sc2 = g2 * jax.lax.rsqrt(v2 + EPS)
        y2 = y2 * sc2 + (be2 - m2 * sc2)

        # fused res/skip 1x1: (2*BN_DIM, H) @ (H, T) + bias; sublane-aligned split.
        rs = jnp.dot(wrs_ref[blk], y2, preferred_element_type=jnp.float32) + brs_ref[blk]
        output = output + rs[:BN_DIM]
        skip_acc = skip_acc + rs[BN_DIM:]

    # ---- TCN.output: PReLU + 1x1 conv on the accumulated skip connection ----
    a_out = alpha_ref[2 * NB]
    z = jnp.where(skip_acc >= 0.0, skip_acc, a_out * skip_acc)
    outwb = outwb_ref[...]
    out_ref[...] = jnp.dot(outwb[:, :BN_DIM], z,
                           preferred_element_type=jnp.float32) + outwb[:, BN_DIM:BN_DIM + 1]


def tcn_forward(x, packed):
    """x: (B, IN_DIM, T) f32. Returns TCN output (B, OUT_DIM, T)."""
    ln_vec, bn_wb, w1_all, pvec_all, wrs_all, brs_all, out_wb, alphas = packed

    def const(shape):
        n = len(shape)
        return pl.BlockSpec(shape, lambda b, n=n: (0,) * n)

    in_specs = [
        pl.BlockSpec((None, IN_DIM, T), lambda b: (b, 0, 0)),   # x (batch squeezed)
        const((IN_DIM, 2)),                                     # LN gamma | beta
        const((BN_DIM, IN_DIM + 1)),                            # BN weight | bias
        const((NB, H, BN_DIM)),                                 # per-block 1x1 weights
        const((NB, H, PCOLS)),                                  # packed per-channel vecs + dw taps
        const((NB, 2 * BN_DIM, H)),                             # stacked res/skip weights
        const((NB, 2 * BN_DIM, 1)),                             # stacked res/skip biases
        const((OUT_DIM, BN_DIM + 1)),                           # output conv weight | bias
        pl.BlockSpec(memory_space=pltpu.MemorySpace.SMEM),      # PReLU alphas (2*NB+1,)
    ]
    out_specs = pl.BlockSpec((None, OUT_DIM, T), lambda b: (b, 0, 0))
    out_shape = jax.ShapeDtypeStruct((B, OUT_DIM, T), jnp.float32)

    fn = pl.pallas_call(
        _tcn_kernel,
        grid=(B,),
        in_specs=in_specs,
        out_specs=out_specs,
        out_shape=out_shape,
        compiler_params=pltpu.CompilerParams(dimension_semantics=("parallel",)),
    )
    return fn(x, ln_vec, bn_wb, w1_all, pvec_all, wrs_all, brs_all, out_wb, alphas)


def _reference(x, raw):
    """Plain-JAX mirror of the PyTorch TCN forward (two-pass norms, explicit pad)."""
    ln_g, ln_b, bn_w, bn_b, blocks, out_alpha, out_w, out_b = raw

    def gn(a, g, be):
        m = jnp.mean(a, axis=(1, 2), keepdims=True)
        v = jnp.mean((a - m) ** 2, axis=(1, 2), keepdims=True)
        return (a - m) / jnp.sqrt(v + EPS) * g[None] + be[None]

    out = jnp.einsum("oc,bct->bot", bn_w, gn(x, ln_g, ln_b)) + bn_b[None]
    skip_acc = jnp.zeros_like(out)
    for blk, p in enumerate(blocks):
        (w1, b1, a1, g1, be1, dw, db, a2, g2, be2, wr, br, ws, bs) = p
        dil = DILATIONS[blk]
        h = jnp.einsum("hc,bct->bht", w1, out) + b1[None]
        h = jnp.where(h >= 0, h, a1 * h)
        h = gn(h, g1, be1)
        hp = jnp.pad(h, ((0, 0), (0, 0), (dil, dil)))
        dc = jnp.broadcast_to(db[None], h.shape) * 1.0
        for k in range(K):
            dc = dc + dw[None, :, k:k + 1] * hp[:, :, k * dil:k * dil + T]
        h2 = jnp.where(dc >= 0, dc, a2 * dc)
        h2 = gn(h2, g2, be2)
        out = out + jnp.einsum("ch,bht->bct", wr, h2) + br[None]
        skip_acc = skip_acc + jnp.einsum("ch,bht->bct", ws, h2) + bs[None]
    z = jnp.where(skip_acc >= 0, skip_acc, out_alpha * skip_acc)
    return jnp.einsum("oc,bct->bot", out_w, z) + out_b[None]


if __name__ == "__main__":
    keys = iter(jax.random.split(jax.random.PRNGKey(0), 128))
    nk = lambda: next(keys)
    rn = lambda shape, s=0.1: s * jax.random.normal(nk(), shape, dtype=jnp.float32)

    x = jax.random.normal(nk(), (B, IN_DIM, T), dtype=jnp.float32)

    # ---- TCN-level parameters ----
    ln_g = 1.0 + rn((IN_DIM, 1)); ln_b = rn((IN_DIM, 1))
    bn_w = rn((BN_DIM, IN_DIM));  bn_b = rn((BN_DIM, 1))
    out_w = rn((OUT_DIM, BN_DIM)); out_b = rn((OUT_DIM, 1))
    out_alpha = 0.3

    # ---- per-block DepthConv1d parameters (shapes follow the nn.Module __init__) ----
    blocks = []
    for blk in range(NB):
        w1 = rn((H, BN_DIM)); b1 = rn((H, 1))
        a1 = 0.25 + 0.01 * blk
        g1 = 1.0 + rn((H, 1)); be1 = rn((H, 1))
        dw = rn((H, K)); db = rn((H, 1))
        a2 = 0.20 + 0.01 * blk
        g2 = 1.0 + rn((H, 1)); be2 = rn((H, 1))
        wr = rn((BN_DIM, H)); br = rn((BN_DIM, 1))
        ws = rn((BN_DIM, H)); bs = rn((BN_DIM, 1))
        blocks.append((w1, b1, a1, g1, be1, dw, db, a2, g2, be2, wr, br, ws, bs))

    raw_params = (ln_g, ln_b, bn_w, bn_b, blocks, out_alpha, out_w, out_b)

    # ---- pack for the kernel: few lane-dense inputs, everything VMEM-resident ----
    ln_vec = jnp.concatenate([ln_g, ln_b], axis=1)                         # (IN_DIM, 2)
    bn_wb = jnp.concatenate([bn_w, bn_b], axis=1)                          # (BN_DIM, IN_DIM+1)
    out_wb = jnp.concatenate([out_w, out_b], axis=1)                       # (OUT_DIM, BN_DIM+1)
    w1_all = jnp.stack([p[0] for p in blocks])                             # (NB, H, BN_DIM)
    pvec_all = jnp.stack([
        jnp.concatenate([p[1], p[3], p[4], p[6], p[8], p[9], p[5],
                         jnp.zeros((H, PCOLS - 6 - K), jnp.float32)], axis=1)
        for p in blocks])                                                  # (NB, H, PCOLS)
    wrs_all = jnp.stack([jnp.concatenate([p[10], p[12]], axis=0) for p in blocks])  # (NB, 2*BN_DIM, H)
    brs_all = jnp.stack([jnp.concatenate([p[11], p[13]], axis=0) for p in blocks])  # (NB, 2*BN_DIM, 1)
    alphas = jnp.array([v for p in blocks for v in (p[2], p[7])] + [out_alpha],
                       dtype=jnp.float32)                                  # (2*NB+1,) SMEM

    packed = (ln_vec, bn_wb, w1_all, pvec_all, wrs_all, brs_all, out_wb, alphas)

    out = tcn_forward(x, packed)
    jax.block_until_ready(out)

    ref = _reference(x, raw_params)
    assert jnp.allclose(out, ref, atol=5e-4, rtol=5e-4), \
        float(jnp.max(jnp.abs(out - ref)))

    # TODO(synk): causal branch (cLN cumulative layer-norm) and FiLM conditioning
    # (film_do=True) are not exercised by the default config and are not implemented;
    # the film_weights dict is an unmodified passthrough when film_do=False.
    print("KERNEL_OK")
</pallas_src>

<mosaic_0001>
module attributes {stable_mosaic.version = 11 : i64} {
  func.func @_tcn_kernel(%arg0: i32, %arg1: memref<1x16x128xf32, #tpu.memory_space<vmem>>, %arg2: memref<16x2xf32, #tpu.memory_space<vmem>>, %arg3: memref<16x17xf32, #tpu.memory_space<vmem>>, %arg4: memref<4x32x16xf32, #tpu.memory_space<vmem>>, %arg5: memref<4x32x16xf32, #tpu.memory_space<vmem>>, %arg6: memref<4x32x32xf32, #tpu.memory_space<vmem>>, %arg7: memref<4x32x1xf32, #tpu.memory_space<vmem>>, %arg8: memref<16x17xf32, #tpu.memory_space<vmem>>, %arg9: memref<9xf32, #tpu.memory_space<smem>>, %arg10: memref<1x16x128xf32, #tpu.memory_space<vmem>>) attributes {dimension_semantics = [#tpu.dimension_semantics<parallel>], iteration_bounds = array<i64: 2>, scalar_prefetch = 0 : i64, scratch_operands = 0 : i64, tpu.core_type = #tpu.core_type<tc>, window_params = [{transform_indices = @transform_0, window_bounds = array<i64: 1, 16, 128>}, {pipeline_mode = #tpu.pipeline_mode<synchronous>, transform_indices = @transform_1, window_bounds = array<i64: 16, 2>}, {pipeline_mode = #tpu.pipeline_mode<synchronous>, transform_indices = @transform_2, window_bounds = array<i64: 16, 17>}, {pipeline_mode = #tpu.pipeline_mode<synchronous>, transform_indices = @transform_3, window_bounds = array<i64: 4, 32, 16>}, {pipeline_mode = #tpu.pipeline_mode<synchronous>, transform_indices = @transform_4, window_bounds = array<i64: 4, 32, 16>}, {pipeline_mode = #tpu.pipeline_mode<synchronous>, transform_indices = @transform_5, window_bounds = array<i64: 4, 32, 32>}, {pipeline_mode = #tpu.pipeline_mode<synchronous>, transform_indices = @transform_6, window_bounds = array<i64: 4, 32, 1>}, {pipeline_mode = #tpu.pipeline_mode<synchronous>, transform_indices = @transform_7, window_bounds = array<i64: 16, 17>}, {transform_indices = @transform_8, window_bounds = array<i64: 9>}, {transform_indices = @transform_9, window_bounds = array<i64: 1, 16, 128>}]} {
    %c0 = arith.constant 0 : index
    %c0_0 = arith.constant 0 : index
    %c0_1 = arith.constant 0 : index
    %0 = vector.load %arg1[%c0, %c0_0, %c0_1] : memref<1x16x128xf32, #tpu.memory_space<vmem>>, vector<1x16x128xf32>
    %1 = vector.shape_cast %0 : vector<1x16x128xf32> to vector<16x128xf32>
    %2 = arith.mulf %1, %1 : vector<16x128xf32>
    %3 = tpu.concatenate %1, %2 in 0 : vector<16x128xf32>, vector<16x128xf32> -> vector<32x128xf32>
    %cst = arith.constant dense<0.000000e+00> : vector<32xf32>
    %4 = vector.multi_reduction <add>, %3, %cst [1] : vector<32x128xf32> to vector<32xf32>
    %5 = vector.shape_cast %4 : vector<32xf32> to vector<32x1xf32>
    %6 = vector.extract_strided_slice %5 {offsets = [0, 0], sizes = [16, 1], strides = [1, 1]} : vector<32x1xf32> to vector<16x1xf32>
    %7 = vector.shape_cast %6 : vector<16x1xf32> to vector<1x16x1xf32>
    %cst_2 = arith.constant dense<0.000000e+00> : vector<1xf32>
    %8 = vector.multi_reduction <add>, %7, %cst_2 [1, 2] : vector<1x16x1xf32> to vector<1xf32>
    %9 = vector.shape_cast %8 : vector<1xf32> to vector<1x1x1xf32>
    %10 = vector.extract %9[0, 0, 0] : f32 from vector<1x1x1xf32>
    %11 = vector.extract_strided_slice %5 {offsets = [16, 0], sizes = [16, 1], strides = [1, 1]} : vector<32x1xf32> to vector<16x1xf32>
    %12 = vector.shape_cast %11 : vector<16x1xf32> to vector<1x16x1xf32>
    %cst_3 = arith.constant dense<0.000000e+00> : vector<1xf32>
    %13 = vector.multi_reduction <add>, %12, %cst_3 [1, 2] : vector<1x16x1xf32> to vector<1xf32>
    %14 = vector.shape_cast %13 : vector<1xf32> to vector<1x1x1xf32>
    %15 = vector.extract %14[0, 0, 0] : f32 from vector<1x1x1xf32>
    %cst_4 = arith.constant 4.8828125E-4 : f32
    %16 = arith.mulf %10, %cst_4 : f32
    %cst_5 = arith.constant 4.8828125E-4 : f32
    %17 = arith.mulf %15, %cst_5 : f32
    %18 = arith.mulf %16, %16 : f32
    %19 = arith.subf %17, %18 : f32
    %cst_6 = arith.constant 0.000000e+00 : f32
    %20 = arith.maximumf %19, %cst_6 : f32
    %c0_7 = arith.constant 0 : index
    %c0_8 = arith.constant 0 : index
    %21 = vector.load %arg2[%c0_7, %c0_8] : memref<16x2xf32, #tpu.memory_space<vmem>>, vector<16x2xf32>
    %22 = vector.extract_strided_slice %21 {offsets = [0, 0], sizes = [16, 1], strides = [1, 1]} : vector<16x2xf32> to vector<16x1xf32>
    %cst_9 = arith.constant 9.99999993E-9 : f32
    %23 = arith.addf %20, %cst_9 : f32
    %24 = math.rsqrt %23 : f32
    %25 = vector.broadcast %24 : f32 to vector<16x1xf32>
    %26 = arith.mulf %22, %25 : vector<16x1xf32>
    %27 = vector.broadcast %26 : vector<16x1xf32> to vector<16x128xf32>
    %28 = arith.mulf %1, %27 : vector<16x128xf32>
    %29 = vector.extract_strided_slice %21 {offsets = [0, 1], sizes = [16, 1], strides = [1, 1]} : vector<16x2xf32> to vector<16x1xf32>
    %30 = vector.broadcast %16 : f32 to vector<16x1xf32>
    %31 = arith.mulf %30, %26 : vector<16x1xf32>
    %32 = arith.subf %29, %31 : vector<16x1xf32>
    %33 = vector.broadcast %32 : vector<16x1xf32> to vector<16x128xf32>
    %34 = arith.addf %28, %33 : vector<16x128xf32>
    %c0_10 = arith.constant 0 : index
    %c0_11 = arith.constant 0 : index
    %35 = vector.load %arg3[%c0_10, %c0_11] : memref<16x17xf32, #tpu.memory_space<vmem>>, vector<16x17xf32>
    %36 = vector.extract_strided_slice %35 {offsets = [0, 0], sizes = [16, 16], strides = [1, 1]} : vector<16x17xf32> to vector<16x16xf32>
    %cst_12 = arith.constant dense<0.000000e+00> : vector<16x128xf32>
    %37 = tpu.matmul %36, %34, %cst_12 {dimension_numbers = #tpu.dot_dimension_numbers<[1], [0], [0], [1], [0, 0, 1, 1], [], []>} : vector<16x16xf32>, vector<16x128xf32>, vector<16x128xf32> -> vector<16x128xf32>
    %38 = vector.extract_strided_slice %35 {offsets = [0, 16], sizes = [16, 1], strides = [1, 1]} : vector<16x17xf32> to vector<16x1xf32>
    %39 = vector.broadcast %38 : vector<16x1xf32> to vector<16x128xf32>
    %40 = arith.addf %37, %39 : vector<16x128xf32>
    %cst_13 = arith.constant 0.000000e+00 : f32
    %41 = vector.broadcast %cst_13 : f32 to vector<16x128xf32>
    %42 = tpu.iota {dimensions = array<i32: 1>} : vector<32x128xi32>
    %c0_14 = arith.constant 0 : index
    %43 = memref.load %arg9[%c0_14] : memref<9xf32, #tpu.memory_space<smem>>
    %c1 = arith.constant 1 : index
    %44 = memref.load %arg9[%c1] : memref<9xf32, #tpu.memory_space<smem>>
    %c0_15 = arith.constant 0 : index
    %c0_16 = arith.constant 0 : index
    %c0_17 = arith.constant 0 : index
    %45 = vector.load %arg5[%c0_15, %c0_16, %c0_17] : memref<4x32x16xf32, #tpu.memory_space<vmem>>, vector<1x32x16xf32>
    %46 = vector.shape_cast %45 : vector<1x32x16xf32> to vector<32x16xf32>
    %47 = vector.extract_strided_slice %46 {offsets = [0, 0], sizes = [32, 1], strides = [1, 1]} : vector<32x16xf32> to vector<32x1xf32>
    %48 = vector.extract_strided_slice %46 {offsets = [0, 1], sizes = [32, 1], strides = [1, 1]} : vector<32x16xf32> to vector<32x1xf32>
    %49 = vector.extract_strided_slice %46 {offsets = [0, 2], sizes = [32, 1], strides = [1, 1]} : vector<32x16xf32> to vector<32x1xf32>
    %50 = vector.extract_strided_slice %46 {offsets = [0, 3], sizes = [32, 1], strides = [1, 1]} : vector<32x16xf32> to vector<32x1xf32>
    %51 = vector.extract_strided_slice %46 {offsets = [0, 4], sizes = [32, 1], strides = [1, 1]} : vector<32x16xf32> to vector<32x1xf32>
    %52 = vector.extract_strided_slice %46 {offsets = [0, 5], sizes = [32, 1], strides = [1, 1]} : vector<32x16xf32> to vector<32x1xf32>
    %c0_18 = arith.constant 0 : index
    %c0_19 = arith.constant 0 : index
    %c0_20 = arith.constant 0 : index
    %53 = vector.load %arg4[%c0_18, %c0_19, %c0_20] : memref<4x32x16xf32, #tpu.memory_space<vmem>>, vector<1x32x16xf32>
    %54 = vector.shape_cast %53 : vector<1x32x16xf32> to vector<32x16xf32>
    %cst_21 = arith.constant dense<0.000000e+00> : vector<32x128xf32>
    %55 = tpu.matmul %54, %40, %cst_21 {dimension_numbers = #tpu.dot_dimension_numbers<[1], [0], [0], [1], [0, 0, 1, 1], [], []>} : vector<32x16xf32>, vector<16x128xf32>, vector<32x128xf32> -> vector<32x128xf32>
    %56 = vector.broadcast %47 : vector<32x1xf32> to vector<32x128xf32>
    %57 = arith.addf %55, %56 : vector<32x128xf32>
    %cst_22 = arith.constant 0.000000e+00 : f32
    %58 = vector.broadcast %cst_22 : f32 to vector<32x128xf32>
    %59 = arith.cmpf oge, %57, %58 : vector<32x128xf32>
    %60 = vector.broadcast %43 : f32 to vector<32x128xf32>
    %61 = arith.mulf %60, %57 : vector<32x128xf32>
    %62 = arith.select %59, %57, %61 : vector<32x128xi1>, vector<32x128xf32>
    %63 = arith.mulf %62, %62 : vector<32x128xf32>
    %64 = tpu.concatenate %62, %63 in 0 : vector<32x128xf32>, vector<32x128xf32> -> vector<64x128xf32>
    %cst_23 = arith.constant dense<0.000000e+00> : vector<64xf32>
    %65 = vector.multi_reduction <add>, %64, %cst_23 [1] : vector<64x128xf32> to vector<64xf32>
    %66 = vector.shape_cast %65 : vector<64xf32> to vector<64x1xf32>
    %67 = vector.extract_strided_slice %66 {offsets = [0, 0], sizes = [32, 1], strides = [1, 1]} : vector<64x1xf32> to vector<32x1xf32>
    %68 = vector.shape_cast %67 : vector<32x1xf32> to vector<1x32x1xf32>
    %cst_24 = arith.constant dense<0.000000e+00> : vector<1xf32>
    %69 = vector.multi_reduction <add>, %68, %cst_24 [1, 2] : vector<1x32x1xf32> to vector<1xf32>
    %70 = vector.shape_cast %69 : vector<1xf32> to vector<1x1x1xf32>
    %71 = vector.extract %70[0, 0, 0] : f32 from vector<1x1x1xf32>
    %72 = vector.extract_strided_slice %66 {offsets = [32, 0], sizes = [32, 1], strides = [1, 1]} : vector<64x1xf32> to vector<32x1xf32>
    %73 = vector.shape_cast %72 : vector<32x1xf32> to vector<1x32x1xf32>
    %cst_25 = arith.constant dense<0.000000e+00> : vector<1xf32>
    %74 = vector.multi_reduction <add>, %73, %cst_25 [1, 2] : vector<1x32x1xf32> to vector<1xf32>
    %75 = vector.shape_cast %74 : vector<1xf32> to vector<1x1x1xf32>
    %76 = vector.extract %75[0, 0, 0] : f32 from vector<1x1x1xf32>
    %cst_26 = arith.constant 2.44140625E-4 : f32
    %77 = arith.mulf %71, %cst_26 : f32
    %cst_27 = arith.constant 2.44140625E-4 : f32
    %78 = arith.mulf %76, %cst_27 : f32
    %79 = arith.mulf %77, %77 : f32
    %80 = arith.subf %78, %79 : f32
    %cst_28 = arith.constant 0.000000e+00 : f32
    %81 = arith.maximumf %80, %cst_28 : f32
    %cst_29 = arith.constant 9.99999993E-9 : f32
    %82 = arith.addf %81, %cst_29 : f32
    %83 = math.rsqrt %82 : f32
    %84 = vector.broadcast %83 : f32 to vector<32x1xf32>
    %85 = arith.mulf %48, %84 : vector<32x1xf32>
    %86 = vector.broadcast %85 : vector<32x1xf32> to vector<32x128xf32>
    %87 = arith.mulf %62, %86 : vector<32x128xf32>
    %88 = vector.broadcast %77 : f32 to vector<32x1xf32>
    %89 = arith.mulf %88, %85 : vector<32x1xf32>
    %90 = arith.subf %49, %89 : vector<32x1xf32>
    %91 = vector.broadcast %90 : vector<32x1xf32> to vector<32x128xf32>
    %92 = arith.addf %87, %91 : vector<32x128xf32>
    %93 = vector.shape_cast %50 : vector<32x1xf32> to vector<32x1xf32>
    %94 = vector.broadcast %93 : vector<32x1xf32> to vector<32x128xf32>
    %c1_i32 = arith.constant 1 : i32
    %95 = tpu.dynamic_rotate %92 by %c1_i32 dim 1 : vector<32x128xf32>, i32 -> vector<32x128xf32>
    %c1_i32_30 = arith.constant 1 : i32
    %96 = vector.broadcast %c1_i32_30 : i32 to vector<32x128xi32>
    %97 = arith.cmpi sge, %42, %96 : vector<32x128xi32>
    %cst_31 = arith.constant 0.000000e+00 : f32
    %98 = vector.broadcast %cst_31 : f32 to vector<32x128xf32>
    %99 = arith.select %97, %95, %98 : vector<32x128xi1>, vector<32x128xf32>
    %100 = vector.extract_strided_slice %46 {offsets = [0, 6], sizes = [32, 1], strides = [1, 1]} : vector<32x16xf32> to vector<32x1xf32>
    %101 = vector.broadcast %100 : vector<32x1xf32> to vector<32x128xf32>
    %102 = arith.mulf %101, %99 : vector<32x128xf32>
    %103 = arith.addf %94, %102 : vector<32x128xf32>
    %104 = vector.extract_strided_slice %46 {offsets = [0, 7], sizes = [32, 1], strides = [1, 1]} : vector<32x16xf32> to vector<32x1xf32>
    %105 = vector.broadcast %104 : vector<32x1xf32> to vector<32x128xf32>
    %106 = arith.mulf %105, %92 : vector<32x128xf32>
    %107 = arith.addf %103, %106 : vector<32x128xf32>
    %c127_i32 = arith.constant 127 : i32
    %108 = tpu.dynamic_rotate %92 by %c127_i32 dim 1 : vector<32x128xf32>, i32 -> vector<32x128xf32>
    %c127_i32_32 = arith.constant 127 : i32
    %109 = vector.broadcast %c127_i32_32 : i32 to vector<32x128xi32>
    %110 = arith.cmpi slt, %42, %109 : vector<32x128xi32>
    %cst_33 = arith.constant 0.000000e+00 : f32
    %111 = vector.broadcast %cst_33 : f32 to vector<32x128xf32>
    %112 = arith.select %110, %108, %111 : vector<32x128xi1>, vector<32x128xf32>
    %113 = vector.extract_strided_slice %46 {offsets = [0, 8], sizes = [32, 1], strides = [1, 1]} : vector<32x16xf32> to vector<32x1xf32>
    %114 = vector.broadcast %113 : vector<32x1xf32> to vector<32x128xf32>
    %115 = arith.mulf %114, %112 : vector<32x128xf32>
    %116 = arith.addf %107, %115 : vector<32x128xf32>
    %cst_34 = arith.constant 0.000000e+00 : f32
    %117 = vector.broadcast %cst_34 : f32 to vector<32x128xf32>
    %118 = arith.cmpf oge, %116, %117 : vector<32x128xf32>
    %119 = vector.broadcast %44 : f32 to vector<32x128xf32>
    %120 = arith.mulf %119, %116 : vector<32x128xf32>
    %121 = arith.select %118, %116, %120 : vector<32x128xi1>, vector<32x128xf32>
    %122 = arith.mulf %121, %121 : vector<32x128xf32>
    %123 = tpu.concatenate %121, %122 in 0 : vector<32x128xf32>, vector<32x128xf32> -> vector<64x128xf32>
    %cst_35 = arith.constant dense<0.000000e+00> : vector<64xf32>
    %124 = vector.multi_reduction <add>, %123, %cst_35 [1] : vector<64x128xf32> to vector<64xf32>
    %125 = vector.shape_cast %124 : vector<64xf32> to vector<64x1xf32>
    %126 = vector.extract_strided_slice %125 {offsets = [0, 0], sizes = [32, 1], strides = [1, 1]} : vector<64x1xf32> to vector<32x1xf32>
    %127 = vector.shape_cast %126 : vector<32x1xf32> to vector<1x32x1xf32>
    %cst_36 = arith.constant dense<0.000000e+00> : vector<1xf32>
    %128 = vector.multi_reduction <add>, %127, %cst_36 [1, 2] : vector<1x32x1xf32> to vector<1xf32>
    %129 = vector.shape_cast %128 : vector<1xf32> to vector<1x1x1xf32>
    %130 = vector.extract %129[0, 0, 0] : f32 from vector<1x1x1xf32>
    %131 = vector.extract_strided_slice %125 {offsets = [32, 0], sizes = [32, 1], strides = [1, 1]} : vector<64x1xf32> to vector<32x1xf32>
    %132 = vector.shape_cast %131 : vector<32x1xf32> to vector<1x32x1xf32>
    %cst_37 = arith.constant dense<0.000000e+00> : vector<1xf32>
    %133 = vector.multi_reduction <add>, %132, %cst_37 [1, 2] : vector<1x32x1xf32> to vector<1xf32>
    %134 = vector.shape_cast %133 : vector<1xf32> to vector<1x1x1xf32>
    %135 = vector.extract %134[0, 0, 0] : f32 from vector<1x1x1xf32>
    %cst_38 = arith.constant 2.44140625E-4 : f32
    %136 = arith.mulf %130, %cst_38 : f32
    %cst_39 = arith.constant 2.44140625E-4 : f32
    %137 = arith.mulf %135, %cst_39 : f32
    %138 = arith.mulf %136, %136 : f32
    %139 = arith.subf %137, %138 : f32
    %cst_40 = arith.constant 0.000000e+00 : f32
    %140 = arith.maximumf %139, %cst_40 : f32
    %cst_41 = arith.constant 9.99999993E-9 : f32
    %141 = arith.addf %140, %cst_41 : f32
    %142 = math.rsqrt %141 : f32
    %143 = vector.broadcast %142 : f32 to vector<32x1xf32>
    %144 = arith.mulf %51, %143 : vector<32x1xf32>
    %145 = vector.broadcast %144 : vector<32x1xf32> to vector<32x128xf32>
    %146 = arith.mulf %121, %145 : vector<32x128xf32>
    %147 = vector.broadcast %136 : f32 to vector<32x1xf32>
    %148 = arith.mulf %147, %144 : vector<32x1xf32>
    %149 = arith.subf %52, %148 : vector<32x1xf32>
    %150 = vector.broadcast %149 : vector<32x1xf32> to vector<32x128xf32>
    %151 = arith.addf %146, %150 : vector<32x128xf32>
    %c0_42 = arith.constant 0 : index
    %c0_43 = arith.constant 0 : index
    %c0_44 = arith.constant 0 : index
    %152 = vector.load %arg6[%c0_42, %c0_43, %c0_44] : memref<4x32x32xf32, #tpu.memory_space<vmem>>, vector<1x32x32xf32>
    %153 = vector.shape_cast %152 : vector<1x32x32xf32> to vector<32x32xf32>
    %cst_45 = arith.constant dense<0.000000e+00> : vector<32x128xf32>
    %154 = tpu.matmul %153, %151, %cst_45 {dimension_numbers = #tpu.dot_dimension_numbers<[1], [0], [0], [1], [0, 0, 1, 1], [], []>} : vector<32x32xf32>, vector<32x128xf32>, vector<32x128xf32> -> vector<32x128xf32>
    %c0_46 = arith.constant 0 : index
    %c0_47 = arith.constant 0 : index
    %c0_48 = arith.constant 0 : index
    %155 = vector.load %arg7[%c0_46, %c0_47, %c0_48] : memref<4x32x1xf32, #tpu.memory_space<vmem>>, vector<1x32x1xf32>
    %156 = vector.shape_cast %155 : vector<1x32x1xf32> to vector<32x1xf32>
    %157 = vector.broadcast %156 : vector<32x1xf32> to vector<32x128xf32>
    %158 = arith.addf %154, %157 : vector<32x128xf32>
    %159 = vector.extract_strided_slice %158 {offsets = [0, 0], sizes = [16, 128], strides = [1, 1]} : vector<32x128xf32> to vector<16x128xf32>
    %160 = arith.addf %40, %159 : vector<16x128xf32>
    %161 = vector.extract_strided_slice %158 {offsets = [16, 0], sizes = [16, 128], strides = [1, 1]} : vector<32x128xf32> to vector<16x128xf32>
    %162 = arith.addf %41, %161 : vector<16x128xf32>
    %c2 = arith.constant 2 : index
    %163 = memref.load %arg9[%c2] : memref<9xf32, #tpu.memory_space<smem>>
    %c3 = arith.constant 3 : index
    %164 = memref.load %arg9[%c3] : memref<9xf32, #tpu.memory_space<smem>>
    %c1_49 = arith.constant 1 : index
    %c0_50 = arith.constant 0 : index
    %c0_51 = arith.constant 0 : index
    %165 = vector.load %arg5[%c1_49, %c0_50, %c0_51] : memref<4x32x16xf32, #tpu.memory_space<vmem>>, vector<1x32x16xf32>
    %166 = vector.shape_cast %165 : vector<1x32x16xf32> to vector<32x16xf32>
    %167 = vector.extract_strided_slice %166 {offsets = [0, 0], sizes = [32, 1], strides = [1, 1]} : vector<32x16xf32> to vector<32x1xf32>
    %168 = vector.extract_strided_slice %166 {offsets = [0, 1], sizes = [32, 1], strides = [1, 1]} : vector<32x16xf32> to vector<32x1xf32>
    %169 = vector.extract_strided_slice %166 {offsets = [0, 2], sizes = [32, 1], strides = [1, 1]} : vector<32x16xf32> to vector<32x1xf32>
    %170 = vector.extract_strided_slice %166 {offsets = [0, 3], sizes = [32, 1], strides = [1, 1]} : vector<32x16xf32> to vector<32x1xf32>
    %171 = vector.extract_strided_slice %166 {offsets = [0, 4], sizes = [32, 1], strides = [1, 1]} : vector<32x16xf32> to vector<32x1xf32>
    %172 = vector.extract_strided_slice %166 {offsets = [0, 5], sizes = [32, 1], strides = [1, 1]} : vector<32x16xf32> to vector<32x1xf32>
    %c1_52 = arith.constant 1 : index
    %c0_53 = arith.constant 0 : index
    %c0_54 = arith.constant 0 : index
    %173 = vector.load %arg4[%c1_52, %c0_53, %c0_54] : memref<4x32x16xf32, #tpu.memory_space<vmem>>, vector<1x32x16xf32>
    %174 = vector.shape_cast %173 : vector<1x32x16xf32> to vector<32x16xf32>
    %cst_55 = arith.constant dense<0.000000e+00> : vector<32x128xf32>
    %175 = tpu.matmul %174, %160, %cst_55 {dimension_numbers = #tpu.dot_dimension_numbers<[1], [0], [0], [1], [0, 0, 1, 1], [], []>} : vector<32x16xf32>, vector<16x128xf32>, vector<32x128xf32> -> vector<32x128xf32>
    %176 = vector.broadcast %167 : vector<32x1xf32> to vector<32x128xf32>
    %177 = arith.addf %175, %176 : vector<32x128xf32>
    %cst_56 = arith.constant 0.000000e+00 : f32
    %178 = vector.broadcast %cst_56 : f32 to vector<32x128xf32>
    %179 = arith.cmpf oge, %177, %178 : vector<32x128xf32>
    %180 = vector.broadcast %163 : f32 to vector<32x128xf32>
    %181 = arith.mulf %180, %177 : vector<32x128xf32>
    %182 = arith.select %179, %177, %181 : vector<32x128xi1>, vector<32x128xf32>
    %183 = arith.mulf %182, %182 : vector<32x128xf32>
    %184 = tpu.concatenate %182, %183 in 0 : vector<32x128xf32>, vector<32x128xf32> -> vector<64x128xf32>
    %cst_57 = arith.constant dense<0.000000e+00> : vector<64xf32>
    %185 = vector.multi_reduction <add>, %184, %cst_57 [1] : vector<64x128xf32> to vector<64xf32>
    %186 = vector.shape_cast %185 : vector<64xf32> to vector<64x1xf32>
    %187 = vector.extract_strided_slice %186 {offsets = [0, 0], sizes = [32, 1], strides = [1, 1]} : vector<64x1xf32> to vector<32x1xf32>
    %188 = vector.shape_cast %187 : vector<32x1xf32> to vector<1x32x1xf32>
    %cst_58 = arith.constant dense<0.000000e+00> : vector<1xf32>
    %189 = vector.multi_reduction <add>, %188, %cst_58 [1, 2] : vector<1x32x1xf32> to vector<1xf32>
    %190 = vector.shape_cast %189 : vector<1xf32> to vector<1x1x1xf32>
    %191 = vector.extract %190[0, 0, 0] : f32 from vector<1x1x1xf32>
    %192 = vector.extract_strided_slice %186 {offsets = [32, 0], sizes = [32, 1], strides = [1, 1]} : vector<64x1xf32> to vector<32x1xf32>
    %193 = vector.shape_cast %192 : vector<32x1xf32> to vector<1x32x1xf32>
    %cst_59 = arith.constant dense<0.000000e+00> : vector<1xf32>
    %194 = vector.multi_reduction <add>, %193, %cst_59 [1, 2] : vector<1x32x1xf32> to vector<1xf32>
    %195 = vector.shape_cast %194 : vector<1xf32> to vector<1x1x1xf32>
    %196 = vector.extract %195[0, 0, 0] : f32 from vector<1x1x1xf32>
    %cst_60 = arith.constant 2.44140625E-4 : f32
    %197 = arith.mulf %191, %cst_60 : f32
    %cst_61 = arith.constant 2.44140625E-4 : f32
    %198 = arith.mulf %196, %cst_61 : f32
    %199 = arith.mulf %197, %197 : f32
    %200 = arith.subf %198, %199 : f32
    %cst_62 = arith.constant 0.000000e+00 : f32
    %201 = arith.maximumf %200, %cst_62 : f32
    %cst_63 = arith.constant 9.99999993E-9 : f32
    %202 = arith.addf %201, %cst_63 : f32
    %203 = math.rsqrt %202 : f32
    %204 = vector.broadcast %203 : f32 to vector<32x1xf32>
    %205 = arith.mulf %168, %204 : vector<32x1xf32>
    %206 = vector.broadcast %205 : vector<32x1xf32> to vector<32x128xf32>
    %207 = arith.mulf %182, %206 : vector<32x128xf32>
    %208 = vector.broadcast %197 : f32 to vector<32x1xf32>
    %209 = arith.mulf %208, %205 : vector<32x1xf32>
    %210 = arith.subf %169, %209 : vector<32x1xf32>
    %211 = vector.broadcast %210 : vector<32x1xf32> to vector<32x128xf32>
    %212 = arith.addf %207, %211 : vector<32x128xf32>
    %213 = vector.shape_cast %170 : vector<32x1xf32> to vector<32x1xf32>
    %214 = vector.broadcast %213 : vector<32x1xf32> to vector<32x128xf32>
    %c2_i32 = arith.constant 2 : i32
    %215 = tpu.dynamic_rotate %212 by %c2_i32 dim 1 : vector<32x128xf32>, i32 -> vector<32x128xf32>
    %c2_i32_64 = arith.constant 2 : i32
    %216 = vector.broadcast %c2_i32_64 : i32 to vector<32x128xi32>
    %217 = arith.cmpi sge, %42, %216 : vector<32x128xi32>
    %cst_65 = arith.constant 0.000000e+00 : f32
    %218 = vector.broadcast %cst_65 : f32 to vector<32x128xf32>
    %219 = arith.select %217, %215, %218 : vector<32x128xi1>, vector<32x128xf32>
    %220 = vector.extract_strided_slice %166 {offsets = [0, 6], sizes = [32, 1], strides = [1, 1]} : vector<32x16xf32> to vector<32x1xf32>
    %221 = vector.broadcast %220 : vector<32x1xf32> to vector<32x128xf32>
    %222 = arith.mulf %221, %219 : vector<32x128xf32>
    %223 = arith.addf %214, %222 : vector<32x128xf32>
    %224 = vector.extract_strided_slice %166 {offsets = [0, 7], sizes = [32, 1], strides = [1, 1]} : vector<32x16xf32> to vector<32x1xf32>
    %225 = vector.broadcast %224 : vector<32x1xf32> to vector<32x128xf32>
    %226 = arith.mulf %225, %212 : vector<32x128xf32>
    %227 = arith.addf %223, %226 : vector<32x128xf32>
    %c126_i32 = arith.constant 126 : i32
    %228 = tpu.dynamic_rotate %212 by %c126_i32 dim 1 : vector<32x128xf32>, i32 -> vector<32x128xf32>
    %c126_i32_66 = arith.constant 126 : i32
    %229 = vector.broadcast %c126_i32_66 : i32 to vector<32x128xi32>
    %230 = arith.cmpi slt, %42, %229 : vector<32x128xi32>
    %cst_67 = arith.constant 0.000000e+00 : f32
    %231 = vector.broadcast %cst_67 : f32 to vector<32x128xf32>
    %232 = arith.select %230, %228, %231 : vector<32x128xi1>, vector<32x128xf32>
    %233 = vector.extract_strided_slice %166 {offsets = [0, 8], sizes = [32, 1], strides = [1, 1]} : vector<32x16xf32> to vector<32x1xf32>
    %234 = vector.broadcast %233 : vector<32x1xf32> to vector<32x128xf32>
    %235 = arith.mulf %234, %232 : vector<32x128xf32>
    %236 = arith.addf %227, %235 : vector<32x128xf32>
    %cst_68 = arith.constant 0.000000e+00 : f32
    %237 = vector.broadcast %cst_68 : f32 to vector<32x128xf32>
    %238 = arith.cmpf oge, %236, %237 : vector<32x128xf32>
    %239 = vector.broadcast %164 : f32 to vector<32x128xf32>
    %240 = arith.mulf %239, %236 : vector<32x128xf32>
    %241 = arith.select %238, %236, %240 : vector<32x128xi1>, vector<32x128xf32>
    %242 = arith.mulf %241, %241 : vector<32x128xf32>
    %243 = tpu.concatenate %241, %242 in 0 : vector<32x128xf32>, vector<32x128xf32> -> vector<64x128xf32>
    %cst_69 = arith.constant dense<0.000000e+00> : vector<64xf32>
    %244 = vector.multi_reduction <add>, %243, %cst_69 [1] : vector<64x128xf32> to vector<64xf32>
    %245 = vector.shape_cast %244 : vector<64xf32> to vector<64x1xf32>
    %246 = vector.extract_strided_slice %245 {offsets = [0, 0], sizes = [32, 1], strides = [1, 1]} : vector<64x1xf32> to vector<32x1xf32>
    %247 = vector.shape_cast %246 : vector<32x1xf32> to vector<1x32x1xf32>
    %cst_70 = arith.constant dense<0.000000e+00> : vector<1xf32>
    %248 = vector.multi_reduction <add>, %247, %cst_70 [1, 2] : vector<1x32x1xf32> to vector<1xf32>
    %249 = vector.shape_cast %248 : vector<1xf32> to vector<1x1x1xf32>
    %250 = vector.extract %249[0, 0, 0] : f32 from vector<1x1x1xf32>
    %251 = vector.extract_strided_slice %245 {offsets = [32, 0], sizes = [32, 1], strides = [1, 1]} : vector<64x1xf32> to vector<32x1xf32>
    %252 = vector.shape_cast %251 : vector<32x1xf32> to vector<1x32x1xf32>
    %cst_71 = arith.constant dense<0.000000e+00> : vector<1xf32>
    %253 = vector.multi_reduction <add>, %252, %cst_71 [1, 2] : vector<1x32x1xf32> to vector<1xf32>
    %254 = vector.shape_cast %253 : vector<1xf32> to vector<1x1x1xf32>
    %255 = vector.extract %254[0, 0, 0] : f32 from vector<1x1x1xf32>
    %cst_72 = arith.constant 2.44140625E-4 : f32
    %256 = arith.mulf %250, %cst_72 : f32
    %cst_73 = arith.constant 2.44140625E-4 : f32
    %257 = arith.mulf %255, %cst_73 : f32
    %258 = arith.mulf %256, %256 : f32
    %259 = arith.subf %257, %258 : f32
    %cst_74 = arith.constant 0.000000e+00 : f32
    %260 = arith.maximumf %259, %cst_74 : f32
    %cst_75 = arith.constant 9.99999993E-9 : f32
    %261 = arith.addf %260, %cst_75 : f32
    %262 = math.rsqrt %261 : f32
    %263 = vector.broadcast %262 : f32 to vector<32x1xf32>
    %264 = arith.mulf %171, %263 : vector<32x1xf32>
    %265 = vector.broadcast %264 : vector<32x1xf32> to vector<32x128xf32>
    %266 = arith.mulf %241, %265 : vector<32x128xf32>
    %267 = vector.broadcast %256 : f32 to vector<32x1xf32>
    %268 = arith.mulf %267, %264 : vector<32x1xf32>
    %269 = arith.subf %172, %268 : vector<32x1xf32>
    %270 = vector.broadcast %269 : vector<32x1xf32> to vector<32x128xf32>
    %271 = arith.addf %266, %270 : vector<32x128xf32>
    %c1_76 = arith.constant 1 : index
    %c0_77 = arith.constant 0 : index
    %c0_78 = arith.constant 0 : index
    %272 = vector.load %arg6[%c1_76, %c0_77, %c0_78] : memref<4x32x32xf32, #tpu.memory_space<vmem>>, vector<1x32x32xf32>
    %273 = vector.shape_cast %272 : vector<1x32x32xf32> to vector<32x32xf32>
    %cst_79 = arith.constant dense<0.000000e+00> : vector<32x128xf32>
    %274 = tpu.matmul %273, %271, %cst_79 {dimension_numbers = #tpu.dot_dimension_numbers<[1], [0], [0], [1], [0, 0, 1, 1], [], []>} : vector<32x32xf32>, vector<32x128xf32>, vector<32x128xf32> -> vector<32x128xf32>
    %c1_80 = arith.constant 1 : index
    %c0_81 = arith.constant 0 : index
    %c0_82 = arith.constant 0 : index
    %275 = vector.load %arg7[%c1_80, %c0_81, %c0_82] : memref<4x32x1xf32, #tpu.memory_space<vmem>>, vector<1x32x1xf32>
    %276 = vector.shape_cast %275 : vector<1x32x1xf32> to vector<32x1xf32>
    %277 = vector.broadcast %276 : vector<32x1xf32> to vector<32x128xf32>
    %278 = arith.addf %274, %277 : vector<32x128xf32>
    %279 = vector.extract_strided_slice %278 {offsets = [0, 0], sizes = [16, 128], strides = [1, 1]} : vector<32x128xf32> to vector<16x128xf32>
    %280 = arith.addf %160, %279 : vector<16x128xf32>
    %281 = vector.extract_strided_slice %278 {offsets = [16, 0], sizes = [16, 128], strides = [1, 1]} : vector<32x128xf32> to vector<16x128xf32>
    %282 = arith.addf %162, %281 : vector<16x128xf32>
    %c4 = arith.constant 4 : index
    %283 = memref.load %arg9[%c4] : memref<9xf32, #tpu.memory_space<smem>>
    %c5 = arith.constant 5 : index
    %284 = memref.load %arg9[%c5] : memref<9xf32, #tpu.memory_space<smem>>
    %c2_83 = arith.constant 2 : index
    %c0_84 = arith.constant 0 : index
    %c0_85 = arith.constant 0 : index
    %285 = vector.load %arg5[%c2_83, %c0_84, %c0_85] : memref<4x32x16xf32, #tpu.memory_space<vmem>>, vector<1x32x16xf32>
    %286 = vector.shape_cast %285 : vector<1x32x16xf32> to vector<32x16xf32>
    %287 = vector.extract_strided_slice %286 {offsets = [0, 0], sizes = [32, 1], strides = [1, 1]} : vector<32x16xf32> to vector<32x1xf32>
    %288 = vector.extract_strided_slice %286 {offsets = [0, 1], sizes = [32, 1], strides = [1, 1]} : vector<32x16xf32> to vector<32x1xf32>
    %289 = vector.extract_strided_slice %286 {offsets = [0, 2], sizes = [32, 1], strides = [1, 1]} : vector<32x16xf32> to vector<32x1xf32>
    %290 = vector.extract_strided_slice %286 {offsets = [0, 3], sizes = [32, 1], strides = [1, 1]} : vector<32x16xf32> to vector<32x1xf32>
    %291 = vector.extract_strided_slice %286 {offsets = [0, 4], sizes = [32, 1], strides = [1, 1]} : vector<32x16xf32> to vector<32x1xf32>
    %292 = vector.extract_strided_slice %286 {offsets = [0, 5], sizes = [32, 1], strides = [1, 1]} : vector<32x16xf32> to vector<32x1xf32>
    %c2_86 = arith.constant 2 : index
    %c0_87 = arith.constant 0 : index
    %c0_88 = arith.constant 0 : index
    %293 = vector.load %arg4[%c2_86, %c0_87, %c0_88] : memref<4x32x16xf32, #tpu.memory_space<vmem>>, vector<1x32x16xf32>
    %294 = vector.shape_cast %293 : vector<1x32x16xf32> to vector<32x16xf32>
    %cst_89 = arith.constant dense<0.000000e+00> : vector<32x128xf32>
    %295 = tpu.matmul %294, %280, %cst_89 {dimension_numbers = #tpu.dot_dimension_numbers<[1], [0], [0], [1], [0, 0, 1, 1], [], []>} : vector<32x16xf32>, vector<16x128xf32>, vector<32x128xf32> -> vector<32x128xf32>
    %296 = vector.broadcast %287 : vector<32x1xf32> to vector<32x128xf32>
    %297 = arith.addf %295, %296 : vector<32x128xf32>
    %cst_90 = arith.constant 0.000000e+00 : f32
    %298 = vector.broadcast %cst_90 : f32 to vector<32x128xf32>
    %299 = arith.cmpf oge, %297, %298 : vector<32x128xf32>
    %300 = vector.broadcast %283 : f32 to vector<32x128xf32>
    %301 = arith.mulf %300, %297 : vector<32x128xf32>
    %302 = arith.select %299, %297, %301 : vector<32x128xi1>, vector<32x128xf32>
    %303 = arith.mulf %302, %302 : vector<32x128xf32>
    %304 = tpu.concatenate %302, %303 in 0 : vector<32x128xf32>, vector<32x128xf32> -> vector<64x128xf32>
    %cst_91 = arith.constant dense<0.000000e+00> : vector<64xf32>
    %305 = vector.multi_reduction <add>, %304, %cst_91 [1] : vector<64x128xf32> to vector<64xf32>
    %306 = vector.shape_cast %305 : vector<64xf32> to vector<64x1xf32>
    %307 = vector.extract_strided_slice %306 {offsets = [0, 0], sizes = [32, 1], strides = [1, 1]} : vector<64x1xf32> to vector<32x1xf32>
    %308 = vector.shape_cast %307 : vector<32x1xf32> to vector<1x32x1xf32>
    %cst_92 = arith.constant dense<0.000000e+00> : vector<1xf32>
    %309 = vector.multi_reduction <add>, %308, %cst_92 [1, 2] : vector<1x32x1xf32> to vector<1xf32>
    %310 = vector.shape_cast %309 : vector<1xf32> to vector<1x1x1xf32>
    %311 = vector.extract %310[0, 0, 0] : f32 from vector<1x1x1xf32>
    %312 = vector.extract_strided_slice %306 {offsets = [32, 0], sizes = [32, 1], strides = [1, 1]} : vector<64x1xf32> to vector<32x1xf32>
    %313 = vector.shape_cast %312 : vector<32x1xf32> to vector<1x32x1xf32>
    %cst_93 = arith.constant dense<0.000000e+00> : vector<1xf32>
    %314 = vector.multi_reduction <add>, %313, %cst_93 [1, 2] : vector<1x32x1xf32> to vector<1xf32>
    %315 = vector.shape_cast %314 : vector<1xf32> to vector<1x1x1xf32>
    %316 = vector.extract %315[0, 0, 0] : f32 from vector<1x1x1xf32>
    %cst_94 = arith.constant 2.44140625E-4 : f32
    %317 = arith.mulf %311, %cst_94 : f32
    %cst_95 = arith.constant 2.44140625E-4 : f32
    %318 = arith.mulf %316, %cst_95 : f32
    %319 = arith.mulf %317, %317 : f32
    %320 = arith.subf %318, %319 : f32
    %cst_96 = arith.constant 0.000000e+00 : f32
    %321 = arith.maximumf %320, %cst_96 : f32
    %cst_97 = arith.constant 9.99999993E-9 : f32
    %322 = arith.addf %321, %cst_97 : f32
    %323 = math.rsqrt %322 : f32
    %324 = vector.broadcast %323 : f32 to vector<32x1xf32>
    %325 = arith.mulf %288, %324 : vector<32x1xf32>
    %326 = vector.broadcast %325 : vector<32x1xf32> to vector<32x128xf32>
    %327 = arith.mulf %302, %326 : vector<32x128xf32>
    %328 = vector.broadcast %317 : f32 to vector<32x1xf32>
    %329 = arith.mulf %328, %325 : vector<32x1xf32>
    %330 = arith.subf %289, %329 : vector<32x1xf32>
    %331 = vector.broadcast %330 : vector<32x1xf32> to vector<32x128xf32>
    %332 = arith.addf %327, %331 : vector<32x128xf32>
    %333 = vector.shape_cast %290 : vector<32x1xf32> to vector<32x1xf32>
    %334 = vector.broadcast %333 : vector<32x1xf32> to vector<32x128xf32>
    %c1_i32_98 = arith.constant 1 : i32
    %335 = tpu.dynamic_rotate %332 by %c1_i32_98 dim 1 : vector<32x128xf32>, i32 -> vector<32x128xf32>
    %c1_i32_99 = arith.constant 1 : i32
    %336 = vector.broadcast %c1_i32_99 : i32 to vector<32x128xi32>
    %337 = arith.cmpi sge, %42, %336 : vector<32x128xi32>
    %cst_100 = arith.constant 0.000000e+00 : f32
    %338 = vector.broadcast %cst_100 : f32 to vector<32x128xf32>
    %339 = arith.select %337, %335, %338 : vector<32x128xi1>, vector<32x128xf32>
    %340 = vector.extract_strided_slice %286 {offsets = [0, 6], sizes = [32, 1], strides = [1, 1]} : vector<32x16xf32> to vector<32x1xf32>
    %341 = vector.broadcast %340 : vector<32x1xf32> to vector<32x128xf32>
    %342 = arith.mulf %341, %339 : vector<32x128xf32>
    %343 = arith.addf %334, %342 : vector<32x128xf32>
    %344 = vector.extract_strided_slice %286 {offsets = [0, 7], sizes = [32, 1], strides = [1, 1]} : vector<32x16xf32> to vector<32x1xf32>
    %345 = vector.broadcast %344 : vector<32x1xf32> to vector<32x128xf32>
    %346 = arith.mulf %345, %332 : vector<32x128xf32>
    %347 = arith.addf %343, %346 : vector<32x128xf32>
    %c127_i32_101 = arith.constant 127 : i32
    %348 = tpu.dynamic_rotate %332 by %c127_i32_101 dim 1 : vector<32x128xf32>, i32 -> vector<32x128xf32>
    %c127_i32_102 = arith.constant 127 : i32
    %349 = vector.broadcast %c127_i32_102 : i32 to vector<32x128xi32>
    %350 = arith.cmpi slt, %42, %349 : vector<32x128xi32>
    %cst_103 = arith.constant 0.000000e+00 : f32
    %351 = vector.broadcast %cst_103 : f32 to vector<32x128xf32>
    %352 = arith.select %350, %348, %351 : vector<32x128xi1>, vector<32x128xf32>
    %353 = vector.extract_strided_slice %286 {offsets = [0, 8], sizes = [32, 1], strides = [1, 1]} : vector<32x16xf32> to vector<32x1xf32>
    %354 = vector.broadcast %353 : vector<32x1xf32> to vector<32x128xf32>
    %355 = arith.mulf %354, %352 : vector<32x128xf32>
    %356 = arith.addf %347, %355 : vector<32x128xf32>
    %cst_104 = arith.constant 0.000000e+00 : f32
    %357 = vector.broadcast %cst_104 : f32 to vector<32x128xf32>
    %358 = arith.cmpf oge, %356, %357 : vector<32x128xf32>
    %359 = vector.broadcast %284 : f32 to vector<32x128xf32>
    %360 = arith.mulf %359, %356 : vector<32x128xf32>
    %361 = arith.select %358, %356, %360 : vector<32x128xi1>, vector<32x128xf32>
    %362 = arith.mulf %361, %361 : vector<32x128xf32>
    %363 = tpu.concatenate %361, %362 in 0 : vector<32x128xf32>, vector<32x128xf32> -> vector<64x128xf32>
    %cst_105 = arith.constant dense<0.000000e+00> : vector<64xf32>
    %364 = vector.multi_reduction <add>, %363, %cst_105 [1] : vector<64x128xf32> to vector<64xf32>
    %365 = vector.shape_cast %364 : vector<64xf32> to vector<64x1xf32>
    %366 = vector.extract_strided_slice %365 {offsets = [0, 0], sizes = [32, 1], strides = [1, 1]} : vector<64x1xf32> to vector<32x1xf32>
    %367 = vector.shape_cast %366 : vector<32x1xf32> to vector<1x32x1xf32>
    %cst_106 = arith.constant dense<0.000000e+00> : vector<1xf32>
    %368 = vector.multi_reduction <add>, %367, %cst_106 [1, 2] : vector<1x32x1xf32> to vector<1xf32>
    %369 = vector.shape_cast %368 : vector<1xf32> to vector<1x1x1xf32>
    %370 = vector.extract %369[0, 0, 0] : f32 from vector<1x1x1xf32>
    %371 = vector.extract_strided_slice %365 {offsets = [32, 0], sizes = [32, 1], strides = [1, 1]} : vector<64x1xf32> to vector<32x1xf32>
    %372 = vector.shape_cast %371 : vector<32x1xf32> to vector<1x32x1xf32>
    %cst_107 = arith.constant dense<0.000000e+00> : vector<1xf32>
    %373 = vector.multi_reduction <add>, %372, %cst_107 [1, 2] : vector<1x32x1xf32> to vector<1xf32>
    %374 = vector.shape_cast %373 : vector<1xf32> to vector<1x1x1xf32>
    %375 = vector.extract %374[0, 0, 0] : f32 from vector<1x1x1xf32>
    %cst_108 = arith.constant 2.44140625E-4 : f32
    %376 = arith.mulf %370, %cst_108 : f32
    %cst_109 = arith.constant 2.44140625E-4 : f32
    %377 = arith.mulf %375, %cst_109 : f32
    %378 = arith.mulf %376, %376 : f32
    %379 = arith.subf %377, %378 : f32
    %cst_110 = arith.constant 0.000000e+00 : f32
    %380 = arith.maximumf %379, %cst_110 : f32
    %cst_111 = arith.constant 9.99999993E-9 : f32
    %381 = arith.addf %380, %cst_111 : f32
    %382 = math.rsqrt %381 : f32
    %383 = vector.broadcast %382 : f32 to vector<32x1xf32>
    %384 = arith.mulf %291, %383 : vector<32x1xf32>
    %385 = vector.broadcast %384 : vector<32x1xf32> to vector<32x128xf32>
    %386 = arith.mulf %361, %385 : vector<32x128xf32>
    %387 = vector.broadcast %376 : f32 to vector<32x1xf32>
    %388 = arith.mulf %387, %384 : vector<32x1xf32>
    %389 = arith.subf %292, %388 : vector<32x1xf32>
    %390 = vector.broadcast %389 : vector<32x1xf32> to vector<32x128xf32>
    %391 = arith.addf %386, %390 : vector<32x128xf32>
    %c2_112 = arith.constant 2 : index
    %c0_113 = arith.constant 0 : index
    %c0_114 = arith.constant 0 : index
    %392 = vector.load %arg6[%c2_112, %c0_113, %c0_114] : memref<4x32x32xf32, #tpu.memory_space<vmem>>, vector<1x32x32xf32>
    %393 = vector.shape_cast %392 : vector<1x32x32xf32> to vector<32x32xf32>
    %cst_115 = arith.constant dense<0.000000e+00> : vector<32x128xf32>
    %394 = tpu.matmul %393, %391, %cst_115 {dimension_numbers = #tpu.dot_dimension_numbers<[1], [0], [0], [1], [0, 0, 1, 1], [], []>} : vector<32x32xf32>, vector<32x128xf32>, vector<32x128xf32> -> vector<32x128xf32>
    %c2_116 = arith.constant 2 : index
    %c0_117 = arith.constant 0 : index
    %c0_118 = arith.constant 0 : index
    %395 = vector.load %arg7[%c2_116, %c0_117, %c0_118] : memref<4x32x1xf32, #tpu.memory_space<vmem>>, vector<1x32x1xf32>
    %396 = vector.shape_cast %395 : vector<1x32x1xf32> to vector<32x1xf32>
    %397 = vector.broadcast %396 : vector<32x1xf32> to vector<32x128xf32>
    %398 = arith.addf %394, %397 : vector<32x128xf32>
    %399 = vector.extract_strided_slice %398 {offsets = [0, 0], sizes = [16, 128], strides = [1, 1]} : vector<32x128xf32> to vector<16x128xf32>
    %400 = arith.addf %280, %399 : vector<16x128xf32>
    %401 = vector.extract_strided_slice %398 {offsets = [16, 0], sizes = [16, 128], strides = [1, 1]} : vector<32x128xf32> to vector<16x128xf32>
    %402 = arith.addf %282, %401 : vector<16x128xf32>
    %c6 = arith.constant 6 : index
    %403 = memref.load %arg9[%c6] : memref<9xf32, #tpu.memory_space<smem>>
    %c7 = arith.constant 7 : index
    %404 = memref.load %arg9[%c7] : memref<9xf32, #tpu.memory_space<smem>>
    %c3_119 = arith.constant 3 : index
    %c0_120 = arith.constant 0 : index
    %c0_121 = arith.constant 0 : index
    %405 = vector.load %arg5[%c3_119, %c0_120, %c0_121] : memref<4x32x16xf32, #tpu.memory_space<vmem>>, vector<1x32x16xf32>
    %406 = vector.shape_cast %405 : vector<1x32x16xf32> to vector<32x16xf32>
    %407 = vector.extract_strided_slice %406 {offsets = [0, 0], sizes = [32, 1], strides = [1, 1]} : vector<32x16xf32> to vector<32x1xf32>
    %408 = vector.extract_strided_slice %406 {offsets = [0, 1], sizes = [32, 1], strides = [1, 1]} : vector<32x16xf32> to vector<32x1xf32>
    %409 = vector.extract_strided_slice %406 {offsets = [0, 2], sizes = [32, 1], strides = [1, 1]} : vector<32x16xf32> to vector<32x1xf32>
    %410 = vector.extract_strided_slice %406 {offsets = [0, 3], sizes = [32, 1], strides = [1, 1]} : vector<32x16xf32> to vector<32x1xf32>
    %411 = vector.extract_strided_slice %406 {offsets = [0, 4], sizes = [32, 1], strides = [1, 1]} : vector<32x16xf32> to vector<32x1xf32>
    %412 = vector.extract_strided_slice %406 {offsets = [0, 5], sizes = [32, 1], strides = [1, 1]} : vector<32x16xf32> to vector<32x1xf32>
    %c3_122 = arith.constant 3 : index
    %c0_123 = arith.constant 0 : index
    %c0_124 = arith.constant 0 : index
    %413 = vector.load %arg4[%c3_122, %c0_123, %c0_124] : memref<4x32x16xf32, #tpu.memory_space<vmem>>, vector<1x32x16xf32>
    %414 = vector.shape_cast %413 : vector<1x32x16xf32> to vector<32x16xf32>
    %cst_125 = arith.constant dense<0.000000e+00> : vector<32x128xf32>
    %415 = tpu.matmul %414, %400, %cst_125 {dimension_numbers = #tpu.dot_dimension_numbers<[1], [0], [0], [1], [0, 0, 1, 1], [], []>} : vector<32x16xf32>, vector<16x128xf32>, vector<32x128xf32> -> vector<32x128xf32>
    %416 = vector.broadcast %407 : vector<32x1xf32> to vector<32x128xf32>
    %417 = arith.addf %415, %416 : vector<32x128xf32>
    %cst_126 = arith.constant 0.000000e+00 : f32
    %418 = vector.broadcast %cst_126 : f32 to vector<32x128xf32>
    %419 = arith.cmpf oge, %417, %418 : vector<32x128xf32>
    %420 = vector.broadcast %403 : f32 to vector<32x128xf32>
    %421 = arith.mulf %420, %417 : vector<32x128xf32>
    %422 = arith.select %419, %417, %421 : vector<32x128xi1>, vector<32x128xf32>
    %423 = arith.mulf %422, %422 : vector<32x128xf32>
    %424 = tpu.concatenate %422, %423 in 0 : vector<32x128xf32>, vector<32x128xf32> -> vector<64x128xf32>
    %cst_127 = arith.constant dense<0.000000e+00> : vector<64xf32>
    %425 = vector.multi_reduction <add>, %424, %cst_127 [1] : vector<64x128xf32> to vector<64xf32>
    %426 = vector.shape_cast %425 : vector<64xf32> to vector<64x1xf32>
    %427 = vector.extract_strided_slice %426 {offsets = [0, 0], sizes = [32, 1], strides = [1, 1]} : vector<64x1xf32> to vector<32x1xf32>
    %428 = vector.shape_cast %427 : vector<32x1xf32> to vector<1x32x1xf32>
    %cst_128 = arith.constant dense<0.000000e+00> : vector<1xf32>
    %429 = vector.multi_reduction <add>, %428, %cst_128 [1, 2] : vector<1x32x1xf32> to vector<1xf32>
    %430 = vector.shape_cast %429 : vector<1xf32> to vector<1x1x1xf32>
    %431 = vector.extract %430[0, 0, 0] : f32 from vector<1x1x1xf32>
    %432 = vector.extract_strided_slice %426 {offsets = [32, 0], sizes = [32, 1], strides = [1, 1]} : vector<64x1xf32> to vector<32x1xf32>
    %433 = vector.shape_cast %432 : vector<32x1xf32> to vector<1x32x1xf32>
    %cst_129 = arith.constant dense<0.000000e+00> : vector<1xf32>
    %434 = vector.multi_reduction <add>, %433, %cst_129 [1, 2] : vector<1x32x1xf32> to vector<1xf32>
    %435 = vector.shape_cast %434 : vector<1xf32> to vector<1x1x1xf32>
    %436 = vector.extract %435[0, 0, 0] : f32 from vector<1x1x1xf32>
    %cst_130 = arith.constant 2.44140625E-4 : f32
    %437 = arith.mulf %431, %cst_130 : f32
    %cst_131 = arith.constant 2.44140625E-4 : f32
    %438 = arith.mulf %436, %cst_131 : f32
    %439 = arith.mulf %437, %437 : f32
    %440 = arith.subf %438, %439 : f32
    %cst_132 = arith.constant 0.000000e+00 : f32
    %441 = arith.maximumf %440, %cst_132 : f32
    %cst_133 = arith.constant 9.99999993E-9 : f32
    %442 = arith.addf %441, %cst_133 : f32
    %443 = math.rsqrt %442 : f32
    %444 = vector.broadcast %443 : f32 to vector<32x1xf32>
    %445 = arith.mulf %408, %444 : vector<32x1xf32>
    %446 = vector.broadcast %445 : vector<32x1xf32> to vector<32x128xf32>
    %447 = arith.mulf %422, %446 : vector<32x128xf32>
    %448 = vector.broadcast %437 : f32 to vector<32x1xf32>
    %449 = arith.mulf %448, %445 : vector<32x1xf32>
    %450 = arith.subf %409, %449 : vector<32x1xf32>
    %451 = vector.broadcast %450 : vector<32x1xf32> to vector<32x128xf32>
    %452 = arith.addf %447, %451 : vector<32x128xf32>
    %453 = vector.shape_cast %410 : vector<32x1xf32> to vector<32x1xf32>
    %454 = vector.broadcast %453 : vector<32x1xf32> to vector<32x128xf32>
    %c2_i32_134 = arith.constant 2 : i32
    %455 = tpu.dynamic_rotate %452 by %c2_i32_134 dim 1 : vector<32x128xf32>, i32 -> vector<32x128xf32>
    %c2_i32_135 = arith.constant 2 : i32
    %456 = vector.broadcast %c2_i32_135 : i32 to vector<32x128xi32>
    %457 = arith.cmpi sge, %42, %456 : vector<32x128xi32>
    %cst_136 = arith.constant 0.000000e+00 : f32
    %458 = vector.broadcast %cst_136 : f32 to vector<32x128xf32>
    %459 = arith.select %457, %455, %458 : vector<32x128xi1>, vector<32x128xf32>
    %460 = vector.extract_strided_slice %406 {offsets = [0, 6], sizes = [32, 1], strides = [1, 1]} : vector<32x16xf32> to vector<32x1xf32>
    %461 = vector.broadcast %460 : vector<32x1xf32> to vector<32x128xf32>
    %462 = arith.mulf %461, %459 : vector<32x128xf32>
    %463 = arith.addf %454, %462 : vector<32x128xf32>
    %464 = vector.extract_strided_slice %406 {offsets = [0, 7], sizes = [32, 1], strides = [1, 1]} : vector<32x16xf32> to vector<32x1xf32>
    %465 = vector.broadcast %464 : vector<32x1xf32> to vector<32x128xf32>
    %466 = arith.mulf %465, %452 : vector<32x128xf32>
    %467 = arith.addf %463, %466 : vector<32x128xf32>
    %c126_i32_137 = arith.constant 126 : i32
    %468 = tpu.dynamic_rotate %452 by %c126_i32_137 dim 1 : vector<32x128xf32>, i32 -> vector<32x128xf32>
    %c126_i32_138 = arith.constant 126 : i32
    %469 = vector.broadcast %c126_i32_138 : i32 to vector<32x128xi32>
    %470 = arith.cmpi slt, %42, %469 : vector<32x128xi32>
    %cst_139 = arith.constant 0.000000e+00 : f32
    %471 = vector.broadcast %cst_139 : f32 to vector<32x128xf32>
    %472 = arith.select %470, %468, %471 : vector<32x128xi1>, vector<32x128xf32>
    %473 = vector.extract_strided_slice %406 {offsets = [0, 8], sizes = [32, 1], strides = [1, 1]} : vector<32x16xf32> to vector<32x1xf32>
    %474 = vector.broadcast %473 : vector<32x1xf32> to vector<32x128xf32>
    %475 = arith.mulf %474, %472 : vector<32x128xf32>
    %476 = arith.addf %467, %475 : vector<32x128xf32>
    %cst_140 = arith.constant 0.000000e+00 : f32
    %477 = vector.broadcast %cst_140 : f32 to vector<32x128xf32>
    %478 = arith.cmpf oge, %476, %477 : vector<32x128xf32>
    %479 = vector.broadcast %404 : f32 to vector<32x128xf32>
    %480 = arith.mulf %479, %476 : vector<32x128xf32>
    %481 = arith.select %478, %476, %480 : vector<32x128xi1>, vector<32x128xf32>
    %482 = arith.mulf %481, %481 : vector<32x128xf32>
    %483 = tpu.concatenate %481, %482 in 0 : vector<32x128xf32>, vector<32x128xf32> -> vector<64x128xf32>
    %cst_141 = arith.constant dense<0.000000e+00> : vector<64xf32>
    %484 = vector.multi_reduction <add>, %483, %cst_141 [1] : vector<64x128xf32> to vector<64xf32>
    %485 = vector.shape_cast %484 : vector<64xf32> to vector<64x1xf32>
    %486 = vector.extract_strided_slice %485 {offsets = [0, 0], sizes = [32, 1], strides = [1, 1]} : vector<64x1xf32> to vector<32x1xf32>
    %487 = vector.shape_cast %486 : vector<32x1xf32> to vector<1x32x1xf32>
    %cst_142 = arith.constant dense<0.000000e+00> : vector<1xf32>
    %488 = vector.multi_reduction <add>, %487, %cst_142 [1, 2] : vector<1x32x1xf32> to vector<1xf32>
    %489 = vector.shape_cast %488 : vector<1xf32> to vector<1x1x1xf32>
    %490 = vector.extract %489[0, 0, 0] : f32 from vector<1x1x1xf32>
    %491 = vector.extract_strided_slice %485 {offsets = [32, 0], sizes = [32, 1], strides = [1, 1]} : vector<64x1xf32> to vector<32x1xf32>
    %492 = vector.shape_cast %491 : vector<32x1xf32> to vector<1x32x1xf32>
    %cst_143 = arith.constant dense<0.000000e+00> : vector<1xf32>
    %493 = vector.multi_reduction <add>, %492, %cst_143 [1, 2] : vector<1x32x1xf32> to vector<1xf32>
    %494 = vector.shape_cast %493 : vector<1xf32> to vector<1x1x1xf32>
    %495 = vector.extract %494[0, 0, 0] : f32 from vector<1x1x1xf32>
    %cst_144 = arith.constant 2.44140625E-4 : f32
    %496 = arith.mulf %490, %cst_144 : f32
    %cst_145 = arith.constant 2.44140625E-4 : f32
    %497 = arith.mulf %495, %cst_145 : f32
    %498 = arith.mulf %496, %496 : f32
    %499 = arith.subf %497, %498 : f32
    %cst_146 = arith.constant 0.000000e+00 : f32
    %500 = arith.maximumf %499, %cst_146 : f32
    %cst_147 = arith.constant 9.99999993E-9 : f32
    %501 = arith.addf %500, %cst_147 : f32
    %502 = math.rsqrt %501 : f32
    %503 = vector.broadcast %502 : f32 to vector<32x1xf32>
    %504 = arith.mulf %411, %503 : vector<32x1xf32>
    %505 = vector.broadcast %504 : vector<32x1xf32> to vector<32x128xf32>
    %506 = arith.mulf %481, %505 : vector<32x128xf32>
    %507 = vector.broadcast %496 : f32 to vector<32x1xf32>
    %508 = arith.mulf %507, %504 : vector<32x1xf32>
    %509 = arith.subf %412, %508 : vector<32x1xf32>
    %510 = vector.broadcast %509 : vector<32x1xf32> to vector<32x128xf32>
    %511 = arith.addf %506, %510 : vector<32x128xf32>
    %c3_148 = arith.constant 3 : index
    %c0_149 = arith.constant 0 : index
    %c0_150 = arith.constant 0 : index
    %512 = vector.load %arg6[%c3_148, %c0_149, %c0_150] : memref<4x32x32xf32, #tpu.memory_space<vmem>>, vector<1x32x32xf32>
    %513 = vector.shape_cast %512 : vector<1x32x32xf32> to vector<32x32xf32>
    %cst_151 = arith.constant dense<0.000000e+00> : vector<32x128xf32>
    %514 = tpu.matmul %513, %511, %cst_151 {dimension_numbers = #tpu.dot_dimension_numbers<[1], [0], [0], [1], [0, 0, 1, 1], [], []>} : vector<32x32xf32>, vector<32x128xf32>, vector<32x128xf32> -> vector<32x128xf32>
    %c3_152 = arith.constant 3 : index
    %c0_153 = arith.constant 0 : index
    %c0_154 = arith.constant 0 : index
    %515 = vector.load %arg7[%c3_152, %c0_153, %c0_154] : memref<4x32x1xf32, #tpu.memory_space<vmem>>, vector<1x32x1xf32>
    %516 = vector.shape_cast %515 : vector<1x32x1xf32> to vector<32x1xf32>
    %517 = vector.broadcast %516 : vector<32x1xf32> to vector<32x128xf32>
    %518 = arith.addf %514, %517 : vector<32x128xf32>
    %519 = vector.extract_strided_slice %518 {offsets = [16, 0], sizes = [16, 128], strides = [1, 1]} : vector<32x128xf32> to vector<16x128xf32>
    %520 = arith.addf %402, %519 : vector<16x128xf32>
    %c8 = arith.constant 8 : index
    %521 = memref.load %arg9[%c8] : memref<9xf32, #tpu.memory_space<smem>>
    %cst_155 = arith.constant 0.000000e+00 : f32
    %522 = vector.broadcast %cst_155 : f32 to vector<16x128xf32>
    %523 = arith.cmpf oge, %520, %522 : vector<16x128xf32>
    %524 = vector.broadcast %521 : f32 to vector<16x128xf32>
    %525 = arith.mulf %524, %520 : vector<16x128xf32>
    %526 = arith.select %523, %520, %525 : vector<16x128xi1>, vector<16x128xf32>
    %c0_156 = arith.constant 0 : index
    %c0_157 = arith.constant 0 : index
    %527 = vector.load %arg8[%c0_156, %c0_157] : memref<16x17xf32, #tpu.memory_space<vmem>>, vector<16x17xf32>
    %528 = vector.extract_strided_slice %527 {offsets = [0, 0], sizes = [16, 16], strides = [1, 1]} : vector<16x17xf32> to vector<16x16xf32>
    %cst_158 = arith.constant dense<0.000000e+00> : vector<16x128xf32>
    %529 = tpu.matmul %528, %526, %cst_158 {dimension_numbers = #tpu.dot_dimension_numbers<[1], [0], [0], [1], [0, 0, 1, 1], [], []>} : vector<16x16xf32>, vector<16x128xf32>, vector<16x128xf32> -> vector<16x128xf32>
    %530 = vector.extract_strided_slice %527 {offsets = [0, 16], sizes = [16, 1], strides = [1, 1]} : vector<16x17xf32> to vector<16x1xf32>
    %531 = vector.broadcast %530 : vector<16x1xf32> to vector<16x128xf32>
    %532 = arith.addf %529, %531 : vector<16x128xf32>
    %c0_159 = arith.constant 0 : index
    %c0_160 = arith.constant 0 : index
    %c0_161 = arith.constant 0 : index
    %533 = vector.load %arg10[%c0_159, %c0_160, %c0_161] : memref<1x16x128xf32, #tpu.memory_space<vmem>>, vector<1x16x128xf32>
    %534 = vector.shape_cast %533 : vector<1x16x128xf32> to vector<16x128xf32>
    %535 = vector.shape_cast %532 : vector<16x128xf32> to vector<1x16x128xf32>
    tpu.vector_store %arg10[%c0_159, %c0_160, %c0_161], %535 {strides = array<i32>} : memref<1x16x128xf32, #tpu.memory_space<vmem>>, vector<1x16x128xf32>,
    return
  }
  func.func @transform_0(%arg0: i32) -> (i32, i32, i32) {
    %c0_i32 = arith.constant 0 : i32
    %c0_i32_0 = arith.constant 0 : i32
    %c0_i32_1 = arith.constant 0 : i32
    return %arg0, %c0_i32, %c0_i32_0 : i32, i32, i32
  }
  func.func @transform_1(%arg0: i32) -> (i32, i32) {
    %c0_i32 = arith.constant 0 : i32
    %c0_i32_0 = arith.constant 0 : i32
    %c0_i32_1 = arith.constant 0 : i32
    return %c0_i32, %c0_i32_0 : i32, i32
  }
  func.func @transform_2(%arg0: i32) -> (i32, i32) {
    %c0_i32 = arith.constant 0 : i32
    %c0_i32_0 = arith.constant 0 : i32
    %c0_i32_1 = arith.constant 0 : i32
    return %c0_i32, %c0_i32_0 : i32, i32
  }
  func.func @transform_3(%arg0: i32) -> (i32, i32, i32) {
    %c0_i32 = arith.constant 0 : i32
    %c0_i32_0 = arith.constant 0 : i32
    %c0_i32_1 = arith.constant 0 : i32
    %c0_i32_2 = arith.constant 0 : i32
    return %c0_i32, %c0_i32_0, %c0_i32_1 : i32, i32, i32
  }
  func.func @transform_4(%arg0: i32) -> (i32, i32, i32) {
    %c0_i32 = arith.constant 0 : i32
    %c0_i32_0 = arith.constant 0 : i32
    %c0_i32_1 = arith.constant 0 : i32
    %c0_i32_2 = arith.constant 0 : i32
    return %c0_i32, %c0_i32_0, %c0_i32_1 : i32, i32, i32
  }
  func.func @transform_5(%arg0: i32) -> (i32, i32, i32) {
    %c0_i32 = arith.constant 0 : i32
    %c0_i32_0 = arith.constant 0 : i32
    %c0_i32_1 = arith.constant 0 : i32
    %c0_i32_2 = arith.constant 0 : i32
    return %c0_i32, %c0_i32_0, %c0_i32_1 : i32, i32, i32
  }
  func.func @transform_6(%arg0: i32) -> (i32, i32, i32) {
    %c0_i32 = arith.constant 0 : i32
    %c0_i32_0 = arith.constant 0 : i32
    %c0_i32_1 = arith.constant 0 : i32
    %c0_i32_2 = arith.constant 0 : i32
    return %c0_i32, %c0_i32_0, %c0_i32_1 : i32, i32, i32
  }
  func.func @transform_7(%arg0: i32) -> (i32, i32) {
    %c0_i32 = arith.constant 0 : i32
    %c0_i32_0 = arith.constant 0 : i32
    %c0_i32_1 = arith.constant 0 : i32
    return %c0_i32, %c0_i32_0 : i32, i32
  }
  func.func @transform_8(%arg0: i32) -> i32 {
    %c0_i32 = arith.constant 0 : i32
    %c0_i32_0 = arith.constant 0 : i32
    return %c0_i32 : i32
  }
  func.func @transform_9(%arg0: i32) -> (i32, i32, i32) {
    %c0_i32 = arith.constant 0 : i32
    %c0_i32_0 = arith.constant 0 : i32
    %c0_i32_1 = arith.constant 0 : i32
    return %arg0, %c0_i32, %c0_i32_0 : i32, i32, i32
  }
}

</mosaic_0001>

<llo_original>
// kernel: tpu_custom_call.1
$region0: #{tpu_custom_call.1}
  #allocation0 [shape = 'u32[]', space=smem, size = 0x4, offset = 0x4, fixed_abs, tag = 'smem constant byte address 0x4 - core index']
  #allocation1 [shape = 'u32[144,128]{1,0:T(1,128)}', space=vmem, size = 0x12000, scoped, tag = 'internal scratch']
  %s0 = inlined_call_operand.vmem [shape: f32[2,16,128], index: 0, kind: input, shape index: {}]
  %s1 = inlined_call_operand.vmem [shape: f32[16,2], index: 1, kind: input, shape index: {}]
  %s2 = inlined_call_operand.vmem [shape: f32[16,17], index: 2, kind: input, shape index: {}]
  %s3 = inlined_call_operand.vmem [shape: f32[4,32,16], index: 3, kind: input, shape index: {}]
  %s4 = inlined_call_operand.vmem [shape: f32[4,32,16], index: 4, kind: input, shape index: {}]
  %s5 = inlined_call_operand.vmem [shape: f32[4,32,32], index: 5, kind: input, shape index: {}]
  %s6 = inlined_call_operand.vmem [shape: f32[4,32,1], index: 6, kind: input, shape index: {}]
  %s7 = inlined_call_operand.vmem [shape: f32[16,17], index: 7, kind: input, shape index: {}]
  %s8 = inlined_call_operand.vmem [shape: f32[9], index: 8, kind: input, shape index: {}]
  %s9 = inlined_call_operand.hbm [shape: f32[2,16,128], index: 9, kind: output, shape index: {}]
  %s10 = sld [smem:[#allocation0]]
  $region73: #{tpu_custom_call.1} parent=0
    _
  %s12 = ssub.s32 1, %s10
  %s13 = scalar_select 0, %s12, %s10
  $region1: #{tpu_custom_call.1} parent=0
    #allocation2 [shape = 'u8[512]{0}', space=smem, size = 0x200, scoped, tag = 'input window, operand 8, single buffered']
    #allocation3 [shape = 's32[2]{0}', space=sflag, size = 0x8, scoped, tag = 'scoped memory for tpu_custom_call.1']
    #allocation4 [shape = 's32[2]{0}', space=sflag, size = 0x8, scoped, tag = 'scoped memory for tpu_custom_call.1']
    #allocation5 [shape = 'u8[16384]{0}', space=vmem, size = 0x4000, scoped, tag = 'output window, operand 0']
    %14 = vsyncpa [#allocation4], 0
    %15 = vsyncpa [#allocation3], 0
    %s16 = scalar_lea.sflag [#allocation3], 1
    %17 = vsyncpa %s16, 0
    loop: start=0, step=1, limit=4
    $region2: #{tpu_custom_call.1} parent=1 // loop_pre_header
      _
    $region3: #{tpu_custom_call.1} parent=1 // loop_header
      %s19 = sphi 0, %s23
      %p20 = scmp.ge.s32.totalorder %s19, 4
      %s29 = sphi 0, %s31
      %s32 = sphi 0, %s29
      %s33 = sphi 0, %s32
      %s49 = sphi 0, %s33
      %s53 = sphi 0, %s53
      %s55 = sphi 0, %s53
      %s56 = sphi 0, %s55
      %s70 = sphi 0, %s56
      %s74 = sphi 0, %s74
      %s76 = sphi 0, %s74
      %s77 = sphi 0, %s76
      %s91 = sphi 0, %s77
      %s95 = sphi 0, %s95
      %s97 = sphi 0, %s95
      %s98 = sphi 0, %s97
      %s112 = sphi 0, %s98
      %s116 = sphi 0, %s116
      %s118 = sphi 0, %s116
      %s119 = sphi 0, %s118
      %s133 = sphi 0, %s119
      %s137 = sphi 0, %s137
      %s139 = sphi 0, %s137
      %s140 = sphi 0, %s139
      %s154 = sphi 0, %s140
      %s158 = sphi 0, %s158
      %s160 = sphi 0, %s158
      %s161 = sphi 0, %s160
      %s175 = sphi 0, %s161
      %s179 = sphi 0, %s179
      %s181 = sphi 0, %s179
      %s182 = sphi 0, %s181
      %s196 = sphi 0, %s182
      %s200 = sphi 0, %s200
      %s202 = sphi 0, %s200
      %s203 = sphi 0, %s202
      %s217 = sphi 0, %s203
      %s223 = sphi 0, %s225
      %s226 = sphi 0, %s223
      %s227 = sphi 0, %s226
      %s243 = sphi 0, %s227
    $region4: #{tpu_custom_call.1} parent=1 // loop_header_branch
      %22 = sbr.rel (%p20) target = $region8
    $region5: #{tpu_custom_call.1} parent=1 // loop_body
      %s24 = ssub.s32 %s19, 1
      %s25 = ssub.s32 %s19, 2
      %s26 = sadd.s32 %s19, 1
      %s27 = ssub.s32 %s19, %s26
      %p28 = scmp.eq.s32.totalorder %s27, 0
      %s30 = sadd.s32 %s29, 1
      %s31 = scalar_select %p28, %s29, %s30
      %p34 = pneg %p28
      %p35 = scmp.eq.s32.totalorder %s19, 1
      %p36 = por %p34, %p35
      %p37 = scmp.ne.s32.totalorder %s29, %s32
      %p38 = scmp.eq.s32.totalorder %s19, 0
      %p39 = por %p37, %p38
      %p40 = scmp.ne.s32.totalorder %s29, %s32
      %p41 = scmp.eq.s32.totalorder %s24, 1
      %p42 = por %p40, %p41
      %p43 = scmp.ne.s32.totalorder %s32, %s33
      %p44 = scmp.eq.s32.totalorder %s24, 0
      %p45 = por %p43, %p44
      %p46 = scmp.ne.s32.totalorder %s32, %s33
      %p47 = scmp.eq.s32.totalorder %s25, 1
      %p48 = por %p46, %p47
      %p50 = scmp.ne.s32.totalorder %s33, %s49
      %p51 = scmp.eq.s32.totalorder %s25, 0
      %p52 = por %p50, %p51
      %s54 = sadd.s32 %s53, 1
      %p57 = scmp.eq.s32.totalorder %s19, 1
      %p58 = scmp.ne.s32.totalorder %s53, %s55
      %p59 = scmp.eq.s32.totalorder %s19, 0
      %p60 = por %p58, %p59
      %p61 = scmp.ne.s32.totalorder %s53, %s55
      %p62 = scmp.eq.s32.totalorder %s24, 1
      %p63 = por %p61, %p62
      %p64 = scmp.ne.s32.totalorder %s55, %s56
      %p65 = scmp.eq.s32.totalorder %s24, 0
      %p66 = por %p64, %p65
      %p67 = scmp.ne.s32.totalorder %s55, %s56
      %p68 = scmp.eq.s32.totalorder %s25, 1
      %p69 = por %p67, %p68
      %p71 = scmp.ne.s32.totalorder %s56, %s70
      %p72 = scmp.eq.s32.totalorder %s25, 0
      %p73 = por %p71, %p72
      %s75 = sadd.s32 %s74, 1
      %p78 = scmp.eq.s32.totalorder %s19, 1
      %p79 = scmp.ne.s32.totalorder %s74, %s76
      %p80 = scmp.eq.s32.totalorder %s19, 0
      %p81 = por %p79, %p80
      %p82 = scmp.ne.s32.totalorder %s74, %s76
      %p83 = scmp.eq.s32.totalorder %s24, 1
      %p84 = por %p82, %p83
      %p85 = scmp.ne.s32.totalorder %s76, %s77
      %p86 = scmp.eq.s32.totalorder %s24, 0
      %p87 = por %p85, %p86
      %p88 = scmp.ne.s32.totalorder %s76, %s77
      %p89 = scmp.eq.s32.totalorder %s25, 1
      %p90 = por %p88, %p89
      %p92 = scmp.ne.s32.totalorder %s77, %s91
      %p93 = scmp.eq.s32.totalorder %s25, 0
      %p94 = por %p92, %p93
      %s96 = sadd.s32 %s95, 1
      %p99 = scmp.eq.s32.totalorder %s19, 1
      %p100 = scmp.ne.s32.totalorder %s95, %s97
      %p101 = scmp.eq.s32.totalorder %s19, 0
      %p102 = por %p100, %p101
      %p103 = scmp.ne.s32.totalorder %s95, %s97
      %p104 = scmp.eq.s32.totalorder %s24, 1
      %p105 = por %p103, %p104
      %p106 = scmp.ne.s32.totalorder %s97, %s98
      %p107 = scmp.eq.s32.totalorder %s24, 0
      %p108 = por %p106, %p107
      %p109 = scmp.ne.s32.totalorder %s97, %s98
      %p110 = scmp.eq.s32.totalorder %s25, 1
      %p111 = por %p109, %p110
      %p113 = scmp.ne.s32.totalorder %s98, %s112
      %p114 = scmp.eq.s32.totalorder %s25, 0
      %p115 = por %p113, %p114
      %s117 = sadd.s32 %s116, 1
      %p120 = scmp.eq.s32.totalorder %s19, 1
      %p121 = scmp.ne.s32.totalorder %s116, %s118
      %p122 = scmp.eq.s32.totalorder %s19, 0
      %p123 = por %p121, %p122
      %p124 = scmp.ne.s32.totalorder %s116, %s118
      %p125 = scmp.eq.s32.totalorder %s24, 1
      %p126 = por %p124, %p125
      %p127 = scmp.ne.s32.totalorder %s118, %s119
      %p128 = scmp.eq.s32.totalorder %s24, 0
      %p129 = por %p127, %p128
      %p130 = scmp.ne.s32.totalorder %s118, %s119
      %p131 = scmp.eq.s32.totalorder %s25, 1
      %p132 = por %p130, %p131
      %p134 = scmp.ne.s32.totalorder %s119, %s133
      %p135 = scmp.eq.s32.totalorder %s25, 0
      %p136 = por %p134, %p135
      %s138 = sadd.s32 %s137, 1
      %p141 = scmp.eq.s32.totalorder %s19, 1
      %p142 = scmp.ne.s32.totalorder %s137, %s139
      %p143 = scmp.eq.s32.totalorder %s19, 0
      %p144 = por %p142, %p143
      %p145 = scmp.ne.s32.totalorder %s137, %s139
      %p146 = scmp.eq.s32.totalorder %s24, 1
      %p147 = por %p145, %p146
      %p148 = scmp.ne.s32.totalorder %s139, %s140
      %p149 = scmp.eq.s32.totalorder %s24, 0
      %p150 = por %p148, %p149
      %p151 = scmp.ne.s32.totalorder %s139, %s140
      %p152 = scmp.eq.s32.totalorder %s25, 1
      %p153 = por %p151, %p152
      %p155 = scmp.ne.s32.totalorder %s140, %s154
      %p156 = scmp.eq.s32.totalorder %s25, 0
      %p157 = por %p155, %p156
      %s159 = sadd.s32 %s158, 1
      %p162 = scmp.eq.s32.totalorder %s19, 1
      %p163 = scmp.ne.s32.totalorder %s158, %s160
      %p164 = scmp.eq.s32.totalorder %s19, 0
      %p165 = por %p163, %p164
      %p166 = scmp.ne.s32.totalorder %s158, %s160
      %p167 = scmp.eq.s32.totalorder %s24, 1
      %p168 = por %p166, %p167
      %p169 = scmp.ne.s32.totalorder %s160, %s161
      %p170 = scmp.eq.s32.totalorder %s24, 0
      %p171 = por %p169, %p170
      %p172 = scmp.ne.s32.totalorder %s160, %s161
      %p173 = scmp.eq.s32.totalorder %s25, 1
      %p174 = por %p172, %p173
      %p176 = scmp.ne.s32.totalorder %s161, %s175
      %p177 = scmp.eq.s32.totalorder %s25, 0
      %p178 = por %p176, %p177
      %s180 = sadd.s32 %s179, 1
      %p183 = scmp.eq.s32.totalorder %s19, 1
      %p184 = scmp.ne.s32.totalorder %s179, %s181
      %p185 = scmp.eq.s32.totalorder %s19, 0
      %p186 = por %p184, %p185
      %p187 = scmp.ne.s32.totalorder %s179, %s181
      %p188 = scmp.eq.s32.totalorder %s24, 1
      %p189 = por %p187, %p188
      %p190 = scmp.ne.s32.totalorder %s181, %s182
      %p191 = scmp.eq.s32.totalorder %s24, 0
      %p192 = por %p190, %p191
      %p193 = scmp.ne.s32.totalorder %s181, %s182
      %p194 = scmp.eq.s32.totalorder %s25, 1
      %p195 = por %p193, %p194
      %p197 = scmp.ne.s32.totalorder %s182, %s196
      %p198 = scmp.eq.s32.totalorder %s25, 0
      %p199 = por %p197, %p198
      %s201 = sadd.s32 %s200, 1
      %p204 = scmp.eq.s32.totalorder %s19, 1
      %p205 = scmp.ne.s32.totalorder %s200, %s202
      %p206 = scmp.eq.s32.totalorder %s19, 0
      %p207 = por %p205, %p206
      %p208 = scmp.ne.s32.totalorder %s200, %s202
      %p209 = scmp.eq.s32.totalorder %s24, 1
      %p210 = por %p208, %p209
      %p211 = scmp.ne.s32.totalorder %s202, %s203
      %p212 = scmp.eq.s32.totalorder %s24, 0
      %p213 = por %p211, %p212
      %p214 = scmp.ne.s32.totalorder %s202, %s203
      %p215 = scmp.eq.s32.totalorder %s25, 1
      %p216 = por %p214, %p215
      %p218 = scmp.ne.s32.totalorder %s203, %s217
      %p219 = scmp.eq.s32.totalorder %s25, 0
      %p220 = por %p218, %p219
      %s221 = ssub.s32 %s19, %s26
      %p222 = scmp.eq.s32.totalorder %s221, 0
      %s224 = sadd.s32 %s223, 1
      %s225 = scalar_select %p222, %s223, %s224
      %p228 = pneg %p222
      %p229 = scmp.eq.s32.totalorder %s19, 1
      %p230 = por %p228, %p229
      %p231 = scmp.ne.s32.totalorder %s223, %s226
      %p232 = scmp.eq.s32.totalorder %s19, 0
      %p233 = por %p231, %p232
      %p234 = scmp.ne.s32.totalorder %s223, %s226
      %p235 = scmp.eq.s32.totalorder %s24, 1
      %p236 = por %p234, %p235
      %p237 = scmp.ne.s32.totalorder %s226, %s227
      %p238 = scmp.eq.s32.totalorder %s24, 0
      %p239 = por %p237, %p238
      %p240 = scmp.ne.s32.totalorder %s226, %s227
      %p241 = scmp.eq.s32.totalorder %s25, 1
      %p242 = por %p240, %p241
      %p244 = scmp.ne.s32.totalorder %s227, %s243
      %p245 = scmp.eq.s32.totalorder %s25, 0
      %p246 = por %p244, %p245
      %p247 = scmp.le.s32.totalorder 1, %s19
      %p248 = scmp.lt.s32.totalorder %s19, 3
      %p249 = pnand %p247, %p248
      %p250 = pneg %p249
      // Predicated region
      $region9: #{tpu_custom_call.1} parent=5 // pred_check
        _
      $region10: #{tpu_custom_call.1} parent=5 // pred_check_branch
        %252 = sbr.rel (%p249) target = $region12
      $region11: #{tpu_custom_call.1} parent=5 // pred_region
        %s253 = ssub.s32 %s19, 1
        // Predicated region
        $region13: #{tpu_custom_call.1} parent=11 // pred_check
          %p254 = pneg %p66
        $region14: #{tpu_custom_call.1} parent=11 // pred_check_branch
          %256 = sbr.rel (%p254) target = $region16
        $region15: #{tpu_custom_call.1} parent=11 // pred_region
          _
        $region16: #{tpu_custom_call.1} parent=11 // pred_fallthru
          _
        // Predicated region
        $region17: #{tpu_custom_call.1} parent=11 // pred_check
          %p257 = pneg %p87
        $region18: #{tpu_custom_call.1} parent=11 // pred_check_branch
          %259 = sbr.rel (%p257) target = $region20
        $region19: #{tpu_custom_call.1} parent=11 // pred_region
          _
        $region20: #{tpu_custom_call.1} parent=11 // pred_fallthru
          _
        // Predicated region
        $region21: #{tpu_custom_call.1} parent=11 // pred_check
          %p260 = pneg %p108
        $region22: #{tpu_custom_call.1} parent=11 // pred_check_branch
          %262 = sbr.rel (%p260) target = $region24
        $region23: #{tpu_custom_call.1} parent=11 // pred_region
          _
        $region24: #{tpu_custom_call.1} parent=11 // pred_fallthru
          _
        // Predicated region
        $region25: #{tpu_custom_call.1} parent=11 // pred_check
          %p263 = pneg %p129
        $region26: #{tpu_custom_call.1} parent=11 // pred_check_branch
          %265 = sbr.rel (%p263) target = $region28
        $region27: #{tpu_custom_call.1} parent=11 // pred_region
          _
        $region28: #{tpu_custom_call.1} parent=11 // pred_fallthru
          _
        // Predicated region
        $region29: #{tpu_custom_call.1} parent=11 // pred_check
          %p266 = pneg %p150
        $region30: #{tpu_custom_call.1} parent=11 // pred_check_branch
          %268 = sbr.rel (%p266) target = $region32
        $region31: #{tpu_custom_call.1} parent=11 // pred_region
          _
        $region32: #{tpu_custom_call.1} parent=11 // pred_fallthru
          _
        // Predicated region
        $region33: #{tpu_custom_call.1} parent=11 // pred_check
          %p269 = pneg %p171
        $region34: #{tpu_custom_call.1} parent=11 // pred_check_branch
          %271 = sbr.rel (%p269) target = $region36
        $region35: #{tpu_custom_call.1} parent=11 // pred_region
          _
        $region36: #{tpu_custom_call.1} parent=11 // pred_fallthru
          _
        // Predicated region
        $region37: #{tpu_custom_call.1} parent=11 // pred_check
          %p272 = pneg %p192
        $region38: #{tpu_custom_call.1} parent=11 // pred_check_branch
          %274 = sbr.rel (%p272) target = $region40
        $region39: #{tpu_custom_call.1} parent=11 // pred_region
          _
        $region40: #{tpu_custom_call.1} parent=11 // pred_fallthru
          _
        // Predicated region
        $region41: #{tpu_custom_call.1} parent=11 // pred_check
          %p275 = pneg %p213
        $region42: #{tpu_custom_call.1} parent=11 // pred_check_branch
          %277 = sbr.rel (%p275) target = $region44
        $region43: #{tpu_custom_call.1} parent=11 // pred_region
          %s279 = ssub.s32 16, 16
          %280 = vsyncadd [#allocation4], %s279
          %s282 = sshll.u32 %s8, 4
          %s283 = int_to_ptr.vmem [resolvable:$true] %s282
          %285 = dma.vmem_to_smem %s283, 16, [#allocation2], [#allocation4]
        $region44: #{tpu_custom_call.1} parent=11 // pred_fallthru
          _
      $region12: #{tpu_custom_call.1} parent=5 // pred_fallthru
        _
      %p286 = scmp.lt.s32.totalorder %s19, 2
      // Predicated region
      $region45: #{tpu_custom_call.1} parent=5 // pred_check
        %p287 = pneg %p286
      $region46: #{tpu_custom_call.1} parent=5 // pred_check_branch
        %289 = sbr.rel (%p287) target = $region48
      $region47: #{tpu_custom_call.1} parent=5 // pred_region
        // Predicated region
        $region49: #{tpu_custom_call.1} parent=47 // pred_check
          %p290 = pneg %p39
        $region50: #{tpu_custom_call.1} parent=47 // pred_check_branch
          %292 = sbr.rel (%p290) target = $region52
        $region51: #{tpu_custom_call.1} parent=47 // pred_region
          %p293 = scmp.lt.s32.totalorder %s19, 1
          %s294 = scalar_select %p293, %s19, 1
          %s295 = smul.addr %s294, 2
          %s296 = smul.addr %s295, 8
          %s297 = scalar_lea.vmem %s0, %s296
        $region52: #{tpu_custom_call.1} parent=47 // pred_fallthru
          _
      $region48: #{tpu_custom_call.1} parent=5 // pred_fallthru
        _
      %p298 = scmp.le.s32.totalorder 1, %s19
      %p299 = scmp.lt.s32.totalorder %s19, 3
      %p300 = pnand %p298, %p299
      %p301 = pneg %p300
      // Predicated region
      $region53: #{tpu_custom_call.1} parent=5 // pred_check
        _
      $region54: #{tpu_custom_call.1} parent=5 // pred_check_branch
        %303 = sbr.rel (%p300) target = $region56
      $region55: #{tpu_custom_call.1} parent=5 // pred_region
        %s304 = ssub.s32 %s19, 1
        // Predicated region
        $region57: #{tpu_custom_call.1} parent=55 // pred_check
          %p305 = pneg %p213
        $region58: #{tpu_custom_call.1} parent=55 // pred_check_branch
          %307 = sbr.rel (%p305) target = $region60
        $region59: #{tpu_custom_call.1} parent=55 // pred_region
          %308 = dma.done [#allocation4], 16
        $region60: #{tpu_custom_call.1} parent=55 // pred_fallthru
          _
        %309 = sfence
        %p310 = scmp.lt.s32.totalorder %s24, 1
        %s311 = scalar_select %p310, %s24, 1
        %s312 = smul.addr %s311, 2
        %s313 = smul.addr %s312, 8
        %s314 = scalar_lea.vmem %s0, %s313
        %p315 = pneg %p45
        %p316 = pneg %p42
        %p317 = pneg %p66
        %p318 = pneg %p63
        %p319 = pneg %p87
        %p320 = pneg %p84
        %p321 = pneg %p108
        %p322 = pneg %p105
        %p323 = pneg %p129
        %p324 = pneg %p126
        %p325 = pneg %p150
        %p326 = pneg %p147
        %p327 = pneg %p171
        %p328 = pneg %p168
        %p329 = pneg %p192
        %p330 = pneg %p189
        %p331 = pneg %p213
        %p332 = pneg %p210
        %p333 = pneg %p239
        %p334 = pneg %p236
        %s335 = sand.u32 %s226, 1
        %s336 = scalar_lea.sflag [#allocation3], %s335
        %s337 = sand.u32 %s226, 1
        %s338 = smul.addr %s337, 16
        %s339 = scalar_lea.vmem [#allocation5], %s338
        %p340 = scmp.lt.s32.totalorder %s24, 1
        %s341 = scalar_select %p340, %s24, 1
        %s342 = smul.addr %s341, 2
        %s343 = smul.addr %s342, 8
        %s344 = scalar_lea.vmem %s0, %s343
        %v345 = vld [vmem:[%s344] sm:$0xff]
        %v346 = vld [vmem:[%s344 + $0x8] sm:$0xff]
        %v347 = vmul.f32 %v345, %v345
        %v348 = vmul.f32 %v346, %v346
        %349 = vadd.xlane.f32.xlu0 %v345
        %v350 = vpop.xlane.xlu0 %349
        %351 = vadd.xlane.f32.xlu0 %v346
        %v352 = vpop.xlane.xlu0 %351
        %353 = vadd.xlane.f32.xlu0 %v347
        %v354 = vpop.xlane.xlu0 %353
        %355 = vadd.xlane.f32.xlu0 %v348
        %v356 = vpop.xlane.xlu0 %355
        %vm357 = vcmask 7168
        %v358 = vsel %vm357, %v350, 0.0
        %v359 = vsel %vm357, %v352, 0.0
        %v360 = vadd.f32 %v358, %v359
        %361 = vadd.xlane.f32.xlu0 %v360
        %v362 = vpop.xlane.xlu0 %361
        %v363 = vrot.slane %v362, 4
        %v364 = vadd.f32 %v362, %v363
        %v365 = vrot.slane %v364, 2
        %v366 = vadd.f32 %v364, %v365
        %v367 = vrot.slane %v366, 1
        %v368 = vadd.f32 %v366, %v367
        %s369 = vtos %v368
        %v370 = vsel %vm357, %v354, 0.0
        %v371 = vsel %vm357, %v356, 0.0
        %v372 = vadd.f32 %v370, %v371
        %373 = vadd.xlane.f32.xlu0 %v372
        %v374 = vpop.xlane.xlu0 %373
        %v375 = vrot.slane %v374, 4
        %v376 = vadd.f32 %v374, %v375
        %v377 = vrot.slane %v376, 2
        %v378 = vadd.f32 %v376, %v377
        %v379 = vrot.slane %v378, 1
        %v380 = vadd.f32 %v378, %v379
        %s381 = vtos %v380
        %s382 = smul.f32 %s369, 0.00048828125
        %s383 = smul.f32 %s381, 0.00048828125
        %s384 = smul.f32 %s382, %s382
        %s385 = ssub.f32 %s383, %s384
        %s386 = smax.f32 %s385, 0.0
        %v387 = vld [vmem:[%s1] sm:$0xff]
        %v388 = vld [vmem:[%s1 + $0x8] sm:$0xff]
        %s389 = sadd.f32 %s386, 1e-08
        %v390 = vstv %s389
        %v391 = vrsqrt.pop %v390
        %s392 = vtos %v391
        %v393 = vstv %s392
        %v394 = vmul.f32 %v387, %v393
        %v395 = vmul.f32 %v388, %v393
        %397 = vset.pattern.permute.xlu0 0
        %398 = vperm.xlu0 %397, %v394
        %v399 = vpop.permute.xlu0 %398
        %402 = vset.pattern.permute.xlu0 0
        %403 = vperm.xlu0 %402, %v395
        %v404 = vpop.permute.xlu0 %403
        %v406 = vmul.f32 %v345, %v399
        %v407 = vmul.f32 %v346, %v404
        %v408 = vstv %s382
        %v409 = vmul.f32 %v408, %v394
        %v410 = vmul.f32 %v408, %v395
        %413 = vrot.lane.b32.xlu0 %v409, 1
        %v414 = vpop.permute.xlu0 %413
        %415 = vrot.lane.b32.xlu0 %v410, 1
        %v416 = vpop.permute.xlu0 %415
        %v419 = vsub.f32 %v387, %v414
        %v420 = vsub.f32 %v388, %v416
        %422 = vset.pattern.permute.xlu0 1
        %423 = vperm.xlu0 %422, %v419
        %v424 = vpop.permute.xlu0 %423
        %427 = vset.pattern.permute.xlu0 1
        %428 = vperm.xlu0 %427, %v420
        %v429 = vpop.permute.xlu0 %428
        %v431 = vadd.f32 %v406, %v424
        %v432 = vadd.f32 %v407, %v429
        %v433 = vld [vmem:[%s2] sm:$0xff]
        %v434 = vld [vmem:[%s2 + $0x8] sm:$0xff]
        %436 = vset.pattern.permute.xlu0 16
        %437 = vperm.xlu0 %436, %v433
        %v438 = vpop.permute.xlu0 %437
        %441 = vset.pattern.permute.xlu0 16
        %442 = vperm.xlu0 %441, %v434
        %v443 = vpop.permute.xlu0 %442
        %vm445 = vcmask 130048
        %v446 = vsel %vm445, %v433, 0
        %v448 = vsel %vm445, %v434, 0
        %450 = vmatprep.subr.mxu0 0.0
        %451 = vmatpush1.msra.mxu0 %v431
        %452 = vmatprep.subr.mxu0 0.0
        %453 = vmatpush1.msra.mxu0 %v432
        %454 = vmatprep.subr.mxu0 0.0
        %455 = vmatpush1.msra.mxu0 0.0
        %456 = vmatprep.subr.mxu0 0.0
        %457 = vmatpush1.msra.mxu0 0.0
        %458 = vmatprep.subr.mxu0 0.0
        %459 = vmatpush1.msra.mxu0 0.0
        %460 = vmatprep.subr.mxu0 0.0
        %461 = vmatpush1.msra.mxu0 0.0
        %462 = vmatprep.subr.mxu0 0.0
        %463 = vmatpush1.msra.mxu0 0.0
        %464 = vmatprep.subr.mxu0 0.0
        %465 = vmatpush1.msra.mxu0 0.0
        %466 = vmatprep.subr.mxu0 0.0
        %467 = vmatpush1.msra.mxu0 0.0
        %468 = vmatprep.subr.mxu0 0.0
        %469 = vmatpush1.msra.mxu0 0.0
        %470 = vmatprep.subr.mxu0 0.0
        %471 = vmatpush1.msra.mxu0 0.0
        %472 = vmatprep.subr.mxu0 0.0
        %473 = vmatpush1.msra.mxu0 0.0
        %474 = vmatprep.subr.mxu0 0.0
        %475 = vmatpush1.msra.mxu0 0.0
        %476 = vmatprep.subr.mxu0 0.0
        %477 = vmatpush1.msra.mxu0 0.0
        %478 = vmatprep.subr.mxu0 0.0
        %479 = vmatpush1.msra.mxu0 0.0
        %480 = vmatprep.subr.mxu0 0.0
        %481 = vmatpush1.msra.mxu0 0.0
        %482 = vmatprep.subr.mxu0 0.0
        %483 = vmatpush1.msra.mxu0 0.0
        %484 = vmatprep.subr.mxu0 0.0
        %485 = vmatpush1.msra.mxu0 0.0
        %486 = vmatprep.subr.mxu0 0.0
        %487 = vmatpush1.msra.mxu0 0.0
        %488 = vmatprep.subr.mxu0 0.0
        %489 = vmatpush1.msra.mxu0 0.0
        %490 = vmatprep.subr.mxu0 0.0
        %491 = vmatpush1.msra.mxu0 0.0
        %492 = vmatprep.subr.mxu0 0.0
        %493 = vmatpush1.msra.mxu0 0.0
        %494 = vmatprep.subr.mxu0 0.0
        %495 = vmatpush1.msra.mxu0 0.0
        %496 = vmatprep.subr.mxu0 0.0
        %497 = vmatpush1.msra.mxu0 0.0
        %498 = vmatprep.subr.mxu0 0.0
        %499 = vmatpush1.msra.mxu0 0.0
        %500 = vmatprep.subr.mxu0 0.0
        %501 = vmatpush1.msra.mxu0 0.0
        %502 = vmatprep.subr.mxu0 0.0
        %503 = vmatpush1.msra.mxu0 0.0
        %504 = vmatprep.subr.mxu0 0.0
        %505 = vmatpush1.msra.mxu0 0.0
        %506 = vmatprep.subr.mxu0 0.0
        %507 = vmatpush1.msra.mxu0 0.0
        %508 = vmatprep.subr.mxu0 0.0
        %509 = vmatpush1.msra.mxu0 0.0
        %510 = vmatprep.subr.mxu0 0.0
        %511 = vmatpush1.msra.mxu0 0.0
        %512 = vmatprep.subr.mxu0 0.0
        %513 = vmatpush1.msra.mxu0 0.0
        %514 = vmatprep.mubr.f32.mxu0 0.0
        %515 = vmatmul.mubr.f32.gmra.mrb[0].mxu0 %v446
        %v516 = vpop.f32.mrb[0].mxu0
        %v517 = vadd.f32 %v438, %v516
        %v518 = vpop.f32.mrb[0].mxu0
        %519 = vmatprep.mubr.f32.mxu0 0.0
        %520 = vmatmul.mubr.f32.gmra.mrb[0].mxu0 %v448
        %v521 = vpop.f32.mrb[0].mxu0
        %v522 = vadd.f32 %v443, %v521
        %v523 = vpop.f32.mrb[0].mxu0
        %524 = vdwg.mxu0
        %v525 = vlaneseq
        %v526 = vand.u32 %v525, 127
        %s527 = sld [smem:[#allocation2]]
        %s528 = sld [smem:[#allocation2 + $0x1]]
        %v529 = vld [vmem:[%s4] sm:$0xff]
        %v530 = vld [vmem:[%s4 + $0x8] sm:$0xff]
        %v531 = vld [vmem:[%s4 + $0x10] sm:$0xff]
        %v532 = vld [vmem:[%s4 + $0x18] sm:$0xff]
        %v533 = vld [vmem:[%s3] sm:$0xff]
        %v534 = vld [vmem:[%s3 + $0x8] sm:$0xff]
        %v535 = vld [vmem:[%s3 + $0x10] sm:$0xff]
        %v536 = vld [vmem:[%s3 + $0x18] sm:$0xff]
        %538 = vset.pattern.permute.xlu0 0
        %539 = vperm.xlu0 %538, %v529
        %v540 = vpop.permute.xlu0 %539
        %543 = vset.pattern.permute.xlu0 0
        %544 = vperm.xlu0 %543, %v530
        %v545 = vpop.permute.xlu0 %544
        %548 = vset.pattern.permute.xlu0 0
        %549 = vperm.xlu0 %548, %v531
        %v550 = vpop.permute.xlu0 %549
        %553 = vset.pattern.permute.xlu0 0
        %554 = vperm.xlu0 %553, %v532
        %v555 = vpop.permute.xlu0 %554
        %v558 = vsel %vm445, %v533, 0
        %v561 = vsel %vm445, %v534, 0
        %v564 = vsel %vm445, %v535, 0
        %v567 = vsel %vm445, %v536, 0
        %569 = vmatprep.subr.mxu0 0.0
        %570 = vmatpush1.msra.mxu0 %v517
        %571 = vmatprep.subr.mxu0 0.0
        %572 = vmatpush1.msra.mxu0 %v522
        %573 = vmatprep.subr.mxu0 0.0
        %574 = vmatpush1.msra.mxu0 0.0
        %575 = vmatprep.subr.mxu0 0.0
        %576 = vmatpush1.msra.mxu0 0.0
        %577 = vmatprep.subr.mxu0 0.0
        %578 = vmatpush1.msra.mxu0 0.0
        %579 = vmatprep.subr.mxu0 0.0
        %580 = vmatpush1.msra.mxu0 0.0
        %581 = vmatprep.subr.mxu0 0.0
        %582 = vmatpush1.msra.mxu0 0.0
        %583 = vmatprep.subr.mxu0 0.0
        %584 = vmatpush1.msra.mxu0 0.0
        %585 = vmatprep.subr.mxu0 0.0
        %586 = vmatpush1.msra.mxu0 0.0
        %587 = vmatprep.subr.mxu0 0.0
        %588 = vmatpush1.msra.mxu0 0.0
        %589 = vmatprep.subr.mxu0 0.0
        %590 = vmatpush1.msra.mxu0 0.0
        %591 = vmatprep.subr.mxu0 0.0
        %592 = vmatpush1.msra.mxu0 0.0
        %593 = vmatprep.subr.mxu0 0.0
        %594 = vmatpush1.msra.mxu0 0.0
        %595 = vmatprep.subr.mxu0 0.0
        %596 = vmatpush1.msra.mxu0 0.0
        %597 = vmatprep.subr.mxu0 0.0
        %598 = vmatpush1.msra.mxu0 0.0
        %599 = vmatprep.subr.mxu0 0.0
        %600 = vmatpush1.msra.mxu0 0.0
        %601 = vmatprep.subr.mxu0 0.0
        %602 = vmatpush1.msra.mxu0 0.0
        %603 = vmatprep.subr.mxu0 0.0
        %604 = vmatpush1.msra.mxu0 0.0
        %605 = vmatprep.subr.mxu0 0.0
        %606 = vmatpush1.msra.mxu0 0.0
        %607 = vmatprep.subr.mxu0 0.0
        %608 = vmatpush1.msra.mxu0 0.0
        %609 = vmatprep.subr.mxu0 0.0
        %610 = vmatpush1.msra.mxu0 0.0
        %611 = vmatprep.subr.mxu0 0.0
        %612 = vmatpush1.msra.mxu0 0.0
        %613 = vmatprep.subr.mxu0 0.0
        %614 = vmatpush1.msra.mxu0 0.0
        %615 = vmatprep.subr.mxu0 0.0
        %616 = vmatpush1.msra.mxu0 0.0
        %617 = vmatprep.subr.mxu0 0.0
        %618 = vmatpush1.msra.mxu0 0.0
        %619 = vmatprep.subr.mxu0 0.0
        %620 = vmatpush1.msra.mxu0 0.0
        %621 = vmatprep.subr.mxu0 0.0
        %622 = vmatpush1.msra.mxu0 0.0
        %623 = vmatprep.subr.mxu0 0.0
        %624 = vmatpush1.msra.mxu0 0.0
        %625 = vmatprep.subr.mxu0 0.0
        %626 = vmatpush1.msra.mxu0 0.0
        %627 = vmatprep.subr.mxu0 0.0
        %628 = vmatpush1.msra.mxu0 0.0
        %629 = vmatprep.subr.mxu0 0.0
        %630 = vmatpush1.msra.mxu0 0.0
        %631 = vmatprep.subr.mxu0 0.0
        %632 = vmatpush1.msra.mxu0 0.0
        %633 = vmatprep.mubr.f32.mxu0 0.0
        %634 = vmatmul.mubr.f32.gmra.mrb[0].mxu0 %v558
        %v635 = vpop.f32.mrb[0].mxu0
        %v636 = vadd.f32 %v540, %v635
        %v637 = vpop.f32.mrb[0].mxu0
        %638 = vmatprep.mubr.f32.mxu0 0.0
        %639 = vmatmul.mubr.f32.gmra.mrb[0].mxu0 %v561
        %v640 = vpop.f32.mrb[0].mxu0
        %v641 = vadd.f32 %v545, %v640
        %v642 = vpop.f32.mrb[0].mxu0
        %643 = vmatprep.mubr.f32.mxu0 0.0
        %644 = vmatmul.mubr.f32.gmra.mrb[0].mxu0 %v564
        %v645 = vpop.f32.mrb[0].mxu0
        %v646 = vadd.f32 %v550, %v645
        %v647 = vpop.f32.mrb[0].mxu0
        %648 = vmatprep.mubr.f32.mxu0 0.0
        %649 = vmatmul.mubr.f32.gmra.mrb[0].mxu0 %v567
        %v650 = vpop.f32.mrb[0].mxu0
        %v651 = vadd.f32 %v555, %v650
        %v652 = vpop.f32.mrb[0].mxu0
        %653 = vdwg.mxu0
        %vm654 = vcmp.ge.f32.partialorder %v636, 0.0
        %vm655 = vcmp.ge.f32.partialorder %v641, 0.0
        %vm656 = vcmp.ge.f32.partialorder %v646, 0.0
        %vm657 = vcmp.ge.f32.partialorder %v651, 0.0
        %v658 = vstv %s527
        %v659 = vmul.f32 %v658, %v636
        %v660 = vmul.f32 %v658, %v641
        %v661 = vmul.f32 %v658, %v646
        %v662 = vmul.f32 %v658, %v651
        %v663 = vsel %vm654, %v636, %v659
        %v664 = vsel %vm655, %v641, %v660
        %v665 = vsel %vm656, %v646, %v661
        %v666 = vsel %vm657, %v651, %v662
        %v667 = vmul.f32 %v663, %v663
        %v668 = vmul.f32 %v664, %v664
        %v669 = vmul.f32 %v665, %v665
        %v670 = vmul.f32 %v666, %v666
        %671 = vadd.xlane.f32.xlu0 %v663
        %v672 = vpop.xlane.xlu0 %671
        %673 = vadd.xlane.f32.xlu0 %v664
        %v674 = vpop.xlane.xlu0 %673
        %675 = vadd.xlane.f32.xlu0 %v665
        %v676 = vpop.xlane.xlu0 %675
        %677 = vadd.xlane.f32.xlu0 %v666
        %v678 = vpop.xlane.xlu0 %677
        %679 = vadd.xlane.f32.xlu0 %v667
        %v680 = vpop.xlane.xlu0 %679
        %681 = vadd.xlane.f32.xlu0 %v668
        %v682 = vpop.xlane.xlu0 %681
        %683 = vadd.xlane.f32.xlu0 %v669
        %v684 = vpop.xlane.xlu0 %683
        %685 = vadd.xlane.f32.xlu0 %v670
        %v686 = vpop.xlane.xlu0 %685
        %v687 = vsel %vm357, %v672, 0.0
        %v688 = vsel %vm357, %v674, 0.0
        %v689 = vadd.f32 %v687, %v688
        %v690 = vsel %vm357, %v676, 0.0
        %v691 = vadd.f32 %v689, %v690
        %v692 = vsel %vm357, %v678, 0.0
        %v693 = vadd.f32 %v691, %v692
        %694 = vadd.xlane.f32.xlu0 %v693
        %v695 = vpop.xlane.xlu0 %694
        %v696 = vrot.slane %v695, 4
        %v697 = vadd.f32 %v695, %v696
        %v698 = vrot.slane %v697, 2
        %v699 = vadd.f32 %v697, %v698
        %v700 = vrot.slane %v699, 1
        %v701 = vadd.f32 %v699, %v700
        %s702 = vtos %v701
        %v703 = vsel %vm357, %v680, 0.0
        %v704 = vsel %vm357, %v682, 0.0
        %v705 = vadd.f32 %v703, %v704
        %v706 = vsel %vm357, %v684, 0.0
        %v707 = vadd.f32 %v705, %v706
        %v708 = vsel %vm357, %v686, 0.0
        %v709 = vadd.f32 %v707, %v708
        %710 = vadd.xlane.f32.xlu0 %v709
        %v711 = vpop.xlane.xlu0 %710
        %v712 = vrot.slane %v711, 4
        %v713 = vadd.f32 %v711, %v712
        %v714 = vrot.slane %v713, 2
        %v715 = vadd.f32 %v713, %v714
        %v716 = vrot.slane %v715, 1
        %v717 = vadd.f32 %v715, %v716
        %s718 = vtos %v717
        %s719 = smul.f32 %s702, 0.00024414063
        %s720 = smul.f32 %s718, 0.00024414063
        %s721 = smul.f32 %s719, %s719
        %s722 = ssub.f32 %s720, %s721
        %s723 = smax.f32 %s722, 0.0
        %s724 = sadd.f32 %s723, 1e-08
        %v725 = vstv %s724
        %v726 = vrsqrt.pop %v725
        %s727 = vtos %v726
        %v728 = vstv %s727
        %v729 = vmul.f32 %v529, %v728
        %v730 = vmul.f32 %v530, %v728
        %v731 = vmul.f32 %v531, %v728
        %v732 = vmul.f32 %v532, %v728
        %734 = vset.pattern.permute.xlu0 1
        %735 = vperm.xlu0 %734, %v729
        %v736 = vpop.permute.xlu0 %735
        %739 = vset.pattern.permute.xlu0 1
        %740 = vperm.xlu0 %739, %v730
        %v741 = vpop.permute.xlu0 %740
        %744 = vset.pattern.permute.xlu0 1
        %745 = vperm.xlu0 %744, %v731
        %v746 = vpop.permute.xlu0 %745
        %749 = vset.pattern.permute.xlu0 1
        %750 = vperm.xlu0 %749, %v732
        %v751 = vpop.permute.xlu0 %750
        %v753 = vmul.f32 %v663, %v736
        %v754 = vmul.f32 %v664, %v741
        %v755 = vmul.f32 %v665, %v746
        %v756 = vmul.f32 %v666, %v751
        %v757 = vstv %s719
        %v758 = vmul.f32 %v757, %v729
        %v759 = vmul.f32 %v757, %v730
        %v760 = vmul.f32 %v757, %v731
        %v761 = vmul.f32 %v757, %v732
        %766 = vrot.lane.b32.xlu0 %v758, 1
        %v767 = vpop.permute.xlu0 %766
        %768 = vrot.lane.b32.xlu0 %v759, 1
        %v769 = vpop.permute.xlu0 %768
        %770 = vrot.lane.b32.xlu0 %v760, 1
        %v771 = vpop.permute.xlu0 %770
        %772 = vrot.lane.b32.xlu0 %v761, 1
        %v773 = vpop.permute.xlu0 %772
        %v778 = vsub.f32 %v529, %v767
        %v779 = vsub.f32 %v530, %v769
        %v780 = vsub.f32 %v531, %v771
        %v781 = vsub.f32 %v532, %v773
        %783 = vset.pattern.permute.xlu0 2
        %784 = vperm.xlu0 %783, %v778
        %v785 = vpop.permute.xlu0 %784
        %788 = vset.pattern.permute.xlu0 2
        %789 = vperm.xlu0 %788, %v779
        %v790 = vpop.permute.xlu0 %789
        %793 = vset.pattern.permute.xlu0 2
        %794 = vperm.xlu0 %793, %v780
        %v795 = vpop.permute.xlu0 %794
        %798 = vset.pattern.permute.xlu0 2
        %799 = vperm.xlu0 %798, %v781
        %v800 = vpop.permute.xlu0 %799
        %v802 = vadd.f32 %v753, %v785
        %v803 = vadd.f32 %v754, %v790
        %v804 = vadd.f32 %v755, %v795
        %v805 = vadd.f32 %v756, %v800
        %806 = vset.pattern.permute.xlu0 3
        %807 = vperm.xlu0 %806, %v529
        %v808 = vpop.permute.xlu0 %807
        %810 = vset.pattern.permute.xlu0 3
        %811 = vperm.xlu0 %810, %v530
        %v812 = vpop.permute.xlu0 %811
        %814 = vset.pattern.permute.xlu0 3
        %815 = vperm.xlu0 %814, %v531
        %v816 = vpop.permute.xlu0 %815
        %818 = vset.pattern.permute.xlu0 3
        %819 = vperm.xlu0 %818, %v532
        %v820 = vpop.permute.xlu0 %819
        %822 = vrot.lane.b32.xlu0 %v802, 1
        %v823 = vpop.permute.xlu0 %822
        %824 = vrot.lane.b32.xlu0 %v803, 1
        %v825 = vpop.permute.xlu0 %824
        %826 = vrot.lane.b32.xlu0 %v804, 1
        %v827 = vpop.permute.xlu0 %826
        %828 = vrot.lane.b32.xlu0 %v805, 1
        %v829 = vpop.permute.xlu0 %828
        %vm830 = vcmp.ge.s32.totalorder %v526, 1
        %v831 = vsel %vm830, %v823, 0.0
        %v832 = vsel %vm830, %v825, 0.0
        %v833 = vsel %vm830, %v827, 0.0
        %v834 = vsel %vm830, %v829, 0.0
        %835 = vset.pattern.permute.xlu0 6
        %836 = vperm.xlu0 %835, %v529
        %v837 = vpop.permute.xlu0 %836
        %839 = vset.pattern.permute.xlu0 6
        %840 = vperm.xlu0 %839, %v530
        %v841 = vpop.permute.xlu0 %840
        %843 = vset.pattern.permute.xlu0 6
        %844 = vperm.xlu0 %843, %v531
        %v845 = vpop.permute.xlu0 %844
        %847 = vset.pattern.permute.xlu0 6
        %848 = vperm.xlu0 %847, %v532
        %v849 = vpop.permute.xlu0 %848
        %v851 = vmul.f32 %v837, %v831
        %v852 = vmul.f32 %v841, %v832
        %v853 = vmul.f32 %v845, %v833
        %v854 = vmul.f32 %v849, %v834
        %v855 = vadd.f32 %v808, %v851
        %v856 = vadd.f32 %v812, %v852
        %v857 = vadd.f32 %v816, %v853
        %v858 = vadd.f32 %v820, %v854
        %859 = vset.pattern.permute.xlu0 7
        %860 = vperm.xlu0 %859, %v529
        %v861 = vpop.permute.xlu0 %860
        %863 = vset.pattern.permute.xlu0 7
        %864 = vperm.xlu0 %863, %v530
        %v865 = vpop.permute.xlu0 %864
        %867 = vset.pattern.permute.xlu0 7
        %868 = vperm.xlu0 %867, %v531
        %v869 = vpop.permute.xlu0 %868
        %871 = vset.pattern.permute.xlu0 7
        %872 = vperm.xlu0 %871, %v532
        %v873 = vpop.permute.xlu0 %872
        %v875 = vmul.f32 %v861, %v802
        %v876 = vmul.f32 %v865, %v803
        %v877 = vmul.f32 %v869, %v804
        %v878 = vmul.f32 %v873, %v805
        %v879 = vadd.f32 %v855, %v875
        %v880 = vadd.f32 %v856, %v876
        %v881 = vadd.f32 %v857, %v877
        %v882 = vadd.f32 %v858, %v878
        %883 = vrot.lane.b32.xlu0 %v802, 127
        %v884 = vpop.permute.xlu0 %883
        %885 = vrot.lane.b32.xlu0 %v803, 127
        %v886 = vpop.permute.xlu0 %885
        %887 = vrot.lane.b32.xlu0 %v804, 127
        %v888 = vpop.permute.xlu0 %887
        %889 = vrot.lane.b32.xlu0 %v805, 127
        %v890 = vpop.permute.xlu0 %889
        %vm891 = vcmp.lt.s32.totalorder %v526, 127
        %v892 = vsel %vm891, %v884, 0.0
        %v893 = vsel %vm891, %v886, 0.0
        %v894 = vsel %vm891, %v888, 0.0
        %v895 = vsel %vm891, %v890, 0.0
        %896 = vset.pattern.permute.xlu0 8
        %897 = vperm.xlu0 %896, %v529
        %v898 = vpop.permute.xlu0 %897
        %900 = vset.pattern.permute.xlu0 8
        %901 = vperm.xlu0 %900, %v530
        %v902 = vpop.permute.xlu0 %901
        %904 = vset.pattern.permute.xlu0 8
        %905 = vperm.xlu0 %904, %v531
        %v906 = vpop.permute.xlu0 %905
        %908 = vset.pattern.permute.xlu0 8
        %909 = vperm.xlu0 %908, %v532
        %v910 = vpop.permute.xlu0 %909
        %v912 = vmul.f32 %v898, %v892
        %v913 = vmul.f32 %v902, %v893
        %v914 = vmul.f32 %v906, %v894
        %v915 = vmul.f32 %v910, %v895
        %v916 = vadd.f32 %v879, %v912
        %v917 = vadd.f32 %v880, %v913
        %v918 = vadd.f32 %v881, %v914
        %v919 = vadd.f32 %v882, %v915
        %vm920 = vcmp.ge.f32.partialorder %v916, 0.0
        %vm921 = vcmp.ge.f32.partialorder %v917, 0.0
        %vm922 = vcmp.ge.f32.partialorder %v918, 0.0
        %vm923 = vcmp.ge.f32.partialorder %v919, 0.0
        %v924 = vstv %s528
        %v925 = vmul.f32 %v924, %v916
        %v926 = vmul.f32 %v924, %v917
        %v927 = vmul.f32 %v924, %v918
        %v928 = vmul.f32 %v924, %v919
        %v929 = vsel %vm920, %v916, %v925
        %v930 = vsel %vm921, %v917, %v926
        %v931 = vsel %vm922, %v918, %v927
        %v932 = vsel %vm923, %v919, %v928
        %v933 = vmul.f32 %v929, %v929
        %v934 = vmul.f32 %v930, %v930
        %v935 = vmul.f32 %v931, %v931
        %v936 = vmul.f32 %v932, %v932
        %937 = vadd.xlane.f32.xlu0 %v929
        %v938 = vpop.xlane.xlu0 %937
        %939 = vadd.xlane.f32.xlu0 %v930
        %v940 = vpop.xlane.xlu0 %939
        %941 = vadd.xlane.f32.xlu0 %v931
        %v942 = vpop.xlane.xlu0 %941
        %943 = vadd.xlane.f32.xlu0 %v932
        %v944 = vpop.xlane.xlu0 %943
        %945 = vadd.xlane.f32.xlu0 %v933
        %v946 = vpop.xlane.xlu0 %945
        %947 = vadd.xlane.f32.xlu0 %v934
        %v948 = vpop.xlane.xlu0 %947
        %949 = vadd.xlane.f32.xlu0 %v935
        %v950 = vpop.xlane.xlu0 %949
        %951 = vadd.xlane.f32.xlu0 %v936
        %v952 = vpop.xlane.xlu0 %951
        %v953 = vsel %vm357, %v938, 0.0
        %v954 = vsel %vm357, %v940, 0.0
        %v955 = vadd.f32 %v953, %v954
        %v956 = vsel %vm357, %v942, 0.0
        %v957 = vadd.f32 %v955, %v956
        %v958 = vsel %vm357, %v944, 0.0
        %v959 = vadd.f32 %v957, %v958
        %960 = vadd.xlane.f32.xlu0 %v959
        %v961 = vpop.xlane.xlu0 %960
        %v962 = vrot.slane %v961, 4
        %v963 = vadd.f32 %v961, %v962
        %v964 = vrot.slane %v963, 2
        %v965 = vadd.f32 %v963, %v964
        %v966 = vrot.slane %v965, 1
        %v967 = vadd.f32 %v965, %v966
        %s968 = vtos %v967
        %v969 = vsel %vm357, %v946, 0.0
        %v970 = vsel %vm357, %v948, 0.0
        %v971 = vadd.f32 %v969, %v970
        %v972 = vsel %vm357, %v950, 0.0
        %v973 = vadd.f32 %v971, %v972
        %v974 = vsel %vm357, %v952, 0.0
        %v975 = vadd.f32 %v973, %v974
        %976 = vadd.xlane.f32.xlu0 %v975
        %v977 = vpop.xlane.xlu0 %976
        %v978 = vrot.slane %v977, 4
        %v979 = vadd.f32 %v977, %v978
        %v980 = vrot.slane %v979, 2
        %v981 = vadd.f32 %v979, %v980
        %v982 = vrot.slane %v981, 1
        %v983 = vadd.f32 %v981, %v982
        %s984 = vtos %v983
        %s985 = smul.f32 %s968, 0.00024414063
        %s986 = smul.f32 %s984, 0.00024414063
        %s987 = smul.f32 %s985, %s985
        %s988 = ssub.f32 %s986, %s987
        %s989 = smax.f32 %s988, 0.0
        %s990 = sadd.f32 %s989, 1e-08
        %v991 = vstv %s990
        %v992 = vrsqrt.pop %v991
        %s993 = vtos %v992
        %v994 = vstv %s993
        %v995 = vmul.f32 %v529, %v994
        %v996 = vmul.f32 %v530, %v994
        %v997 = vmul.f32 %v531, %v994
        %v998 = vmul.f32 %v532, %v994
        %1000 = vset.pattern.permute.xlu0 4
        %1001 = vperm.xlu0 %1000, %v995
        %v1002 = vpop.permute.xlu0 %1001
        %1005 = vset.pattern.permute.xlu0 4
        %1006 = vperm.xlu0 %1005, %v996
        %v1007 = vpop.permute.xlu0 %1006
        %1010 = vset.pattern.permute.xlu0 4
        %1011 = vperm.xlu0 %1010, %v997
        %v1012 = vpop.permute.xlu0 %1011
        %1015 = vset.pattern.permute.xlu0 4
        %1016 = vperm.xlu0 %1015, %v998
        %v1017 = vpop.permute.xlu0 %1016
        %v1019 = vmul.f32 %v929, %v1002
        %v1020 = vmul.f32 %v930, %v1007
        %v1021 = vmul.f32 %v931, %v1012
        %v1022 = vmul.f32 %v932, %v1017
        %v1023 = vstv %s985
        %v1024 = vmul.f32 %v1023, %v995
        %v1025 = vmul.f32 %v1023, %v996
        %v1026 = vmul.f32 %v1023, %v997
        %v1027 = vmul.f32 %v1023, %v998
        %1032 = vrot.lane.b32.xlu0 %v1024, 1
        %v1033 = vpop.permute.xlu0 %1032
        %1034 = vrot.lane.b32.xlu0 %v1025, 1
        %v1035 = vpop.permute.xlu0 %1034
        %1036 = vrot.lane.b32.xlu0 %v1026, 1
        %v1037 = vpop.permute.xlu0 %1036
        %1038 = vrot.lane.b32.xlu0 %v1027, 1
        %v1039 = vpop.permute.xlu0 %1038
        %v1044 = vsub.f32 %v529, %v1033
        %v1045 = vsub.f32 %v530, %v1035
        %v1046 = vsub.f32 %v531, %v1037
        %v1047 = vsub.f32 %v532, %v1039
        %1049 = vset.pattern.permute.xlu0 5
        %1050 = vperm.xlu0 %1049, %v1044
        %v1051 = vpop.permute.xlu0 %1050
        %1054 = vset.pattern.permute.xlu0 5
        %1055 = vperm.xlu0 %1054, %v1045
        %v1056 = vpop.permute.xlu0 %1055
        %1059 = vset.pattern.permute.xlu0 5
        %1060 = vperm.xlu0 %1059, %v1046
        %v1061 = vpop.permute.xlu0 %1060
        %1064 = vset.pattern.permute.xlu0 5
        %1065 = vperm.xlu0 %1064, %v1047
        %v1066 = vpop.permute.xlu0 %1065
        %v1068 = vadd.f32 %v1019, %v1051
        %v1069 = vadd.f32 %v1020, %v1056
        %v1070 = vadd.f32 %v1021, %v1061
        %v1071 = vadd.f32 %v1022, %v1066
        %v1072 = vld [vmem:[%s5] sm:$0xff]
        %v1073 = vld [vmem:[%s5 + $0x8] sm:$0xff]
        %v1074 = vld [vmem:[%s5 + $0x10] sm:$0xff]
        %v1075 = vld [vmem:[%s5 + $0x18] sm:$0xff]
        %v1076 = vld [vmem:[%s6] sm:$0xff]
        %v1077 = vld [vmem:[%s6 + $0x8] sm:$0xff]
        %v1078 = vld [vmem:[%s6 + $0x10] sm:$0xff]
        %v1079 = vld [vmem:[%s6 + $0x18] sm:$0xff]
        %1081 = vset.pattern.permute.xlu0 0
        %1082 = vperm.xlu0 %1081, %v1076
        %v1083 = vpop.permute.xlu0 %1082
        %1086 = vset.pattern.permute.xlu0 0
        %1087 = vperm.xlu0 %1086, %v1077
        %v1088 = vpop.permute.xlu0 %1087
        %1091 = vset.pattern.permute.xlu0 0
        %1092 = vperm.xlu0 %1091, %v1078
        %v1093 = vpop.permute.xlu0 %1092
        %1096 = vset.pattern.permute.xlu0 0
        %1097 = vperm.xlu0 %1096, %v1079
        %v1098 = vpop.permute.xlu0 %1097
        %vm1100 = vcmask 261120
        %v1102 = vsel %vm1100, %v1072, 0
        %v1105 = vsel %vm1100, %v1073, 0
        %v1108 = vsel %vm1100, %v1074, 0
        %v1111 = vsel %vm1100, %v1075, 0
        %1113 = vmatprep.subr.mxu0 0.0
        %1114 = vmatpush1.msra.mxu0 %v1068
        %1115 = vmatprep.subr.mxu0 0.0
        %1116 = vmatpush1.msra.mxu0 %v1069
        %1117 = vmatprep.subr.mxu0 0.0
        %1118 = vmatpush1.msra.mxu0 %v1070
        %1119 = vmatprep.subr.mxu0 0.0
        %1120 = vmatpush1.msra.mxu0 %v1071
        %1121 = vmatprep.subr.mxu0 0.0
        %1122 = vmatpush1.msra.mxu0 0.0
        %1123 = vmatprep.subr.mxu0 0.0
        %1124 = vmatpush1.msra.mxu0 0.0
        %1125 = vmatprep.subr.mxu0 0.0
        %1126 = vmatpush1.msra.mxu0 0.0
        %1127 = vmatprep.subr.mxu0 0.0
        %1128 = vmatpush1.msra.mxu0 0.0
        %1129 = vmatprep.subr.mxu0 0.0
        %1130 = vmatpush1.msra.mxu0 0.0
        %1131 = vmatprep.subr.mxu0 0.0
        %1132 = vmatpush1.msra.mxu0 0.0
        %1133 = vmatprep.subr.mxu0 0.0
        %1134 = vmatpush1.msra.mxu0 0.0
        %1135 = vmatprep.subr.mxu0 0.0
        %1136 = vmatpush1.msra.mxu0 0.0
        %1137 = vmatprep.subr.mxu0 0.0
        %1138 = vmatpush1.msra.mxu0 0.0
        %1139 = vmatprep.subr.mxu0 0.0
        %1140 = vmatpush1.msra.mxu0 0.0
        %1141 = vmatprep.subr.mxu0 0.0
        %1142 = vmatpush1.msra.mxu0 0.0
        %1143 = vmatprep.subr.mxu0 0.0
        %1144 = vmatpush1.msra.mxu0 0.0
        %1145 = vmatprep.subr.mxu0 0.0
        %1146 = vmatpush1.msra.mxu0 0.0
        %1147 = vmatprep.subr.mxu0 0.0
        %1148 = vmatpush1.msra.mxu0 0.0
        %1149 = vmatprep.subr.mxu0 0.0
        %1150 = vmatpush1.msra.mxu0 0.0
        %1151 = vmatprep.subr.mxu0 0.0
        %1152 = vmatpush1.msra.mxu0 0.0
        %1153 = vmatprep.subr.mxu0 0.0
        %1154 = vmatpush1.msra.mxu0 0.0
        %1155 = vmatprep.subr.mxu0 0.0
        %1156 = vmatpush1.msra.mxu0 0.0
        %1157 = vmatprep.subr.mxu0 0.0
        %1158 = vmatpush1.msra.mxu0 0.0
        %1159 = vmatprep.subr.mxu0 0.0
        %1160 = vmatpush1.msra.mxu0 0.0
        %1161 = vmatprep.subr.mxu0 0.0
        %1162 = vmatpush1.msra.mxu0 0.0
        %1163 = vmatprep.subr.mxu0 0.0
        %1164 = vmatpush1.msra.mxu0 0.0
        %1165 = vmatprep.subr.mxu0 0.0
        %1166 = vmatpush1.msra.mxu0 0.0
        %1167 = vmatprep.subr.mxu0 0.0
        %1168 = vmatpush1.msra.mxu0 0.0
        %1169 = vmatprep.subr.mxu0 0.0
        %1170 = vmatpush1.msra.mxu0 0.0
        %1171 = vmatprep.subr.mxu0 0.0
        %1172 = vmatpush1.msra.mxu0 0.0
        %1173 = vmatprep.subr.mxu0 0.0
        %1174 = vmatpush1.msra.mxu0 0.0
        %1175 = vmatprep.subr.mxu0 0.0
        %1176 = vmatpush1.msra.mxu0 0.0
        %1177 = vmatprep.mubr.f32.mxu0 0.0
        %1178 = vmatmul.mubr.f32.gmra.mrb[0].mxu0 %v1102
        %v1179 = vpop.f32.mrb[0].mxu0
        %v1180 = vadd.f32 %v1083, %v1179
        %v1181 = vpop.f32.mrb[0].mxu0
        %1182 = vmatprep.mubr.f32.mxu0 0.0
        %1183 = vmatmul.mubr.f32.gmra.mrb[0].mxu0 %v1105
        %v1184 = vpop.f32.mrb[0].mxu0
        %v1185 = vadd.f32 %v1088, %v1184
        %v1186 = vpop.f32.mrb[0].mxu0
        %1187 = vmatprep.mubr.f32.mxu0 0.0
        %1188 = vmatmul.mubr.f32.gmra.mrb[0].mxu0 %v1108
        %v1189 = vpop.f32.mrb[0].mxu0
        %v1190 = vadd.f32 %v1093, %v1189
        %v1191 = vpop.f32.mrb[0].mxu0
        %1192 = vmatprep.mubr.f32.mxu0 0.0
        %1193 = vmatmul.mubr.f32.gmra.mrb[0].mxu0 %v1111
        %v1194 = vpop.f32.mrb[0].mxu0
        %v1195 = vadd.f32 %v1098, %v1194
        %v1196 = vpop.f32.mrb[0].mxu0
        %1197 = vdwg.mxu0
        %v1198 = vadd.f32 %v517, %v1180
        %v1199 = vadd.f32 %v522, %v1185
        %v1200 = vadd.f32 %v1190, 0.0
        %v1201 = vadd.f32 %v1195, 0.0
        %s1202 = sld [smem:[#allocation2 + $0x2]]
        %s1203 = sld [smem:[#allocation2 + $0x3]]
        %s1204 = scalar_lea.vmem %s4, 32
        %v1205 = vld [vmem:[%s1204] sm:$0xff]
        %v1206 = vld [vmem:[%s1204 + $0x8] sm:$0xff]
        %v1207 = vld [vmem:[%s1204 + $0x10] sm:$0xff]
        %v1208 = vld [vmem:[%s1204 + $0x18] sm:$0xff]
        %s1209 = scalar_lea.vmem %s3, 32
        %v1210 = vld [vmem:[%s1209] sm:$0xff]
        %v1211 = vld [vmem:[%s1209 + $0x8] sm:$0xff]
        %v1212 = vld [vmem:[%s1209 + $0x10] sm:$0xff]
        %v1213 = vld [vmem:[%s1209 + $0x18] sm:$0xff]
        %1215 = vset.pattern.permute.xlu0 0
        %1216 = vperm.xlu0 %1215, %v1205
        %v1217 = vpop.permute.xlu0 %1216
        %1220 = vset.pattern.permute.xlu0 0
        %1221 = vperm.xlu0 %1220, %v1206
        %v1222 = vpop.permute.xlu0 %1221
        %1225 = vset.pattern.permute.xlu0 0
        %1226 = vperm.xlu0 %1225, %v1207
        %v1227 = vpop.permute.xlu0 %1226
        %1230 = vset.pattern.permute.xlu0 0
        %1231 = vperm.xlu0 %1230, %v1208
        %v1232 = vpop.permute.xlu0 %1231
        %v1235 = vsel %vm445, %v1210, 0
        %v1238 = vsel %vm445, %v1211, 0
        %v1241 = vsel %vm445, %v1212, 0
        %v1244 = vsel %vm445, %v1213, 0
        %1246 = vmatprep.subr.mxu0 0.0
        %1247 = vmatpush1.msra.mxu0 %v1198
        %1248 = vmatprep.subr.mxu0 0.0
        %1249 = vmatpush1.msra.mxu0 %v1199
        %1250 = vmatprep.subr.mxu0 0.0
        %1251 = vmatpush1.msra.mxu0 0.0
        %1252 = vmatprep.subr.mxu0 0.0
        %1253 = vmatpush1.msra.mxu0 0.0
        %1254 = vmatprep.subr.mxu0 0.0
        %1255 = vmatpush1.msra.mxu0 0.0
        %1256 = vmatprep.subr.mxu0 0.0
        %1257 = vmatpush1.msra.mxu0 0.0
        %1258 = vmatprep.subr.mxu0 0.0
        %1259 = vmatpush1.msra.mxu0 0.0
        %1260 = vmatprep.subr.mxu0 0.0
        %1261 = vmatpush1.msra.mxu0 0.0
        %1262 = vmatprep.subr.mxu0 0.0
        %1263 = vmatpush1.msra.mxu0 0.0
        %1264 = vmatprep.subr.mxu0 0.0
        %1265 = vmatpush1.msra.mxu0 0.0
        %1266 = vmatprep.subr.mxu0 0.0
        %1267 = vmatpush1.msra.mxu0 0.0
        %1268 = vmatprep.subr.mxu0 0.0
        %1269 = vmatpush1.msra.mxu0 0.0
        %1270 = vmatprep.subr.mxu0 0.0
        %1271 = vmatpush1.msra.mxu0 0.0
        %1272 = vmatprep.subr.mxu0 0.0
        %1273 = vmatpush1.msra.mxu0 0.0
        %1274 = vmatprep.subr.mxu0 0.0
        %1275 = vmatpush1.msra.mxu0 0.0
        %1276 = vmatprep.subr.mxu0 0.0
        %1277 = vmatpush1.msra.mxu0 0.0
        %1278 = vmatprep.subr.mxu0 0.0
        %1279 = vmatpush1.msra.mxu0 0.0
        %1280 = vmatprep.subr.mxu0 0.0
        %1281 = vmatpush1.msra.mxu0 0.0
        %1282 = vmatprep.subr.mxu0 0.0
        %1283 = vmatpush1.msra.mxu0 0.0
        %1284 = vmatprep.subr.mxu0 0.0
        %1285 = vmatpush1.msra.mxu0 0.0
        %1286 = vmatprep.subr.mxu0 0.0
        %1287 = vmatpush1.msra.mxu0 0.0
        %1288 = vmatprep.subr.mxu0 0.0
        %1289 = vmatpush1.msra.mxu0 0.0
        %1290 = vmatprep.subr.mxu0 0.0
        %1291 = vmatpush1.msra.mxu0 0.0
        %1292 = vmatprep.subr.mxu0 0.0
        %1293 = vmatpush1.msra.mxu0 0.0
        %1294 = vmatprep.subr.mxu0 0.0
        %1295 = vmatpush1.msra.mxu0 0.0
        %1296 = vmatprep.subr.mxu0 0.0
        %1297 = vmatpush1.msra.mxu0 0.0
        %1298 = vmatprep.subr.mxu0 0.0
        %1299 = vmatpush1.msra.mxu0 0.0
        %1300 = vmatprep.subr.mxu0 0.0
        %1301 = vmatpush1.msra.mxu0 0.0
        %1302 = vmatprep.subr.mxu0 0.0
        %1303 = vmatpush1.msra.mxu0 0.0
        %1304 = vmatprep.subr.mxu0 0.0
        %1305 = vmatpush1.msra.mxu0 0.0
        %1306 = vmatprep.subr.mxu0 0.0
        %1307 = vmatpush1.msra.mxu0 0.0
        %1308 = vmatprep.subr.mxu0 0.0
        %1309 = vmatpush1.msra.mxu0 0.0
        %1310 = vmatprep.mubr.f32.mxu0 0.0
        %1311 = vmatmul.mubr.f32.gmra.mrb[0].mxu0 %v1235
        %v1312 = vpop.f32.mrb[0].mxu0
        %v1313 = vadd.f32 %v1217, %v1312
        %v1314 = vpop.f32.mrb[0].mxu0
        %1315 = vmatprep.mubr.f32.mxu0 0.0
        %1316 = vmatmul.mubr.f32.gmra.mrb[0].mxu0 %v1238
        %v1317 = vpop.f32.mrb[0].mxu0
        %v1318 = vadd.f32 %v1222, %v1317
        %v1319 = vpop.f32.mrb[0].mxu0
        %1320 = vmatprep.mubr.f32.mxu0 0.0
        %1321 = vmatmul.mubr.f32.gmra.mrb[0].mxu0 %v1241
        %v1322 = vpop.f32.mrb[0].mxu0
        %v1323 = vadd.f32 %v1227, %v1322
        %v1324 = vpop.f32.mrb[0].mxu0
        %1325 = vmatprep.mubr.f32.mxu0 0.0
        %1326 = vmatmul.mubr.f32.gmra.mrb[0].mxu0 %v1244
        %v1327 = vpop.f32.mrb[0].mxu0
        %v1328 = vadd.f32 %v1232, %v1327
        %v1329 = vpop.f32.mrb[0].mxu0
        %1330 = vdwg.mxu0
        %vm1331 = vcmp.ge.f32.partialorder %v1313, 0.0
        %vm1332 = vcmp.ge.f32.partialorder %v1318, 0.0
        %vm1333 = vcmp.ge.f32.partialorder %v1323, 0.0
        %vm1334 = vcmp.ge.f32.partialorder %v1328, 0.0
        %v1335 = vstv %s1202
        %v1336 = vmul.f32 %v1335, %v1313
        %v1337 = vmul.f32 %v1335, %v1318
        %v1338 = vmul.f32 %v1335, %v1323
        %v1339 = vmul.f32 %v1335, %v1328
        %v1340 = vsel %vm1331, %v1313, %v1336
        %v1341 = vsel %vm1332, %v1318, %v1337
        %v1342 = vsel %vm1333, %v1323, %v1338
        %v1343 = vsel %vm1334, %v1328, %v1339
        %v1344 = vmul.f32 %v1340, %v1340
        %v1345 = vmul.f32 %v1341, %v1341
        %v1346 = vmul.f32 %v1342, %v1342
        %v1347 = vmul.f32 %v1343, %v1343
        %1348 = vadd.xlane.f32.xlu0 %v1340
        %v1349 = vpop.xlane.xlu0 %1348
        %1350 = vadd.xlane.f32.xlu0 %v1341
        %v1351 = vpop.xlane.xlu0 %1350
        %1352 = vadd.xlane.f32.xlu0 %v1342
        %v1353 = vpop.xlane.xlu0 %1352
        %1354 = vadd.xlane.f32.xlu0 %v1343
        %v1355 = vpop.xlane.xlu0 %1354
        %1356 = vadd.xlane.f32.xlu0 %v1344
        %v1357 = vpop.xlane.xlu0 %1356
        %1358 = vadd.xlane.f32.xlu0 %v1345
        %v1359 = vpop.xlane.xlu0 %1358
        %1360 = vadd.xlane.f32.xlu0 %v1346
        %v1361 = vpop.xlane.xlu0 %1360
        %1362 = vadd.xlane.f32.xlu0 %v1347
        %v1363 = vpop.xlane.xlu0 %1362
        %v1364 = vsel %vm357, %v1349, 0.0
        %v1365 = vsel %vm357, %v1351, 0.0
        %v1366 = vadd.f32 %v1364, %v1365
        %v1367 = vsel %vm357, %v1353, 0.0
        %v1368 = vadd.f32 %v1366, %v1367
        %v1369 = vsel %vm357, %v1355, 0.0
        %v1370 = vadd.f32 %v1368, %v1369
        %1371 = vadd.xlane.f32.xlu0 %v1370
        %v1372 = vpop.xlane.xlu0 %1371
        %v1373 = vrot.slane %v1372, 4
        %v1374 = vadd.f32 %v1372, %v1373
        %v1375 = vrot.slane %v1374, 2
        %v1376 = vadd.f32 %v1374, %v1375
        %v1377 = vrot.slane %v1376, 1
        %v1378 = vadd.f32 %v1376, %v1377
        %s1379 = vtos %v1378
        %v1380 = vsel %vm357, %v1357, 0.0
        %v1381 = vsel %vm357, %v1359, 0.0
        %v1382 = vadd.f32 %v1380, %v1381
        %v1383 = vsel %vm357, %v1361, 0.0
        %v1384 = vadd.f32 %v1382, %v1383
        %v1385 = vsel %vm357, %v1363, 0.0
        %v1386 = vadd.f32 %v1384, %v1385
        %1387 = vadd.xlane.f32.xlu0 %v1386
        %v1388 = vpop.xlane.xlu0 %1387
        %v1389 = vrot.slane %v1388, 4
        %v1390 = vadd.f32 %v1388, %v1389
        %v1391 = vrot.slane %v1390, 2
        %v1392 = vadd.f32 %v1390, %v1391
        %v1393 = vrot.slane %v1392, 1
        %v1394 = vadd.f32 %v1392, %v1393
        %s1395 = vtos %v1394
        %s1396 = smul.f32 %s1379, 0.00024414063
        %s1397 = smul.f32 %s1395, 0.00024414063
        %s1398 = smul.f32 %s1396, %s1396
        %s1399 = ssub.f32 %s1397, %s1398
        %s1400 = smax.f32 %s1399, 0.0
        %s1401 = sadd.f32 %s1400, 1e-08
        %v1402 = vstv %s1401
        %v1403 = vrsqrt.pop %v1402
        %s1404 = vtos %v1403
        %v1405 = vstv %s1404
        %v1406 = vmul.f32 %v1205, %v1405
        %v1407 = vmul.f32 %v1206, %v1405
        %v1408 = vmul.f32 %v1207, %v1405
        %v1409 = vmul.f32 %v1208, %v1405
        %1411 = vset.pattern.permute.xlu0 1
        %1412 = vperm.xlu0 %1411, %v1406
        %v1413 = vpop.permute.xlu0 %1412
        %1416 = vset.pattern.permute.xlu0 1
        %1417 = vperm.xlu0 %1416, %v1407
        %v1418 = vpop.permute.xlu0 %1417
        %1421 = vset.pattern.permute.xlu0 1
        %1422 = vperm.xlu0 %1421, %v1408
        %v1423 = vpop.permute.xlu0 %1422
        %1426 = vset.pattern.permute.xlu0 1
        %1427 = vperm.xlu0 %1426, %v1409
        %v1428 = vpop.permute.xlu0 %1427
        %v1430 = vmul.f32 %v1340, %v1413
        %v1431 = vmul.f32 %v1341, %v1418
        %v1432 = vmul.f32 %v1342, %v1423
        %v1433 = vmul.f32 %v1343, %v1428
        %v1434 = vstv %s1396
        %v1435 = vmul.f32 %v1434, %v1406
        %v1436 = vmul.f32 %v1434, %v1407
        %v1437 = vmul.f32 %v1434, %v1408
        %v1438 = vmul.f32 %v1434, %v1409
        %1443 = vrot.lane.b32.xlu0 %v1435, 1
        %v1444 = vpop.permute.xlu0 %1443
        %1445 = vrot.lane.b32.xlu0 %v1436, 1
        %v1446 = vpop.permute.xlu0 %1445
        %1447 = vrot.lane.b32.xlu0 %v1437, 1
        %v1448 = vpop.permute.xlu0 %1447
        %1449 = vrot.lane.b32.xlu0 %v1438, 1
        %v1450 = vpop.permute.xlu0 %1449
        %v1455 = vsub.f32 %v1205, %v1444
        %v1456 = vsub.f32 %v1206, %v1446
        %v1457 = vsub.f32 %v1207, %v1448
        %v1458 = vsub.f32 %v1208, %v1450
        %1460 = vset.pattern.permute.xlu0 2
        %1461 = vperm.xlu0 %1460, %v1455
        %v1462 = vpop.permute.xlu0 %1461
        %1465 = vset.pattern.permute.xlu0 2
        %1466 = vperm.xlu0 %1465, %v1456
        %v1467 = vpop.permute.xlu0 %1466
        %1470 = vset.pattern.permute.xlu0 2
        %1471 = vperm.xlu0 %1470, %v1457
        %v1472 = vpop.permute.xlu0 %1471
        %1475 = vset.pattern.permute.xlu0 2
        %1476 = vperm.xlu0 %1475, %v1458
        %v1477 = vpop.permute.xlu0 %1476
        %v1479 = vadd.f32 %v1430, %v1462
        %v1480 = vadd.f32 %v1431, %v1467
        %v1481 = vadd.f32 %v1432, %v1472
        %v1482 = vadd.f32 %v1433, %v1477
        %1483 = vset.pattern.permute.xlu0 3
        %1484 = vperm.xlu0 %1483, %v1205
        %v1485 = vpop.permute.xlu0 %1484
        %1487 = vset.pattern.permute.xlu0 3
        %1488 = vperm.xlu0 %1487, %v1206
        %v1489 = vpop.permute.xlu0 %1488
        %1491 = vset.pattern.permute.xlu0 3
        %1492 = vperm.xlu0 %1491, %v1207
        %v1493 = vpop.permute.xlu0 %1492
        %1495 = vset.pattern.permute.xlu0 3
        %1496 = vperm.xlu0 %1495, %v1208
        %v1497 = vpop.permute.xlu0 %1496
        %1499 = vrot.lane.b32.xlu0 %v1479, 2
        %v1500 = vpop.permute.xlu0 %1499
        %1501 = vrot.lane.b32.xlu0 %v1480, 2
        %v1502 = vpop.permute.xlu0 %1501
        %1503 = vrot.lane.b32.xlu0 %v1481, 2
        %v1504 = vpop.permute.xlu0 %1503
        %1505 = vrot.lane.b32.xlu0 %v1482, 2
        %v1506 = vpop.permute.xlu0 %1505
        %vm1507 = vcmp.ge.s32.totalorder %v526, 2
        %v1508 = vsel %vm1507, %v1500, 0.0
        %v1509 = vsel %vm1507, %v1502, 0.0
        %v1510 = vsel %vm1507, %v1504, 0.0
        %v1511 = vsel %vm1507, %v1506, 0.0
        %1512 = vset.pattern.permute.xlu0 6
        %1513 = vperm.xlu0 %1512, %v1205
        %v1514 = vpop.permute.xlu0 %1513
        %1516 = vset.pattern.permute.xlu0 6
        %1517 = vperm.xlu0 %1516, %v1206
        %v1518 = vpop.permute.xlu0 %1517
        %1520 = vset.pattern.permute.xlu0 6
        %1521 = vperm.xlu0 %1520, %v1207
        %v1522 = vpop.permute.xlu0 %1521
        %1524 = vset.pattern.permute.xlu0 6
        %1525 = vperm.xlu0 %1524, %v1208
        %v1526 = vpop.permute.xlu0 %1525
        %v1528 = vmul.f32 %v1514, %v1508
        %v1529 = vmul.f32 %v1518, %v1509
        %v1530 = vmul.f32 %v1522, %v1510
        %v1531 = vmul.f32 %v1526, %v1511
        %v1532 = vadd.f32 %v1485, %v1528
        %v1533 = vadd.f32 %v1489, %v1529
        %v1534 = vadd.f32 %v1493, %v1530
        %v1535 = vadd.f32 %v1497, %v1531
        %1536 = vset.pattern.permute.xlu0 7
        %1537 = vperm.xlu0 %1536, %v1205
        %v1538 = vpop.permute.xlu0 %1537
        %1540 = vset.pattern.permute.xlu0 7
        %1541 = vperm.xlu0 %1540, %v1206
        %v1542 = vpop.permute.xlu0 %1541
        %1544 = vset.pattern.permute.xlu0 7
        %1545 = vperm.xlu0 %1544, %v1207
        %v1546 = vpop.permute.xlu0 %1545
        %1548 = vset.pattern.permute.xlu0 7
        %1549 = vperm.xlu0 %1548, %v1208
        %v1550 = vpop.permute.xlu0 %1549
        %v1552 = vmul.f32 %v1538, %v1479
        %v1553 = vmul.f32 %v1542, %v1480
        %v1554 = vmul.f32 %v1546, %v1481
        %v1555 = vmul.f32 %v1550, %v1482
        %v1556 = vadd.f32 %v1532, %v1552
        %v1557 = vadd.f32 %v1533, %v1553
        %v1558 = vadd.f32 %v1534, %v1554
        %v1559 = vadd.f32 %v1535, %v1555
        %1560 = vrot.lane.b32.xlu0 %v1479, 126
        %v1561 = vpop.permute.xlu0 %1560
        %1562 = vrot.lane.b32.xlu0 %v1480, 126
        %v1563 = vpop.permute.xlu0 %1562
        %1564 = vrot.lane.b32.xlu0 %v1481, 126
        %v1565 = vpop.permute.xlu0 %1564
        %1566 = vrot.lane.b32.xlu0 %v1482, 126
        %v1567 = vpop.permute.xlu0 %1566
        %vm1568 = vcmp.lt.s32.totalorder %v526, 126
        %v1569 = vsel %vm1568, %v1561, 0.0
        %v1570 = vsel %vm1568, %v1563, 0.0
        %v1571 = vsel %vm1568, %v1565, 0.0
        %v1572 = vsel %vm1568, %v1567, 0.0
        %1573 = vset.pattern.permute.xlu0 8
        %1574 = vperm.xlu0 %1573, %v1205
        %v1575 = vpop.permute.xlu0 %1574
        %1577 = vset.pattern.permute.xlu0 8
        %1578 = vperm.xlu0 %1577, %v1206
        %v1579 = vpop.permute.xlu0 %1578
        %1581 = vset.pattern.permute.xlu0 8
        %1582 = vperm.xlu0 %1581, %v1207
        %v1583 = vpop.permute.xlu0 %1582
        %1585 = vset.pattern.permute.xlu0 8
        %1586 = vperm.xlu0 %1585, %v1208
        %v1587 = vpop.permute.xlu0 %1586
        %v1589 = vmul.f32 %v1575, %v1569
        %v1590 = vmul.f32 %v1579, %v1570
        %v1591 = vmul.f32 %v1583, %v1571
        %v1592 = vmul.f32 %v1587, %v1572
        %v1593 = vadd.f32 %v1556, %v1589
        %v1594 = vadd.f32 %v1557, %v1590
        %v1595 = vadd.f32 %v1558, %v1591
        %v1596 = vadd.f32 %v1559, %v1592
        %vm1597 = vcmp.ge.f32.partialorder %v1593, 0.0
        %vm1598 = vcmp.ge.f32.partialorder %v1594, 0.0
        %vm1599 = vcmp.ge.f32.partialorder %v1595, 0.0
        %vm1600 = vcmp.ge.f32.partialorder %v1596, 0.0
        %v1601 = vstv %s1203
        %v1602 = vmul.f32 %v1601, %v1593
        %v1603 = vmul.f32 %v1601, %v1594
        %v1604 = vmul.f32 %v1601, %v1595
        %v1605 = vmul.f32 %v1601, %v1596
        %v1606 = vsel %vm1597, %v1593, %v1602
        %v1607 = vsel %vm1598, %v1594, %v1603
        %v1608 = vsel %vm1599, %v1595, %v1604
        %v1609 = vsel %vm1600, %v1596, %v1605
        %v1610 = vmul.f32 %v1606, %v1606
        %v1611 = vmul.f32 %v1607, %v1607
        %v1612 = vmul.f32 %v1608, %v1608
        %v1613 = vmul.f32 %v1609, %v1609
        %1614 = vadd.xlane.f32.xlu0 %v1606
        %v1615 = vpop.xlane.xlu0 %1614
        %1616 = vadd.xlane.f32.xlu0 %v1607
        %v1617 = vpop.xlane.xlu0 %1616
        %1618 = vadd.xlane.f32.xlu0 %v1608
        %v1619 = vpop.xlane.xlu0 %1618
        %1620 = vadd.xlane.f32.xlu0 %v1609
        %v1621 = vpop.xlane.xlu0 %1620
        %1622 = vadd.xlane.f32.xlu0 %v1610
        %v1623 = vpop.xlane.xlu0 %1622
        %1624 = vadd.xlane.f32.xlu0 %v1611
        %v1625 = vpop.xlane.xlu0 %1624
        %1626 = vadd.xlane.f32.xlu0 %v1612
        %v1627 = vpop.xlane.xlu0 %1626
        %1628 = vadd.xlane.f32.xlu0 %v1613
        %v1629 = vpop.xlane.xlu0 %1628
        %v1630 = vsel %vm357, %v1615, 0.0
        %v1631 = vsel %vm357, %v1617, 0.0
        %v1632 = vadd.f32 %v1630, %v1631
        %v1633 = vsel %vm357, %v1619, 0.0
        %v1634 = vadd.f32 %v1632, %v1633
        %v1635 = vsel %vm357, %v1621, 0.0
        %v1636 = vadd.f32 %v1634, %v1635
        %1637 = vadd.xlane.f32.xlu0 %v1636
        %v1638 = vpop.xlane.xlu0 %1637
        %v1639 = vrot.slane %v1638, 4
        %v1640 = vadd.f32 %v1638, %v1639
        %v1641 = vrot.slane %v1640, 2
        %v1642 = vadd.f32 %v1640, %v1641
        %v1643 = vrot.slane %v1642, 1
        %v1644 = vadd.f32 %v1642, %v1643
        %s1645 = vtos %v1644
        %v1646 = vsel %vm357, %v1623, 0.0
        %v1647 = vsel %vm357, %v1625, 0.0
        %v1648 = vadd.f32 %v1646, %v1647
        %v1649 = vsel %vm357, %v1627, 0.0
        %v1650 = vadd.f32 %v1648, %v1649
        %v1651 = vsel %vm357, %v1629, 0.0
        %v1652 = vadd.f32 %v1650, %v1651
        %1653 = vadd.xlane.f32.xlu0 %v1652
        %v1654 = vpop.xlane.xlu0 %1653
        %v1655 = vrot.slane %v1654, 4
        %v1656 = vadd.f32 %v1654, %v1655
        %v1657 = vrot.slane %v1656, 2
        %v1658 = vadd.f32 %v1656, %v1657
        %v1659 = vrot.slane %v1658, 1
        %v1660 = vadd.f32 %v1658, %v1659
        %s1661 = vtos %v1660
        %s1662 = smul.f32 %s1645, 0.00024414063
        %s1663 = smul.f32 %s1661, 0.00024414063
        %s1664 = smul.f32 %s1662, %s1662
        %s1665 = ssub.f32 %s1663, %s1664
        %s1666 = smax.f32 %s1665, 0.0
        %s1667 = sadd.f32 %s1666, 1e-08
        %v1668 = vstv %s1667
        %v1669 = vrsqrt.pop %v1668
        %s1670 = vtos %v1669
        %v1671 = vstv %s1670
        %v1672 = vmul.f32 %v1205, %v1671
        %v1673 = vmul.f32 %v1206, %v1671
        %v1674 = vmul.f32 %v1207, %v1671
        %v1675 = vmul.f32 %v1208, %v1671
        %1677 = vset.pattern.permute.xlu0 4
        %1678 = vperm.xlu0 %1677, %v1672
        %v1679 = vpop.permute.xlu0 %1678
        %1682 = vset.pattern.permute.xlu0 4
        %1683 = vperm.xlu0 %1682, %v1673
        %v1684 = vpop.permute.xlu0 %1683
        %1687 = vset.pattern.permute.xlu0 4
        %1688 = vperm.xlu0 %1687, %v1674
        %v1689 = vpop.permute.xlu0 %1688
        %1692 = vset.pattern.permute.xlu0 4
        %1693 = vperm.xlu0 %1692, %v1675
        %v1694 = vpop.permute.xlu0 %1693
        %v1696 = vmul.f32 %v1606, %v1679
        %v1697 = vmul.f32 %v1607, %v1684
        %v1698 = vmul.f32 %v1608, %v1689
        %v1699 = vmul.f32 %v1609, %v1694
        %v1700 = vstv %s1662
        %v1701 = vmul.f32 %v1700, %v1672
        %v1702 = vmul.f32 %v1700, %v1673
        %v1703 = vmul.f32 %v1700, %v1674
        %v1704 = vmul.f32 %v1700, %v1675
        %1709 = vrot.lane.b32.xlu0 %v1701, 1
        %v1710 = vpop.permute.xlu0 %1709
        %1711 = vrot.lane.b32.xlu0 %v1702, 1
        %v1712 = vpop.permute.xlu0 %1711
        %1713 = vrot.lane.b32.xlu0 %v1703, 1
        %v1714 = vpop.permute.xlu0 %1713
        %1715 = vrot.lane.b32.xlu0 %v1704, 1
        %v1716 = vpop.permute.xlu0 %1715
        %v1721 = vsub.f32 %v1205, %v1710
        %v1722 = vsub.f32 %v1206, %v1712
        %v1723 = vsub.f32 %v1207, %v1714
        %v1724 = vsub.f32 %v1208, %v1716
        %1726 = vset.pattern.permute.xlu0 5
        %1727 = vperm.xlu0 %1726, %v1721
        %v1728 = vpop.permute.xlu0 %1727
        %1731 = vset.pattern.permute.xlu0 5
        %1732 = vperm.xlu0 %1731, %v1722
        %v1733 = vpop.permute.xlu0 %1732
        %1736 = vset.pattern.permute.xlu0 5
        %1737 = vperm.xlu0 %1736, %v1723
        %v1738 = vpop.permute.xlu0 %1737
        %1741 = vset.pattern.permute.xlu0 5
        %1742 = vperm.xlu0 %1741, %v1724
        %v1743 = vpop.permute.xlu0 %1742
        %v1745 = vadd.f32 %v1696, %v1728
        %v1746 = vadd.f32 %v1697, %v1733
        %v1747 = vadd.f32 %v1698, %v1738
        %v1748 = vadd.f32 %v1699, %v1743
        %s1749 = scalar_lea.vmem %s5, 32
        %v1750 = vld [vmem:[%s1749] sm:$0xff]
        %v1751 = vld [vmem:[%s1749 + $0x8] sm:$0xff]
        %v1752 = vld [vmem:[%s1749 + $0x10] sm:$0xff]
        %v1753 = vld [vmem:[%s1749 + $0x18] sm:$0xff]
        %s1754 = scalar_lea.vmem %s6, 32
        %v1755 = vld [vmem:[%s1754] sm:$0xff]
        %v1756 = vld [vmem:[%s1754 + $0x8] sm:$0xff]
        %v1757 = vld [vmem:[%s1754 + $0x10] sm:$0xff]
        %v1758 = vld [vmem:[%s1754 + $0x18] sm:$0xff]
        %1760 = vset.pattern.permute.xlu0 0
        %1761 = vperm.xlu0 %1760, %v1755
        %v1762 = vpop.permute.xlu0 %1761
        %1765 = vset.pattern.permute.xlu0 0
        %1766 = vperm.xlu0 %1765, %v1756
        %v1767 = vpop.permute.xlu0 %1766
        %1770 = vset.pattern.permute.xlu0 0
        %1771 = vperm.xlu0 %1770, %v1757
        %v1772 = vpop.permute.xlu0 %1771
        %1775 = vset.pattern.permute.xlu0 0
        %1776 = vperm.xlu0 %1775, %v1758
        %v1777 = vpop.permute.xlu0 %1776
        %v1780 = vsel %vm1100, %v1750, 0
        %v1783 = vsel %vm1100, %v1751, 0
        %v1786 = vsel %vm1100, %v1752, 0
        %v1789 = vsel %vm1100, %v1753, 0
        %1791 = vmatprep.subr.mxu0 0.0
        %1792 = vmatpush1.msra.mxu0 %v1745
        %1793 = vmatprep.subr.mxu0 0.0
        %1794 = vmatpush1.msra.mxu0 %v1746
        %1795 = vmatprep.subr.mxu0 0.0
        %1796 = vmatpush1.msra.mxu0 %v1747
        %1797 = vmatprep.subr.mxu0 0.0
        %1798 = vmatpush1.msra.mxu0 %v1748
        %1799 = vmatprep.subr.mxu0 0.0
        %1800 = vmatpush1.msra.mxu0 0.0
        %1801 = vmatprep.subr.mxu0 0.0
        %1802 = vmatpush1.msra.mxu0 0.0
        %1803 = vmatprep.subr.mxu0 0.0
        %1804 = vmatpush1.msra.mxu0 0.0
        %1805 = vmatprep.subr.mxu0 0.0
        %1806 = vmatpush1.msra.mxu0 0.0
        %1807 = vmatprep.subr.mxu0 0.0
        %1808 = vmatpush1.msra.mxu0 0.0
        %1809 = vmatprep.subr.mxu0 0.0
        %1810 = vmatpush1.msra.mxu0 0.0
        %1811 = vmatprep.subr.mxu0 0.0
        %1812 = vmatpush1.msra.mxu0 0.0
        %1813 = vmatprep.subr.mxu0 0.0
        %1814 = vmatpush1.msra.mxu0 0.0
        %1815 = vmatprep.subr.mxu0 0.0
        %1816 = vmatpush1.msra.mxu0 0.0
        %1817 = vmatprep.subr.mxu0 0.0
        %1818 = vmatpush1.msra.mxu0 0.0
        %1819 = vmatprep.subr.mxu0 0.0
        %1820 = vmatpush1.msra.mxu0 0.0
        %1821 = vmatprep.subr.mxu0 0.0
        %1822 = vmatpush1.msra.mxu0 0.0
        %1823 = vmatprep.subr.mxu0 0.0
        %1824 = vmatpush1.msra.mxu0 0.0
        %1825 = vmatprep.subr.mxu0 0.0
        %1826 = vmatpush1.msra.mxu0 0.0
        %1827 = vmatprep.subr.mxu0 0.0
        %1828 = vmatpush1.msra.mxu0 0.0
        %1829 = vmatprep.subr.mxu0 0.0
        %1830 = vmatpush1.msra.mxu0 0.0
        %1831 = vmatprep.subr.mxu0 0.0
        %1832 = vmatpush1.msra.mxu0 0.0
        %1833 = vmatprep.subr.mxu0 0.0
        %1834 = vmatpush1.msra.mxu0 0.0
        %1835 = vmatprep.subr.mxu0 0.0
        %1836 = vmatpush1.msra.mxu0 0.0
        %1837 = vmatprep.subr.mxu0 0.0
        %1838 = vmatpush1.msra.mxu0 0.0
        %1839 = vmatprep.subr.mxu0 0.0
        %1840 = vmatpush1.msra.mxu0 0.0
        %1841 = vmatprep.subr.mxu0 0.0
        %1842 = vmatpush1.msra.mxu0 0.0
        %1843 = vmatprep.subr.mxu0 0.0
        %1844 = vmatpush1.msra.mxu0 0.0
        %1845 = vmatprep.subr.mxu0 0.0
        %1846 = vmatpush1.msra.mxu0 0.0
        %1847 = vmatprep.subr.mxu0 0.0
        %1848 = vmatpush1.msra.mxu0 0.0
        %1849 = vmatprep.subr.mxu0 0.0
        %1850 = vmatpush1.msra.mxu0 0.0
        %1851 = vmatprep.subr.mxu0 0.0
        %1852 = vmatpush1.msra.mxu0 0.0
        %1853 = vmatprep.subr.mxu0 0.0
        %1854 = vmatpush1.msra.mxu0 0.0
        %1855 = vmatprep.mubr.f32.mxu0 0.0
        %1856 = vmatmul.mubr.f32.gmra.mrb[0].mxu0 %v1780
        %v1857 = vpop.f32.mrb[0].mxu0
        %v1858 = vadd.f32 %v1762, %v1857
        %v1859 = vpop.f32.mrb[0].mxu0
        %1860 = vmatprep.mubr.f32.mxu0 0.0
        %1861 = vmatmul.mubr.f32.gmra.mrb[0].mxu0 %v1783
        %v1862 = vpop.f32.mrb[0].mxu0
        %v1863 = vadd.f32 %v1767, %v1862
        %v1864 = vpop.f32.mrb[0].mxu0
        %1865 = vmatprep.mubr.f32.mxu0 0.0
        %1866 = vmatmul.mubr.f32.gmra.mrb[0].mxu0 %v1786
        %v1867 = vpop.f32.mrb[0].mxu0
        %v1868 = vadd.f32 %v1772, %v1867
        %v1869 = vpop.f32.mrb[0].mxu0
        %1870 = vmatprep.mubr.f32.mxu0 0.0
        %1871 = vmatmul.mubr.f32.gmra.mrb[0].mxu0 %v1789
        %v1872 = vpop.f32.mrb[0].mxu0
        %v1873 = vadd.f32 %v1777, %v1872
        %v1874 = vpop.f32.mrb[0].mxu0
        %1875 = vdwg.mxu0
        %v1876 = vadd.f32 %v1198, %v1858
        %v1877 = vadd.f32 %v1199, %v1863
        %v1878 = vadd.f32 %v1200, %v1868
        %v1879 = vadd.f32 %v1201, %v1873
        %s1880 = sld [smem:[#allocation2 + $0x4]]
        %s1881 = sld [smem:[#allocation2 + $0x5]]
        %s1882 = scalar_lea.vmem %s4, 64
        %v1883 = vld [vmem:[%s1882] sm:$0xff]
        %v1884 = vld [vmem:[%s1882 + $0x8] sm:$0xff]
        %v1885 = vld [vmem:[%s1882 + $0x10] sm:$0xff]
        %v1886 = vld [vmem:[%s1882 + $0x18] sm:$0xff]
        %s1887 = scalar_lea.vmem %s3, 64
        %v1888 = vld [vmem:[%s1887] sm:$0xff]
        %v1889 = vld [vmem:[%s1887 + $0x8] sm:$0xff]
        %v1890 = vld [vmem:[%s1887 + $0x10] sm:$0xff]
        %v1891 = vld [vmem:[%s1887 + $0x18] sm:$0xff]
        %1893 = vset.pattern.permute.xlu0 0
        %1894 = vperm.xlu0 %1893, %v1883
        %v1895 = vpop.permute.xlu0 %1894
        %1898 = vset.pattern.permute.xlu0 0
        %1899 = vperm.xlu0 %1898, %v1884
        %v1900 = vpop.permute.xlu0 %1899
        %1903 = vset.pattern.permute.xlu0 0
        %1904 = vperm.xlu0 %1903, %v1885
        %v1905 = vpop.permute.xlu0 %1904
        %1908 = vset.pattern.permute.xlu0 0
        %1909 = vperm.xlu0 %1908, %v1886
        %v1910 = vpop.permute.xlu0 %1909
        %v1913 = vsel %vm445, %v1888, 0
        %v1916 = vsel %vm445, %v1889, 0
        %v1919 = vsel %vm445, %v1890, 0
        %v1922 = vsel %vm445, %v1891, 0
        %1924 = vmatprep.subr.mxu0 0.0
        %1925 = vmatpush1.msra.mxu0 %v1876
        %1926 = vmatprep.subr.mxu0 0.0
        %1927 = vmatpush1.msra.mxu0 %v1877
        %1928 = vmatprep.subr.mxu0 0.0
        %1929 = vmatpush1.msra.mxu0 0.0
        %1930 = vmatprep.subr.mxu0 0.0
        %1931 = vmatpush1.msra.mxu0 0.0
        %1932 = vmatprep.subr.mxu0 0.0
        %1933 = vmatpush1.msra.mxu0 0.0
        %1934 = vmatprep.subr.mxu0 0.0
        %1935 = vmatpush1.msra.mxu0 0.0
        %1936 = vmatprep.subr.mxu0 0.0
        %1937 = vmatpush1.msra.mxu0 0.0
        %1938 = vmatprep.subr.mxu0 0.0
        %1939 = vmatpush1.msra.mxu0 0.0
        %1940 = vmatprep.subr.mxu0 0.0
        %1941 = vmatpush1.msra.mxu0 0.0
        %1942 = vmatprep.subr.mxu0 0.0
        %1943 = vmatpush1.msra.mxu0 0.0
        %1944 = vmatprep.subr.mxu0 0.0
        %1945 = vmatpush1.msra.mxu0 0.0
        %1946 = vmatprep.subr.mxu0 0.0
        %1947 = vmatpush1.msra.mxu0 0.0
        %1948 = vmatprep.subr.mxu0 0.0
        %1949 = vmatpush1.msra.mxu0 0.0
        %1950 = vmatprep.subr.mxu0 0.0
        %1951 = vmatpush1.msra.mxu0 0.0
        %1952 = vmatprep.subr.mxu0 0.0
        %1953 = vmatpush1.msra.mxu0 0.0
        %1954 = vmatprep.subr.mxu0 0.0
        %1955 = vmatpush1.msra.mxu0 0.0
        %1956 = vmatprep.subr.mxu0 0.0
        %1957 = vmatpush1.msra.mxu0 0.0
        %1958 = vmatprep.subr.mxu0 0.0
        %1959 = vmatpush1.msra.mxu0 0.0
        %1960 = vmatprep.subr.mxu0 0.0
        %1961 = vmatpush1.msra.mxu0 0.0
        %1962 = vmatprep.subr.mxu0 0.0
        %1963 = vmatpush1.msra.mxu0 0.0
        %1964 = vmatprep.subr.mxu0 0.0
        %1965 = vmatpush1.msra.mxu0 0.0
        %1966 = vmatprep.subr.mxu0 0.0
        %1967 = vmatpush1.msra.mxu0 0.0
        %1968 = vmatprep.subr.mxu0 0.0
        %1969 = vmatpush1.msra.mxu0 0.0
        %1970 = vmatprep.subr.mxu0 0.0
        %1971 = vmatpush1.msra.mxu0 0.0
        %1972 = vmatprep.subr.mxu0 0.0
        %1973 = vmatpush1.msra.mxu0 0.0
        %1974 = vmatprep.subr.mxu0 0.0
        %1975 = vmatpush1.msra.mxu0 0.0
        %1976 = vmatprep.subr.mxu0 0.0
        %1977 = vmatpush1.msra.mxu0 0.0
        %1978 = vmatprep.subr.mxu0 0.0
        %1979 = vmatpush1.msra.mxu0 0.0
        %1980 = vmatprep.subr.mxu0 0.0
        %1981 = vmatpush1.msra.mxu0 0.0
        %1982 = vmatprep.subr.mxu0 0.0
        %1983 = vmatpush1.msra.mxu0 0.0
        %1984 = vmatprep.subr.mxu0 0.0
        %1985 = vmatpush1.msra.mxu0 0.0
        %1986 = vmatprep.subr.mxu0 0.0
        %1987 = vmatpush1.msra.mxu0 0.0
        %1988 = vmatprep.mubr.f32.mxu0 0.0
        %1989 = vmatmul.mubr.f32.gmra.mrb[0].mxu0 %v1913
        %v1990 = vpop.f32.mrb[0].mxu0
        %v1991 = vadd.f32 %v1895, %v1990
        %v1992 = vpop.f32.mrb[0].mxu0
        %1993 = vmatprep.mubr.f32.mxu0 0.0
        %1994 = vmatmul.mubr.f32.gmra.mrb[0].mxu0 %v1916
        %v1995 = vpop.f32.mrb[0].mxu0
        %v1996 = vadd.f32 %v1900, %v1995
        %v1997 = vpop.f32.mrb[0].mxu0
        %1998 = vmatprep.mubr.f32.mxu0 0.0
        %1999 = vmatmul.mubr.f32.gmra.mrb[0].mxu0 %v1919
        %v2000 = vpop.f32.mrb[0].mxu0
        %v2001 = vadd.f32 %v1905, %v2000
        %v2002 = vpop.f32.mrb[0].mxu0
        %2003 = vmatprep.mubr.f32.mxu0 0.0
        %2004 = vmatmul.mubr.f32.gmra.mrb[0].mxu0 %v1922
        %v2005 = vpop.f32.mrb[0].mxu0
        %v2006 = vadd.f32 %v1910, %v2005
        %v2007 = vpop.f32.mrb[0].mxu0
        %2008 = vdwg.mxu0
        %vm2009 = vcmp.ge.f32.partialorder %v1991, 0.0
        %vm2010 = vcmp.ge.f32.partialorder %v1996, 0.0
        %vm2011 = vcmp.ge.f32.partialorder %v2001, 0.0
        %vm2012 = vcmp.ge.f32.partialorder %v2006, 0.0
        %v2013 = vstv %s1880
        %v2014 = vmul.f32 %v2013, %v1991
        %v2015 = vmul.f32 %v2013, %v1996
        %v2016 = vmul.f32 %v2013, %v2001
        %v2017 = vmul.f32 %v2013, %v2006
        %v2018 = vsel %vm2009, %v1991, %v2014
        %v2019 = vsel %vm2010, %v1996, %v2015
        %v2020 = vsel %vm2011, %v2001, %v2016
        %v2021 = vsel %vm2012, %v2006, %v2017
        %v2022 = vmul.f32 %v2018, %v2018
        %v2023 = vmul.f32 %v2019, %v2019
        %v2024 = vmul.f32 %v2020, %v2020
        %v2025 = vmul.f32 %v2021, %v2021
        %2026 = vadd.xlane.f32.xlu0 %v2018
        %v2027 = vpop.xlane.xlu0 %2026
        %2028 = vadd.xlane.f32.xlu0 %v2019
        %v2029 = vpop.xlane.xlu0 %2028
        %2030 = vadd.xlane.f32.xlu0 %v2020
        %v2031 = vpop.xlane.xlu0 %2030
        %2032 = vadd.xlane.f32.xlu0 %v2021
        %v2033 = vpop.xlane.xlu0 %2032
        %2034 = vadd.xlane.f32.xlu0 %v2022
        %v2035 = vpop.xlane.xlu0 %2034
        %2036 = vadd.xlane.f32.xlu0 %v2023
        %v2037 = vpop.xlane.xlu0 %2036
        %2038 = vadd.xlane.f32.xlu0 %v2024
        %v2039 = vpop.xlane.xlu0 %2038
        %2040 = vadd.xlane.f32.xlu0 %v2025
        %v2041 = vpop.xlane.xlu0 %2040
        %v2042 = vsel %vm357, %v2027, 0.0
        %v2043 = vsel %vm357, %v2029, 0.0
        %v2044 = vadd.f32 %v2042, %v2043
        %v2045 = vsel %vm357, %v2031, 0.0
        %v2046 = vadd.f32 %v2044, %v2045
        %v2047 = vsel %vm357, %v2033, 0.0
        %v2048 = vadd.f32 %v2046, %v2047
        %2049 = vadd.xlane.f32.xlu0 %v2048
        %v2050 = vpop.xlane.xlu0 %2049
        %v2051 = vrot.slane %v2050, 4
        %v2052 = vadd.f32 %v2050, %v2051
        %v2053 = vrot.slane %v2052, 2
        %v2054 = vadd.f32 %v2052, %v2053
        %v2055 = vrot.slane %v2054, 1
        %v2056 = vadd.f32 %v2054, %v2055
        %s2057 = vtos %v2056
        %v2058 = vsel %vm357, %v2035, 0.0
        %v2059 = vsel %vm357, %v2037, 0.0
        %v2060 = vadd.f32 %v2058, %v2059
        %v2061 = vsel %vm357, %v2039, 0.0
        %v2062 = vadd.f32 %v2060, %v2061
        %v2063 = vsel %vm357, %v2041, 0.0
        %v2064 = vadd.f32 %v2062, %v2063
        %2065 = vadd.xlane.f32.xlu0 %v2064
        %v2066 = vpop.xlane.xlu0 %2065
        %v2067 = vrot.slane %v2066, 4
        %v2068 = vadd.f32 %v2066, %v2067
        %v2069 = vrot.slane %v2068, 2
        %v2070 = vadd.f32 %v2068, %v2069
        %v2071 = vrot.slane %v2070, 1
        %v2072 = vadd.f32 %v2070, %v2071
        %s2073 = vtos %v2072
        %s2074 = smul.f32 %s2057, 0.00024414063
        %s2075 = smul.f32 %s2073, 0.00024414063
        %s2076 = smul.f32 %s2074, %s2074
        %s2077 = ssub.f32 %s2075, %s2076
        %s2078 = smax.f32 %s2077, 0.0
        %s2079 = sadd.f32 %s2078, 1e-08
        %v2080 = vstv %s2079
        %v2081 = vrsqrt.pop %v2080
        %s2082 = vtos %v2081
        %v2083 = vstv %s2082
        %v2084 = vmul.f32 %v1883, %v2083
        %v2085 = vmul.f32 %v1884, %v2083
        %v2086 = vmul.f32 %v1885, %v2083
        %v2087 = vmul.f32 %v1886, %v2083
        %2089 = vset.pattern.permute.xlu0 1
        %2090 = vperm.xlu0 %2089, %v2084
        %v2091 = vpop.permute.xlu0 %2090
        %2094 = vset.pattern.permute.xlu0 1
        %2095 = vperm.xlu0 %2094, %v2085
        %v2096 = vpop.permute.xlu0 %2095
        %2099 = vset.pattern.permute.xlu0 1
        %2100 = vperm.xlu0 %2099, %v2086
        %v2101 = vpop.permute.xlu0 %2100
        %2104 = vset.pattern.permute.xlu0 1
        %2105 = vperm.xlu0 %2104, %v2087
        %v2106 = vpop.permute.xlu0 %2105
        %v2108 = vmul.f32 %v2018, %v2091
        %v2109 = vmul.f32 %v2019, %v2096
        %v2110 = vmul.f32 %v2020, %v2101
        %v2111 = vmul.f32 %v2021, %v2106
        %v2112 = vstv %s2074
        %v2113 = vmul.f32 %v2112, %v2084
        %v2114 = vmul.f32 %v2112, %v2085
        %v2115 = vmul.f32 %v2112, %v2086
        %v2116 = vmul.f32 %v2112, %v2087
        %2121 = vrot.lane.b32.xlu0 %v2113, 1
        %v2122 = vpop.permute.xlu0 %2121
        %2123 = vrot.lane.b32.xlu0 %v2114, 1
        %v2124 = vpop.permute.xlu0 %2123
        %2125 = vrot.lane.b32.xlu0 %v2115, 1
        %v2126 = vpop.permute.xlu0 %2125
        %2127 = vrot.lane.b32.xlu0 %v2116, 1
        %v2128 = vpop.permute.xlu0 %2127
        %v2133 = vsub.f32 %v1883, %v2122
        %v2134 = vsub.f32 %v1884, %v2124
        %v2135 = vsub.f32 %v1885, %v2126
        %v2136 = vsub.f32 %v1886, %v2128
        %2138 = vset.pattern.permute.xlu0 2
        %2139 = vperm.xlu0 %2138, %v2133
        %v2140 = vpop.permute.xlu0 %2139
        %2143 = vset.pattern.permute.xlu0 2
        %2144 = vperm.xlu0 %2143, %v2134
        %v2145 = vpop.permute.xlu0 %2144
        %2148 = vset.pattern.permute.xlu0 2
        %2149 = vperm.xlu0 %2148, %v2135
        %v2150 = vpop.permute.xlu0 %2149
        %2153 = vset.pattern.permute.xlu0 2
        %2154 = vperm.xlu0 %2153, %v2136
        %v2155 = vpop.permute.xlu0 %2154
        %v2157 = vadd.f32 %v2108, %v2140
        %v2158 = vadd.f32 %v2109, %v2145
        %v2159 = vadd.f32 %v2110, %v2150
        %v2160 = vadd.f32 %v2111, %v2155
        %2161 = vset.pattern.permute.xlu0 3
        %2162 = vperm.xlu0 %2161, %v1883
        %v2163 = vpop.permute.xlu0 %2162
        %2165 = vset.pattern.permute.xlu0 3
        %2166 = vperm.xlu0 %2165, %v1884
        %v2167 = vpop.permute.xlu0 %2166
        %2169 = vset.pattern.permute.xlu0 3
        %2170 = vperm.xlu0 %2169, %v1885
        %v2171 = vpop.permute.xlu0 %2170
        %2173 = vset.pattern.permute.xlu0 3
        %2174 = vperm.xlu0 %2173, %v1886
        %v2175 = vpop.permute.xlu0 %2174
        %2177 = vrot.lane.b32.xlu0 %v2157, 1
        %v2178 = vpop.permute.xlu0 %2177
        %2179 = vrot.lane.b32.xlu0 %v2158, 1
        %v2180 = vpop.permute.xlu0 %2179
        %2181 = vrot.lane.b32.xlu0 %v2159, 1
        %v2182 = vpop.permute.xlu0 %2181
        %2183 = vrot.lane.b32.xlu0 %v2160, 1
        %v2184 = vpop.permute.xlu0 %2183
        %v2185 = vsel %vm830, %v2178, 0.0
        %v2186 = vsel %vm830, %v2180, 0.0
        %v2187 = vsel %vm830, %v2182, 0.0
        %v2188 = vsel %vm830, %v2184, 0.0
        %2189 = vset.pattern.permute.xlu0 6
        %2190 = vperm.xlu0 %2189, %v1883
        %v2191 = vpop.permute.xlu0 %2190
        %2193 = vset.pattern.permute.xlu0 6
        %2194 = vperm.xlu0 %2193, %v1884
        %v2195 = vpop.permute.xlu0 %2194
        %2197 = vset.pattern.permute.xlu0 6
        %2198 = vperm.xlu0 %2197, %v1885
        %v2199 = vpop.permute.xlu0 %2198
        %2201 = vset.pattern.permute.xlu0 6
        %2202 = vperm.xlu0 %2201, %v1886
        %v2203 = vpop.permute.xlu0 %2202
        %v2205 = vmul.f32 %v2191, %v2185
        %v2206 = vmul.f32 %v2195, %v2186
        %v2207 = vmul.f32 %v2199, %v2187
        %v2208 = vmul.f32 %v2203, %v2188
        %v2209 = vadd.f32 %v2163, %v2205
        %v2210 = vadd.f32 %v2167, %v2206
        %v2211 = vadd.f32 %v2171, %v2207
        %v2212 = vadd.f32 %v2175, %v2208
        %2213 = vset.pattern.permute.xlu0 7
        %2214 = vperm.xlu0 %2213, %v1883
        %v2215 = vpop.permute.xlu0 %2214
        %2217 = vset.pattern.permute.xlu0 7
        %2218 = vperm.xlu0 %2217, %v1884
        %v2219 = vpop.permute.xlu0 %2218
        %2221 = vset.pattern.permute.xlu0 7
        %2222 = vperm.xlu0 %2221, %v1885
        %v2223 = vpop.permute.xlu0 %2222
        %2225 = vset.pattern.permute.xlu0 7
        %2226 = vperm.xlu0 %2225, %v1886
        %v2227 = vpop.permute.xlu0 %2226
        %v2229 = vmul.f32 %v2215, %v2157
        %v2230 = vmul.f32 %v2219, %v2158
        %v2231 = vmul.f32 %v2223, %v2159
        %v2232 = vmul.f32 %v2227, %v2160
        %v2233 = vadd.f32 %v2209, %v2229
        %v2234 = vadd.f32 %v2210, %v2230
        %v2235 = vadd.f32 %v2211, %v2231
        %v2236 = vadd.f32 %v2212, %v2232
        %2237 = vrot.lane.b32.xlu0 %v2157, 127
        %v2238 = vpop.permute.xlu0 %2237
        %2239 = vrot.lane.b32.xlu0 %v2158, 127
        %v2240 = vpop.permute.xlu0 %2239
        %2241 = vrot.lane.b32.xlu0 %v2159, 127
        %v2242 = vpop.permute.xlu0 %2241
        %2243 = vrot.lane.b32.xlu0 %v2160, 127
        %v2244 = vpop.permute.xlu0 %2243
        %v2245 = vsel %vm891, %v2238, 0.0
        %v2246 = vsel %vm891, %v2240, 0.0
        %v2247 = vsel %vm891, %v2242, 0.0
        %v2248 = vsel %vm891, %v2244, 0.0
        %2249 = vset.pattern.permute.xlu0 8
        %2250 = vperm.xlu0 %2249, %v1883
        %v2251 = vpop.permute.xlu0 %2250
        %2253 = vset.pattern.permute.xlu0 8
        %2254 = vperm.xlu0 %2253, %v1884
        %v2255 = vpop.permute.xlu0 %2254
        %2257 = vset.pattern.permute.xlu0 8
        %2258 = vperm.xlu0 %2257, %v1885
        %v2259 = vpop.permute.xlu0 %2258
        %2261 = vset.pattern.permute.xlu0 8
        %2262 = vperm.xlu0 %2261, %v1886
        %v2263 = vpop.permute.xlu0 %2262
        %v2265 = vmul.f32 %v2251, %v2245
        %v2266 = vmul.f32 %v2255, %v2246
        %v2267 = vmul.f32 %v2259, %v2247
        %v2268 = vmul.f32 %v2263, %v2248
        %v2269 = vadd.f32 %v2233, %v2265
        %v2270 = vadd.f32 %v2234, %v2266
        %v2271 = vadd.f32 %v2235, %v2267
        %v2272 = vadd.f32 %v2236, %v2268
        %vm2273 = vcmp.ge.f32.partialorder %v2269, 0.0
        %vm2274 = vcmp.ge.f32.partialorder %v2270, 0.0
        %vm2275 = vcmp.ge.f32.partialorder %v2271, 0.0
        %vm2276 = vcmp.ge.f32.partialorder %v2272, 0.0
        %v2277 = vstv %s1881
        %v2278 = vmul.f32 %v2277, %v2269
        %v2279 = vmul.f32 %v2277, %v2270
        %v2280 = vmul.f32 %v2277, %v2271
        %v2281 = vmul.f32 %v2277, %v2272
        %v2282 = vsel %vm2273, %v2269, %v2278
        %v2283 = vsel %vm2274, %v2270, %v2279
        %v2284 = vsel %vm2275, %v2271, %v2280
        %v2285 = vsel %vm2276, %v2272, %v2281
        %v2286 = vmul.f32 %v2282, %v2282
        %v2287 = vmul.f32 %v2283, %v2283
        %v2288 = vmul.f32 %v2284, %v2284
        %v2289 = vmul.f32 %v2285, %v2285
        %2290 = vadd.xlane.f32.xlu0 %v2282
        %v2291 = vpop.xlane.xlu0 %2290
        %2292 = vadd.xlane.f32.xlu0 %v2283
        %v2293 = vpop.xlane.xlu0 %2292
        %2294 = vadd.xlane.f32.xlu0 %v2284
        %v2295 = vpop.xlane.xlu0 %2294
        %2296 = vadd.xlane.f32.xlu0 %v2285
        %v2297 = vpop.xlane.xlu0 %2296
        %2298 = vadd.xlane.f32.xlu0 %v2286
        %v2299 = vpop.xlane.xlu0 %2298
        %2300 = vadd.xlane.f32.xlu0 %v2287
        %v2301 = vpop.xlane.xlu0 %2300
        %2302 = vadd.xlane.f32.xlu0 %v2288
        %v2303 = vpop.xlane.xlu0 %2302
        %2304 = vadd.xlane.f32.xlu0 %v2289
        %v2305 = vpop.xlane.xlu0 %2304
        %v2306 = vsel %vm357, %v2291, 0.0
        %v2307 = vsel %vm357, %v2293, 0.0
        %v2308 = vadd.f32 %v2306, %v2307
        %v2309 = vsel %vm357, %v2295, 0.0
        %v2310 = vadd.f32 %v2308, %v2309
        %v2311 = vsel %vm357, %v2297, 0.0
        %v2312 = vadd.f32 %v2310, %v2311
        %2313 = vadd.xlane.f32.xlu0 %v2312
        %v2314 = vpop.xlane.xlu0 %2313
        %v2315 = vrot.slane %v2314, 4
        %v2316 = vadd.f32 %v2314, %v2315
        %v2317 = vrot.slane %v2316, 2
        %v2318 = vadd.f32 %v2316, %v2317
        %v2319 = vrot.slane %v2318, 1
        %v2320 = vadd.f32 %v2318, %v2319
        %s2321 = vtos %v2320
        %v2322 = vsel %vm357, %v2299, 0.0
        %v2323 = vsel %vm357, %v2301, 0.0
        %v2324 = vadd.f32 %v2322, %v2323
        %v2325 = vsel %vm357, %v2303, 0.0
        %v2326 = vadd.f32 %v2324, %v2325
        %v2327 = vsel %vm357, %v2305, 0.0
        %v2328 = vadd.f32 %v2326, %v2327
        %2329 = vadd.xlane.f32.xlu0 %v2328
        %v2330 = vpop.xlane.xlu0 %2329
        %v2331 = vrot.slane %v2330, 4
        %v2332 = vadd.f32 %v2330, %v2331
        %v2333 = vrot.slane %v2332, 2
        %v2334 = vadd.f32 %v2332, %v2333
        %v2335 = vrot.slane %v2334, 1
        %v2336 = vadd.f32 %v2334, %v2335
        %s2337 = vtos %v2336
        %s2338 = smul.f32 %s2321, 0.00024414063
        %s2339 = smul.f32 %s2337, 0.00024414063
        %s2340 = smul.f32 %s2338, %s2338
        %s2341 = ssub.f32 %s2339, %s2340
        %s2342 = smax.f32 %s2341, 0.0
        %s2343 = sadd.f32 %s2342, 1e-08
        %v2344 = vstv %s2343
        %v2345 = vrsqrt.pop %v2344
        %s2346 = vtos %v2345
        %v2347 = vstv %s2346
        %v2348 = vmul.f32 %v1883, %v2347
        %v2349 = vmul.f32 %v1884, %v2347
        %v2350 = vmul.f32 %v1885, %v2347
        %v2351 = vmul.f32 %v1886, %v2347
        %2353 = vset.pattern.permute.xlu0 4
        %2354 = vperm.xlu0 %2353, %v2348
        %v2355 = vpop.permute.xlu0 %2354
        %2358 = vset.pattern.permute.xlu0 4
        %2359 = vperm.xlu0 %2358, %v2349
        %v2360 = vpop.permute.xlu0 %2359
        %2363 = vset.pattern.permute.xlu0 4
        %2364 = vperm.xlu0 %2363, %v2350
        %v2365 = vpop.permute.xlu0 %2364
        %2368 = vset.pattern.permute.xlu0 4
        %2369 = vperm.xlu0 %2368, %v2351
        %v2370 = vpop.permute.xlu0 %2369
        %v2372 = vmul.f32 %v2282, %v2355
        %v2373 = vmul.f32 %v2283, %v2360
        %v2374 = vmul.f32 %v2284, %v2365
        %v2375 = vmul.f32 %v2285, %v2370
        %v2376 = vstv %s2338
        %v2377 = vmul.f32 %v2376, %v2348
        %v2378 = vmul.f32 %v2376, %v2349
        %v2379 = vmul.f32 %v2376, %v2350
        %v2380 = vmul.f32 %v2376, %v2351
        %2385 = vrot.lane.b32.xlu0 %v2377, 1
        %v2386 = vpop.permute.xlu0 %2385
        %2387 = vrot.lane.b32.xlu0 %v2378, 1
        %v2388 = vpop.permute.xlu0 %2387
        %2389 = vrot.lane.b32.xlu0 %v2379, 1
        %v2390 = vpop.permute.xlu0 %2389
        %2391 = vrot.lane.b32.xlu0 %v2380, 1
        %v2392 = vpop.permute.xlu0 %2391
        %v2397 = vsub.f32 %v1883, %v2386
        %v2398 = vsub.f32 %v1884, %v2388
        %v2399 = vsub.f32 %v1885, %v2390
        %v2400 = vsub.f32 %v1886, %v2392
        %2402 = vset.pattern.permute.xlu0 5
        %2403 = vperm.xlu0 %2402, %v2397
        %v2404 = vpop.permute.xlu0 %2403
        %2407 = vset.pattern.permute.xlu0 5
        %2408 = vperm.xlu0 %2407, %v2398
        %v2409 = vpop.permute.xlu0 %2408
        %2412 = vset.pattern.permute.xlu0 5
        %2413 = vperm.xlu0 %2412, %v2399
        %v2414 = vpop.permute.xlu0 %2413
        %2417 = vset.pattern.permute.xlu0 5
        %2418 = vperm.xlu0 %2417, %v2400
        %v2419 = vpop.permute.xlu0 %2418
        %v2421 = vadd.f32 %v2372, %v2404
        %v2422 = vadd.f32 %v2373, %v2409
        %v2423 = vadd.f32 %v2374, %v2414
        %v2424 = vadd.f32 %v2375, %v2419
        %s2425 = scalar_lea.vmem %s5, 64
        %v2426 = vld [vmem:[%s2425] sm:$0xff]
        %v2427 = vld [vmem:[%s2425 + $0x8] sm:$0xff]
        %v2428 = vld [vmem:[%s2425 + $0x10] sm:$0xff]
        %v2429 = vld [vmem:[%s2425 + $0x18] sm:$0xff]
        %s2430 = scalar_lea.vmem %s6, 64
        %v2431 = vld [vmem:[%s2430] sm:$0xff]
        %v2432 = vld [vmem:[%s2430 + $0x8] sm:$0xff]
        %v2433 = vld [vmem:[%s2430 + $0x10] sm:$0xff]
        %v2434 = vld [vmem:[%s2430 + $0x18] sm:$0xff]
        %2436 = vset.pattern.permute.xlu0 0
        %2437 = vperm.xlu0 %2436, %v2431
        %v2438 = vpop.permute.xlu0 %2437
        %2441 = vset.pattern.permute.xlu0 0
        %2442 = vperm.xlu0 %2441, %v2432
        %v2443 = vpop.permute.xlu0 %2442
        %2446 = vset.pattern.permute.xlu0 0
        %2447 = vperm.xlu0 %2446, %v2433
        %v2448 = vpop.permute.xlu0 %2447
        %2451 = vset.pattern.permute.xlu0 0
        %2452 = vperm.xlu0 %2451, %v2434
        %v2453 = vpop.permute.xlu0 %2452
        %v2456 = vsel %vm1100, %v2426, 0
        %v2459 = vsel %vm1100, %v2427, 0
        %v2462 = vsel %vm1100, %v2428, 0
        %v2465 = vsel %vm1100, %v2429, 0
        %2467 = vmatprep.subr.mxu0 0.0
        %2468 = vmatpush1.msra.mxu0 %v2421
        %2469 = vmatprep.subr.mxu0 0.0
        %2470 = vmatpush1.msra.mxu0 %v2422
        %2471 = vmatprep.subr.mxu0 0.0
        %2472 = vmatpush1.msra.mxu0 %v2423
        %2473 = vmatprep.subr.mxu0 0.0
        %2474 = vmatpush1.msra.mxu0 %v2424
        %2475 = vmatprep.subr.mxu0 0.0
        %2476 = vmatpush1.msra.mxu0 0.0
        %2477 = vmatprep.subr.mxu0 0.0
        %2478 = vmatpush1.msra.mxu0 0.0
        %2479 = vmatprep.subr.mxu0 0.0
        %2480 = vmatpush1.msra.mxu0 0.0
        %2481 = vmatprep.subr.mxu0 0.0
        %2482 = vmatpush1.msra.mxu0 0.0
        %2483 = vmatprep.subr.mxu0 0.0
        %2484 = vmatpush1.msra.mxu0 0.0
        %2485 = vmatprep.subr.mxu0 0.0
        %2486 = vmatpush1.msra.mxu0 0.0
        %2487 = vmatprep.subr.mxu0 0.0
        %2488 = vmatpush1.msra.mxu0 0.0
        %2489 = vmatprep.subr.mxu0 0.0
        %2490 = vmatpush1.msra.mxu0 0.0
        %2491 = vmatprep.subr.mxu0 0.0
        %2492 = vmatpush1.msra.mxu0 0.0
        %2493 = vmatprep.subr.mxu0 0.0
        %2494 = vmatpush1.msra.mxu0 0.0
        %2495 = vmatprep.subr.mxu0 0.0
        %2496 = vmatpush1.msra.mxu0 0.0
        %2497 = vmatprep.subr.mxu0 0.0
        %2498 = vmatpush1.msra.mxu0 0.0
        %2499 = vmatprep.subr.mxu0 0.0
        %2500 = vmatpush1.msra.mxu0 0.0
        %2501 = vmatprep.subr.mxu0 0.0
        %2502 = vmatpush1.msra.mxu0 0.0
        %2503 = vmatprep.subr.mxu0 0.0
        %2504 = vmatpush1.msra.mxu0 0.0
        %2505 = vmatprep.subr.mxu0 0.0
        %2506 = vmatpush1.msra.mxu0 0.0
        %2507 = vmatprep.subr.mxu0 0.0
        %2508 = vmatpush1.msra.mxu0 0.0
        %2509 = vmatprep.subr.mxu0 0.0
        %2510 = vmatpush1.msra.mxu0 0.0
        %2511 = vmatprep.subr.mxu0 0.0
        %2512 = vmatpush1.msra.mxu0 0.0
        %2513 = vmatprep.subr.mxu0 0.0
        %2514 = vmatpush1.msra.mxu0 0.0
        %2515 = vmatprep.subr.mxu0 0.0
        %2516 = vmatpush1.msra.mxu0 0.0
        %2517 = vmatprep.subr.mxu0 0.0
        %2518 = vmatpush1.msra.mxu0 0.0
        %2519 = vmatprep.subr.mxu0 0.0
        %2520 = vmatpush1.msra.mxu0 0.0
        %2521 = vmatprep.subr.mxu0 0.0
        %2522 = vmatpush1.msra.mxu0 0.0
        %2523 = vmatprep.subr.mxu0 0.0
        %2524 = vmatpush1.msra.mxu0 0.0
        %2525 = vmatprep.subr.mxu0 0.0
        %2526 = vmatpush1.msra.mxu0 0.0
        %2527 = vmatprep.subr.mxu0 0.0
        %2528 = vmatpush1.msra.mxu0 0.0
        %2529 = vmatprep.subr.mxu0 0.0
        %2530 = vmatpush1.msra.mxu0 0.0
        %2531 = vmatprep.mubr.f32.mxu0 0.0
        %2532 = vmatmul.mubr.f32.gmra.mrb[0].mxu0 %v2456
        %v2533 = vpop.f32.mrb[0].mxu0
        %v2534 = vadd.f32 %v2438, %v2533
        %v2535 = vpop.f32.mrb[0].mxu0
        %2536 = vmatprep.mubr.f32.mxu0 0.0
        %2537 = vmatmul.mubr.f32.gmra.mrb[0].mxu0 %v2459
        %v2538 = vpop.f32.mrb[0].mxu0
        %v2539 = vadd.f32 %v2443, %v2538
        %v2540 = vpop.f32.mrb[0].mxu0
        %2541 = vmatprep.mubr.f32.mxu0 0.0
        %2542 = vmatmul.mubr.f32.gmra.mrb[0].mxu0 %v2462
        %v2543 = vpop.f32.mrb[0].mxu0
        %v2544 = vadd.f32 %v2448, %v2543
        %v2545 = vpop.f32.mrb[0].mxu0
        %2546 = vmatprep.mubr.f32.mxu0 0.0
        %2547 = vmatmul.mubr.f32.gmra.mrb[0].mxu0 %v2465
        %v2548 = vpop.f32.mrb[0].mxu0
        %v2549 = vadd.f32 %v2453, %v2548
        %v2550 = vpop.f32.mrb[0].mxu0
        %2551 = vdwg.mxu0
        %v2552 = vadd.f32 %v1876, %v2534
        %v2553 = vadd.f32 %v1877, %v2539
        %v2554 = vadd.f32 %v1878, %v2544
        %v2555 = vadd.f32 %v1879, %v2549
        %s2556 = sld [smem:[#allocation2 + $0x6]]
        %s2557 = sld [smem:[#allocation2 + $0x7]]
        %s2558 = scalar_lea.vmem %s4, 96
        %v2559 = vld [vmem:[%s2558] sm:$0xff]
        %v2560 = vld [vmem:[%s2558 + $0x8] sm:$0xff]
        %v2561 = vld [vmem:[%s2558 + $0x10] sm:$0xff]
        %v2562 = vld [vmem:[%s2558 + $0x18] sm:$0xff]
        %s2563 = scalar_lea.vmem %s3, 96
        %v2564 = vld [vmem:[%s2563] sm:$0xff]
        %v2565 = vld [vmem:[%s2563 + $0x8] sm:$0xff]
        %v2566 = vld [vmem:[%s2563 + $0x10] sm:$0xff]
        %v2567 = vld [vmem:[%s2563 + $0x18] sm:$0xff]
        %2569 = vset.pattern.permute.xlu0 0
        %2570 = vperm.xlu0 %2569, %v2559
        %v2571 = vpop.permute.xlu0 %2570
        %2574 = vset.pattern.permute.xlu0 0
        %2575 = vperm.xlu0 %2574, %v2560
        %v2576 = vpop.permute.xlu0 %2575
        %2579 = vset.pattern.permute.xlu0 0
        %2580 = vperm.xlu0 %2579, %v2561
        %v2581 = vpop.permute.xlu0 %2580
        %2584 = vset.pattern.permute.xlu0 0
        %2585 = vperm.xlu0 %2584, %v2562
        %v2586 = vpop.permute.xlu0 %2585
        %v2589 = vsel %vm445, %v2564, 0
        %v2592 = vsel %vm445, %v2565, 0
        %v2595 = vsel %vm445, %v2566, 0
        %v2598 = vsel %vm445, %v2567, 0
        %2600 = vmatprep.subr.mxu0 0.0
        %2601 = vmatpush1.msra.mxu0 %v2552
        %2602 = vmatprep.subr.mxu0 0.0
        %2603 = vmatpush1.msra.mxu0 %v2553
        %2604 = vmatprep.subr.mxu0 0.0
        %2605 = vmatpush1.msra.mxu0 0.0
        %2606 = vmatprep.subr.mxu0 0.0
        %2607 = vmatpush1.msra.mxu0 0.0
        %2608 = vmatprep.subr.mxu0 0.0
        %2609 = vmatpush1.msra.mxu0 0.0
        %2610 = vmatprep.subr.mxu0 0.0
        %2611 = vmatpush1.msra.mxu0 0.0
        %2612 = vmatprep.subr.mxu0 0.0
        %2613 = vmatpush1.msra.mxu0 0.0
        %2614 = vmatprep.subr.mxu0 0.0
        %2615 = vmatpush1.msra.mxu0 0.0
        %2616 = vmatprep.subr.mxu0 0.0
        %2617 = vmatpush1.msra.mxu0 0.0
        %2618 = vmatprep.subr.mxu0 0.0
        %2619 = vmatpush1.msra.mxu0 0.0
        %2620 = vmatprep.subr.mxu0 0.0
        %2621 = vmatpush1.msra.mxu0 0.0
        %2622 = vmatprep.subr.mxu0 0.0
        %2623 = vmatpush1.msra.mxu0 0.0
        %2624 = vmatprep.subr.mxu0 0.0
        %2625 = vmatpush1.msra.mxu0 0.0
        %2626 = vmatprep.subr.mxu0 0.0
        %2627 = vmatpush1.msra.mxu0 0.0
        %2628 = vmatprep.subr.mxu0 0.0
        %2629 = vmatpush1.msra.mxu0 0.0
        %2630 = vmatprep.subr.mxu0 0.0
        %2631 = vmatpush1.msra.mxu0 0.0
        %2632 = vmatprep.subr.mxu0 0.0
        %2633 = vmatpush1.msra.mxu0 0.0
        %2634 = vmatprep.subr.mxu0 0.0
        %2635 = vmatpush1.msra.mxu0 0.0
        %2636 = vmatprep.subr.mxu0 0.0
        %2637 = vmatpush1.msra.mxu0 0.0
        %2638 = vmatprep.subr.mxu0 0.0
        %2639 = vmatpush1.msra.mxu0 0.0
        %2640 = vmatprep.subr.mxu0 0.0
        %2641 = vmatpush1.msra.mxu0 0.0
        %2642 = vmatprep.subr.mxu0 0.0
        %2643 = vmatpush1.msra.mxu0 0.0
        %2644 = vmatprep.subr.mxu0 0.0
        %2645 = vmatpush1.msra.mxu0 0.0
        %2646 = vmatprep.subr.mxu0 0.0
        %2647 = vmatpush1.msra.mxu0 0.0
        %2648 = vmatprep.subr.mxu0 0.0
        %2649 = vmatpush1.msra.mxu0 0.0
        %2650 = vmatprep.subr.mxu0 0.0
        %2651 = vmatpush1.msra.mxu0 0.0
        %2652 = vmatprep.subr.mxu0 0.0
        %2653 = vmatpush1.msra.mxu0 0.0
        %2654 = vmatprep.subr.mxu0 0.0
        %2655 = vmatpush1.msra.mxu0 0.0
        %2656 = vmatprep.subr.mxu0 0.0
        %2657 = vmatpush1.msra.mxu0 0.0
        %2658 = vmatprep.subr.mxu0 0.0
        %2659 = vmatpush1.msra.mxu0 0.0
        %2660 = vmatprep.subr.mxu0 0.0
        %2661 = vmatpush1.msra.mxu0 0.0
        %2662 = vmatprep.subr.mxu0 0.0
        %2663 = vmatpush1.msra.mxu0 0.0
        %2664 = vmatprep.mubr.f32.mxu0 0.0
        %2665 = vmatmul.mubr.f32.gmra.mrb[0].mxu0 %v2589
        %v2666 = vpop.f32.mrb[0].mxu0
        %v2667 = vadd.f32 %v2571, %v2666
        %v2668 = vpop.f32.mrb[0].mxu0
        %2669 = vmatprep.mubr.f32.mxu0 0.0
        %2670 = vmatmul.mubr.f32.gmra.mrb[0].mxu0 %v2592
        %v2671 = vpop.f32.mrb[0].mxu0
        %v2672 = vadd.f32 %v2576, %v2671
        %v2673 = vpop.f32.mrb[0].mxu0
        %2674 = vmatprep.mubr.f32.mxu0 0.0
        %2675 = vmatmul.mubr.f32.gmra.mrb[0].mxu0 %v2595
        %v2676 = vpop.f32.mrb[0].mxu0
        %v2677 = vadd.f32 %v2581, %v2676
        %v2678 = vpop.f32.mrb[0].mxu0
        %2679 = vmatprep.mubr.f32.mxu0 0.0
        %2680 = vmatmul.mubr.f32.gmra.mrb[0].mxu0 %v2598
        %v2681 = vpop.f32.mrb[0].mxu0
        %v2682 = vadd.f32 %v2586, %v2681
        %v2683 = vpop.f32.mrb[0].mxu0
        %2684 = vdwg.mxu0
        %vm2685 = vcmp.ge.f32.partialorder %v2667, 0.0
        %vm2686 = vcmp.ge.f32.partialorder %v2672, 0.0
        %vm2687 = vcmp.ge.f32.partialorder %v2677, 0.0
        %vm2688 = vcmp.ge.f32.partialorder %v2682, 0.0
        %v2689 = vstv %s2556
        %v2690 = vmul.f32 %v2689, %v2667
        %v2691 = vmul.f32 %v2689, %v2672
        %v2692 = vmul.f32 %v2689, %v2677
        %v2693 = vmul.f32 %v2689, %v2682
        %v2694 = vsel %vm2685, %v2667, %v2690
        %v2695 = vsel %vm2686, %v2672, %v2691
        %v2696 = vsel %vm2687, %v2677, %v2692
        %v2697 = vsel %vm2688, %v2682, %v2693
        %v2698 = vmul.f32 %v2694, %v2694
        %v2699 = vmul.f32 %v2695, %v2695
        %v2700 = vmul.f32 %v2696, %v2696
        %v2701 = vmul.f32 %v2697, %v2697
        %2702 = vadd.xlane.f32.xlu0 %v2694
        %v2703 = vpop.xlane.xlu0 %2702
        %2704 = vadd.xlane.f32.xlu0 %v2695
        %v2705 = vpop.xlane.xlu0 %2704
        %2706 = vadd.xlane.f32.xlu0 %v2696
        %v2707 = vpop.xlane.xlu0 %2706
        %2708 = vadd.xlane.f32.xlu0 %v2697
        %v2709 = vpop.xlane.xlu0 %2708
        %2710 = vadd.xlane.f32.xlu0 %v2698
        %v2711 = vpop.xlane.xlu0 %2710
        %2712 = vadd.xlane.f32.xlu0 %v2699
        %v2713 = vpop.xlane.xlu0 %2712
        %2714 = vadd.xlane.f32.xlu0 %v2700
        %v2715 = vpop.xlane.xlu0 %2714
        %2716 = vadd.xlane.f32.xlu0 %v2701
        %v2717 = vpop.xlane.xlu0 %2716
        %v2718 = vsel %vm357, %v2703, 0.0
        %v2719 = vsel %vm357, %v2705, 0.0
        %v2720 = vadd.f32 %v2718, %v2719
        %v2721 = vsel %vm357, %v2707, 0.0
        %v2722 = vadd.f32 %v2720, %v2721
        %v2723 = vsel %vm357, %v2709, 0.0
        %v2724 = vadd.f32 %v2722, %v2723
        %2725 = vadd.xlane.f32.xlu0 %v2724
        %v2726 = vpop.xlane.xlu0 %2725
        %v2727 = vrot.slane %v2726, 4
        %v2728 = vadd.f32 %v2726, %v2727
        %v2729 = vrot.slane %v2728, 2
        %v2730 = vadd.f32 %v2728, %v2729
        %v2731 = vrot.slane %v2730, 1
        %v2732 = vadd.f32 %v2730, %v2731
        %s2733 = vtos %v2732
        %v2734 = vsel %vm357, %v2711, 0.0
        %v2735 = vsel %vm357, %v2713, 0.0
        %v2736 = vadd.f32 %v2734, %v2735
        %v2737 = vsel %vm357, %v2715, 0.0
        %v2738 = vadd.f32 %v2736, %v2737
        %v2739 = vsel %vm357, %v2717, 0.0
        %v2740 = vadd.f32 %v2738, %v2739
        %2741 = vadd.xlane.f32.xlu0 %v2740
        %v2742 = vpop.xlane.xlu0 %2741
        %v2743 = vrot.slane %v2742, 4
        %v2744 = vadd.f32 %v2742, %v2743
        %v2745 = vrot.slane %v2744, 2
        %v2746 = vadd.f32 %v2744, %v2745
        %v2747 = vrot.slane %v2746, 1
        %v2748 = vadd.f32 %v2746, %v2747
        %s2749 = vtos %v2748
        %s2750 = smul.f32 %s2733, 0.00024414063
        %s2751 = smul.f32 %s2749, 0.00024414063
        %s2752 = smul.f32 %s2750, %s2750
        %s2753 = ssub.f32 %s2751, %s2752
        %s2754 = smax.f32 %s2753, 0.0
        %s2755 = sadd.f32 %s2754, 1e-08
        %v2756 = vstv %s2755
        %v2757 = vrsqrt.pop %v2756
        %s2758 = vtos %v2757
        %v2759 = vstv %s2758
        %v2760 = vmul.f32 %v2559, %v2759
        %v2761 = vmul.f32 %v2560, %v2759
        %v2762 = vmul.f32 %v2561, %v2759
        %v2763 = vmul.f32 %v2562, %v2759
        %2765 = vset.pattern.permute.xlu0 1
        %2766 = vperm.xlu0 %2765, %v2760
        %v2767 = vpop.permute.xlu0 %2766
        %2770 = vset.pattern.permute.xlu0 1
        %2771 = vperm.xlu0 %2770, %v2761
        %v2772 = vpop.permute.xlu0 %2771
        %2775 = vset.pattern.permute.xlu0 1
        %2776 = vperm.xlu0 %2775, %v2762
        %v2777 = vpop.permute.xlu0 %2776
        %2780 = vset.pattern.permute.xlu0 1
        %2781 = vperm.xlu0 %2780, %v2763
        %v2782 = vpop.permute.xlu0 %2781
        %v2784 = vmul.f32 %v2694, %v2767
        %v2785 = vmul.f32 %v2695, %v2772
        %v2786 = vmul.f32 %v2696, %v2777
        %v2787 = vmul.f32 %v2697, %v2782
        %v2788 = vstv %s2750
        %v2789 = vmul.f32 %v2788, %v2760
        %v2790 = vmul.f32 %v2788, %v2761
        %v2791 = vmul.f32 %v2788, %v2762
        %v2792 = vmul.f32 %v2788, %v2763
        %2797 = vrot.lane.b32.xlu0 %v2789, 1
        %v2798 = vpop.permute.xlu0 %2797
        %2799 = vrot.lane.b32.xlu0 %v2790, 1
        %v2800 = vpop.permute.xlu0 %2799
        %2801 = vrot.lane.b32.xlu0 %v2791, 1
        %v2802 = vpop.permute.xlu0 %2801
        %2803 = vrot.lane.b32.xlu0 %v2792, 1
        %v2804 = vpop.permute.xlu0 %2803
        %v2809 = vsub.f32 %v2559, %v2798
        %v2810 = vsub.f32 %v2560, %v2800
        %v2811 = vsub.f32 %v2561, %v2802
        %v2812 = vsub.f32 %v2562, %v2804
        %2814 = vset.pattern.permute.xlu0 2
        %2815 = vperm.xlu0 %2814, %v2809
        %v2816 = vpop.permute.xlu0 %2815
        %2819 = vset.pattern.permute.xlu0 2
        %2820 = vperm.xlu0 %2819, %v2810
        %v2821 = vpop.permute.xlu0 %2820
        %2824 = vset.pattern.permute.xlu0 2
        %2825 = vperm.xlu0 %2824, %v2811
        %v2826 = vpop.permute.xlu0 %2825
        %2829 = vset.pattern.permute.xlu0 2
        %2830 = vperm.xlu0 %2829, %v2812
        %v2831 = vpop.permute.xlu0 %2830
        %v2833 = vadd.f32 %v2784, %v2816
        %v2834 = vadd.f32 %v2785, %v2821
        %v2835 = vadd.f32 %v2786, %v2826
        %v2836 = vadd.f32 %v2787, %v2831
        %2837 = vset.pattern.permute.xlu0 3
        %2838 = vperm.xlu0 %2837, %v2559
        %v2839 = vpop.permute.xlu0 %2838
        %2841 = vset.pattern.permute.xlu0 3
        %2842 = vperm.xlu0 %2841, %v2560
        %v2843 = vpop.permute.xlu0 %2842
        %2845 = vset.pattern.permute.xlu0 3
        %2846 = vperm.xlu0 %2845, %v2561
        %v2847 = vpop.permute.xlu0 %2846
        %2849 = vset.pattern.permute.xlu0 3
        %2850 = vperm.xlu0 %2849, %v2562
        %v2851 = vpop.permute.xlu0 %2850
        %2853 = vrot.lane.b32.xlu0 %v2833, 2
        %v2854 = vpop.permute.xlu0 %2853
        %2855 = vrot.lane.b32.xlu0 %v2834, 2
        %v2856 = vpop.permute.xlu0 %2855
        %2857 = vrot.lane.b32.xlu0 %v2835, 2
        %v2858 = vpop.permute.xlu0 %2857
        %2859 = vrot.lane.b32.xlu0 %v2836, 2
        %v2860 = vpop.permute.xlu0 %2859
        %v2861 = vsel %vm1507, %v2854, 0.0
        %v2862 = vsel %vm1507, %v2856, 0.0
        %v2863 = vsel %vm1507, %v2858, 0.0
        %v2864 = vsel %vm1507, %v2860, 0.0
        %2865 = vset.pattern.permute.xlu0 6
        %2866 = vperm.xlu0 %2865, %v2559
        %v2867 = vpop.permute.xlu0 %2866
        %2869 = vset.pattern.permute.xlu0 6
        %2870 = vperm.xlu0 %2869, %v2560
        %v2871 = vpop.permute.xlu0 %2870
        %2873 = vset.pattern.permute.xlu0 6
        %2874 = vperm.xlu0 %2873, %v2561
        %v2875 = vpop.permute.xlu0 %2874
        %2877 = vset.pattern.permute.xlu0 6
        %2878 = vperm.xlu0 %2877, %v2562
        %v2879 = vpop.permute.xlu0 %2878
        %v2881 = vmul.f32 %v2867, %v2861
        %v2882 = vmul.f32 %v2871, %v2862
        %v2883 = vmul.f32 %v2875, %v2863
        %v2884 = vmul.f32 %v2879, %v2864
        %v2885 = vadd.f32 %v2839, %v2881
        %v2886 = vadd.f32 %v2843, %v2882
        %v2887 = vadd.f32 %v2847, %v2883
        %v2888 = vadd.f32 %v2851, %v2884
        %2889 = vset.pattern.permute.xlu0 7
        %2890 = vperm.xlu0 %2889, %v2559
        %v2891 = vpop.permute.xlu0 %2890
        %2893 = vset.pattern.permute.xlu0 7
        %2894 = vperm.xlu0 %2893, %v2560
        %v2895 = vpop.permute.xlu0 %2894
        %2897 = vset.pattern.permute.xlu0 7
        %2898 = vperm.xlu0 %2897, %v2561
        %v2899 = vpop.permute.xlu0 %2898
        %2901 = vset.pattern.permute.xlu0 7
        %2902 = vperm.xlu0 %2901, %v2562
        %v2903 = vpop.permute.xlu0 %2902
        %v2905 = vmul.f32 %v2891, %v2833
        %v2906 = vmul.f32 %v2895, %v2834
        %v2907 = vmul.f32 %v2899, %v2835
        %v2908 = vmul.f32 %v2903, %v2836
        %v2909 = vadd.f32 %v2885, %v2905
        %v2910 = vadd.f32 %v2886, %v2906
        %v2911 = vadd.f32 %v2887, %v2907
        %v2912 = vadd.f32 %v2888, %v2908
        %2913 = vrot.lane.b32.xlu0 %v2833, 126
        %v2914 = vpop.permute.xlu0 %2913
        %2915 = vrot.lane.b32.xlu0 %v2834, 126
        %v2916 = vpop.permute.xlu0 %2915
        %2917 = vrot.lane.b32.xlu0 %v2835, 126
        %v2918 = vpop.permute.xlu0 %2917
        %2919 = vrot.lane.b32.xlu0 %v2836, 126
        %v2920 = vpop.permute.xlu0 %2919
        %v2921 = vsel %vm1568, %v2914, 0.0
        %v2922 = vsel %vm1568, %v2916, 0.0
        %v2923 = vsel %vm1568, %v2918, 0.0
        %v2924 = vsel %vm1568, %v2920, 0.0
        %2925 = vset.pattern.permute.xlu0 8
        %2926 = vperm.xlu0 %2925, %v2559
        %v2927 = vpop.permute.xlu0 %2926
        %2929 = vset.pattern.permute.xlu0 8
        %2930 = vperm.xlu0 %2929, %v2560
        %v2931 = vpop.permute.xlu0 %2930
        %2933 = vset.pattern.permute.xlu0 8
        %2934 = vperm.xlu0 %2933, %v2561
        %v2935 = vpop.permute.xlu0 %2934
        %2937 = vset.pattern.permute.xlu0 8
        %2938 = vperm.xlu0 %2937, %v2562
        %v2939 = vpop.permute.xlu0 %2938
        %v2941 = vmul.f32 %v2927, %v2921
        %v2942 = vmul.f32 %v2931, %v2922
        %v2943 = vmul.f32 %v2935, %v2923
        %v2944 = vmul.f32 %v2939, %v2924
        %v2945 = vadd.f32 %v2909, %v2941
        %v2946 = vadd.f32 %v2910, %v2942
        %v2947 = vadd.f32 %v2911, %v2943
        %v2948 = vadd.f32 %v2912, %v2944
        %vm2949 = vcmp.ge.f32.partialorder %v2945, 0.0
        %vm2950 = vcmp.ge.f32.partialorder %v2946, 0.0
        %vm2951 = vcmp.ge.f32.partialorder %v2947, 0.0
        %vm2952 = vcmp.ge.f32.partialorder %v2948, 0.0
        %v2953 = vstv %s2557
        %v2954 = vmul.f32 %v2953, %v2945
        %v2955 = vmul.f32 %v2953, %v2946
        %v2956 = vmul.f32 %v2953, %v2947
        %v2957 = vmul.f32 %v2953, %v2948
        %v2958 = vsel %vm2949, %v2945, %v2954
        %v2959 = vsel %vm2950, %v2946, %v2955
        %v2960 = vsel %vm2951, %v2947, %v2956
        %v2961 = vsel %vm2952, %v2948, %v2957
        %v2962 = vmul.f32 %v2958, %v2958
        %v2963 = vmul.f32 %v2959, %v2959
        %v2964 = vmul.f32 %v2960, %v2960
        %v2965 = vmul.f32 %v2961, %v2961
        %2966 = vadd.xlane.f32.xlu0 %v2958
        %v2967 = vpop.xlane.xlu0 %2966
        %2968 = vadd.xlane.f32.xlu0 %v2959
        %v2969 = vpop.xlane.xlu0 %2968
        %2970 = vadd.xlane.f32.xlu0 %v2960
        %v2971 = vpop.xlane.xlu0 %2970
        %2972 = vadd.xlane.f32.xlu0 %v2961
        %v2973 = vpop.xlane.xlu0 %2972
        %2974 = vadd.xlane.f32.xlu0 %v2962
        %v2975 = vpop.xlane.xlu0 %2974
        %2976 = vadd.xlane.f32.xlu0 %v2963
        %v2977 = vpop.xlane.xlu0 %2976
        %2978 = vadd.xlane.f32.xlu0 %v2964
        %v2979 = vpop.xlane.xlu0 %2978
        %2980 = vadd.xlane.f32.xlu0 %v2965
        %v2981 = vpop.xlane.xlu0 %2980
        %v2982 = vsel %vm357, %v2967, 0.0
        %v2983 = vsel %vm357, %v2969, 0.0
        %v2984 = vadd.f32 %v2982, %v2983
        %v2985 = vsel %vm357, %v2971, 0.0
        %v2986 = vadd.f32 %v2984, %v2985
        %v2987 = vsel %vm357, %v2973, 0.0
        %v2988 = vadd.f32 %v2986, %v2987
        %2989 = vadd.xlane.f32.xlu0 %v2988
        %v2990 = vpop.xlane.xlu0 %2989
        %v2991 = vrot.slane %v2990, 4
        %v2992 = vadd.f32 %v2990, %v2991
        %v2993 = vrot.slane %v2992, 2
        %v2994 = vadd.f32 %v2992, %v2993
        %v2995 = vrot.slane %v2994, 1
        %v2996 = vadd.f32 %v2994, %v2995
        %s2997 = vtos %v2996
        %v2998 = vsel %vm357, %v2975, 0.0
        %v2999 = vsel %vm357, %v2977, 0.0
        %v3000 = vadd.f32 %v2998, %v2999
        %v3001 = vsel %vm357, %v2979, 0.0
        %v3002 = vadd.f32 %v3000, %v3001
        %v3003 = vsel %vm357, %v2981, 0.0
        %v3004 = vadd.f32 %v3002, %v3003
        %3005 = vadd.xlane.f32.xlu0 %v3004
        %v3006 = vpop.xlane.xlu0 %3005
        %v3007 = vrot.slane %v3006, 4
        %v3008 = vadd.f32 %v3006, %v3007
        %v3009 = vrot.slane %v3008, 2
        %v3010 = vadd.f32 %v3008, %v3009
        %v3011 = vrot.slane %v3010, 1
        %v3012 = vadd.f32 %v3010, %v3011
        %s3013 = vtos %v3012
        %s3014 = smul.f32 %s2997, 0.00024414063
        %s3015 = smul.f32 %s3013, 0.00024414063
        %s3016 = smul.f32 %s3014, %s3014
        %s3017 = ssub.f32 %s3015, %s3016
        %s3018 = smax.f32 %s3017, 0.0
        %s3019 = sadd.f32 %s3018, 1e-08
        %v3020 = vstv %s3019
        %v3021 = vrsqrt.pop %v3020
        %s3022 = vtos %v3021
        %v3023 = vstv %s3022
        %v3024 = vmul.f32 %v2559, %v3023
        %v3025 = vmul.f32 %v2560, %v3023
        %v3026 = vmul.f32 %v2561, %v3023
        %v3027 = vmul.f32 %v2562, %v3023
        %3029 = vset.pattern.permute.xlu0 4
        %3030 = vperm.xlu0 %3029, %v3024
        %v3031 = vpop.permute.xlu0 %3030
        %3034 = vset.pattern.permute.xlu0 4
        %3035 = vperm.xlu0 %3034, %v3025
        %v3036 = vpop.permute.xlu0 %3035
        %3039 = vset.pattern.permute.xlu0 4
        %3040 = vperm.xlu0 %3039, %v3026
        %v3041 = vpop.permute.xlu0 %3040
        %3044 = vset.pattern.permute.xlu0 4
        %3045 = vperm.xlu0 %3044, %v3027
        %v3046 = vpop.permute.xlu0 %3045
        %v3048 = vmul.f32 %v2958, %v3031
        %v3049 = vmul.f32 %v2959, %v3036
        %v3050 = vmul.f32 %v2960, %v3041
        %v3051 = vmul.f32 %v2961, %v3046
        %v3052 = vstv %s3014
        %v3053 = vmul.f32 %v3052, %v3024
        %v3054 = vmul.f32 %v3052, %v3025
        %v3055 = vmul.f32 %v3052, %v3026
        %v3056 = vmul.f32 %v3052, %v3027
        %3061 = vrot.lane.b32.xlu0 %v3053, 1
        %v3062 = vpop.permute.xlu0 %3061
        %3063 = vrot.lane.b32.xlu0 %v3054, 1
        %v3064 = vpop.permute.xlu0 %3063
        %3065 = vrot.lane.b32.xlu0 %v3055, 1
        %v3066 = vpop.permute.xlu0 %3065
        %3067 = vrot.lane.b32.xlu0 %v3056, 1
        %v3068 = vpop.permute.xlu0 %3067
        %v3073 = vsub.f32 %v2559, %v3062
        %v3074 = vsub.f32 %v2560, %v3064
        %v3075 = vsub.f32 %v2561, %v3066
        %v3076 = vsub.f32 %v2562, %v3068
        %3078 = vset.pattern.permute.xlu0 5
        %3079 = vperm.xlu0 %3078, %v3073
        %v3080 = vpop.permute.xlu0 %3079
        %3083 = vset.pattern.permute.xlu0 5
        %3084 = vperm.xlu0 %3083, %v3074
        %v3085 = vpop.permute.xlu0 %3084
        %3088 = vset.pattern.permute.xlu0 5
        %3089 = vperm.xlu0 %3088, %v3075
        %v3090 = vpop.permute.xlu0 %3089
        %3093 = vset.pattern.permute.xlu0 5
        %3094 = vperm.xlu0 %3093, %v3076
        %v3095 = vpop.permute.xlu0 %3094
        %v3097 = vadd.f32 %v3048, %v3080
        %v3098 = vadd.f32 %v3049, %v3085
        %v3099 = vadd.f32 %v3050, %v3090
        %v3100 = vadd.f32 %v3051, %v3095
        %s3101 = scalar_lea.vmem %s5, 96
        %v3102 = vld [vmem:[%s3101] sm:$0xff]
        %v3103 = vld [vmem:[%s3101 + $0x8] sm:$0xff]
        %v3104 = vld [vmem:[%s3101 + $0x10] sm:$0xff]
        %v3105 = vld [vmem:[%s3101 + $0x18] sm:$0xff]
        %s3106 = scalar_lea.vmem %s6, 96
        %v3107 = vld [vmem:[%s3106] sm:$0xff]
        %v3108 = vld [vmem:[%s3106 + $0x8] sm:$0xff]
        %v3109 = vld [vmem:[%s3106 + $0x10] sm:$0xff]
        %v3110 = vld [vmem:[%s3106 + $0x18] sm:$0xff]
        %3112 = vset.pattern.permute.xlu0 0
        %3113 = vperm.xlu0 %3112, %v3107
        %v3114 = vpop.permute.xlu0 %3113
        %3116 = vset.pattern.permute.xlu0 0
        %3117 = vperm.xlu0 %3116, %v3108
        %v3118 = vpop.permute.xlu0 %3117
        %3120 = vset.pattern.permute.xlu0 0
        %3121 = vperm.xlu0 %3120, %v3109
        %v3122 = vpop.permute.xlu0 %3121
        %3125 = vset.pattern.permute.xlu0 0
        %3126 = vperm.xlu0 %3125, %v3110
        %v3127 = vpop.permute.xlu0 %3126
        %v3130 = vsel %vm1100, %v3102, 0
        %v3133 = vsel %vm1100, %v3103, 0
        %v3136 = vsel %vm1100, %v3104, 0
        %v3139 = vsel %vm1100, %v3105, 0
        %3141 = vmatprep.subr.mxu0 0.0
        %3142 = vmatpush1.msra.mxu0 %v3097
        %3143 = vmatprep.subr.mxu0 0.0
        %3144 = vmatpush1.msra.mxu0 %v3098
        %3145 = vmatprep.subr.mxu0 0.0
        %3146 = vmatpush1.msra.mxu0 %v3099
        %3147 = vmatprep.subr.mxu0 0.0
        %3148 = vmatpush1.msra.mxu0 %v3100
        %3149 = vmatprep.subr.mxu0 0.0
        %3150 = vmatpush1.msra.mxu0 0.0
        %3151 = vmatprep.subr.mxu0 0.0
        %3152 = vmatpush1.msra.mxu0 0.0
        %3153 = vmatprep.subr.mxu0 0.0
        %3154 = vmatpush1.msra.mxu0 0.0
        %3155 = vmatprep.subr.mxu0 0.0
        %3156 = vmatpush1.msra.mxu0 0.0
        %3157 = vmatprep.subr.mxu0 0.0
        %3158 = vmatpush1.msra.mxu0 0.0
        %3159 = vmatprep.subr.mxu0 0.0
        %3160 = vmatpush1.msra.mxu0 0.0
        %3161 = vmatprep.subr.mxu0 0.0
        %3162 = vmatpush1.msra.mxu0 0.0
        %3163 = vmatprep.subr.mxu0 0.0
        %3164 = vmatpush1.msra.mxu0 0.0
        %3165 = vmatprep.subr.mxu0 0.0
        %3166 = vmatpush1.msra.mxu0 0.0
        %3167 = vmatprep.subr.mxu0 0.0
        %3168 = vmatpush1.msra.mxu0 0.0
        %3169 = vmatprep.subr.mxu0 0.0
        %3170 = vmatpush1.msra.mxu0 0.0
        %3171 = vmatprep.subr.mxu0 0.0
        %3172 = vmatpush1.msra.mxu0 0.0
        %3173 = vmatprep.subr.mxu0 0.0
        %3174 = vmatpush1.msra.mxu0 0.0
        %3175 = vmatprep.subr.mxu0 0.0
        %3176 = vmatpush1.msra.mxu0 0.0
        %3177 = vmatprep.subr.mxu0 0.0
        %3178 = vmatpush1.msra.mxu0 0.0
        %3179 = vmatprep.subr.mxu0 0.0
        %3180 = vmatpush1.msra.mxu0 0.0
        %3181 = vmatprep.subr.mxu0 0.0
        %3182 = vmatpush1.msra.mxu0 0.0
        %3183 = vmatprep.subr.mxu0 0.0
        %3184 = vmatpush1.msra.mxu0 0.0
        %3185 = vmatprep.subr.mxu0 0.0
        %3186 = vmatpush1.msra.mxu0 0.0
        %3187 = vmatprep.subr.mxu0 0.0
        %3188 = vmatpush1.msra.mxu0 0.0
        %3189 = vmatprep.subr.mxu0 0.0
        %3190 = vmatpush1.msra.mxu0 0.0
        %3191 = vmatprep.subr.mxu0 0.0
        %3192 = vmatpush1.msra.mxu0 0.0
        %3193 = vmatprep.subr.mxu0 0.0
        %3194 = vmatpush1.msra.mxu0 0.0
        %3195 = vmatprep.subr.mxu0 0.0
        %3196 = vmatpush1.msra.mxu0 0.0
        %3197 = vmatprep.subr.mxu0 0.0
        %3198 = vmatpush1.msra.mxu0 0.0
        %3199 = vmatprep.subr.mxu0 0.0
        %3200 = vmatpush1.msra.mxu0 0.0
        %3201 = vmatprep.subr.mxu0 0.0
        %3202 = vmatpush1.msra.mxu0 0.0
        %3203 = vmatprep.subr.mxu0 0.0
        %3204 = vmatpush1.msra.mxu0 0.0
        %3205 = vmatprep.mubr.f32.mxu0 0.0
        %3206 = vmatmul.mubr.f32.gmra.mrb[0].mxu0 %v3130
        %v3207 = vpop.f32.mrb[0].mxu0
        %v3208 = vpop.f32.mrb[0].mxu0
        %3209 = vmatprep.mubr.f32.mxu0 0.0
        %3210 = vmatmul.mubr.f32.gmra.mrb[0].mxu0 %v3133
        %v3211 = vpop.f32.mrb[0].mxu0
        %v3212 = vpop.f32.mrb[0].mxu0
        %3213 = vmatprep.mubr.f32.mxu0 0.0
        %3214 = vmatmul.mubr.f32.gmra.mrb[0].mxu0 %v3136
        %v3215 = vpop.f32.mrb[0].mxu0
        %v3216 = vadd.f32 %v3122, %v3215
        %v3217 = vpop.f32.mrb[0].mxu0
        %3218 = vmatprep.mubr.f32.mxu0 0.0
        %3219 = vmatmul.mubr.f32.gmra.mrb[0].mxu0 %v3139
        %v3220 = vpop.f32.mrb[0].mxu0
        %v3221 = vadd.f32 %v3127, %v3220
        %v3222 = vpop.f32.mrb[0].mxu0
        %3223 = vdwg.mxu0
        %v3224 = vadd.f32 %v2554, %v3216
        %v3225 = vadd.f32 %v2555, %v3221
        %s3226 = sld [smem:[#allocation2 + $0x8]]
        %vm3227 = vcmp.ge.f32.partialorder %v3224, 0.0
        %vm3228 = vcmp.ge.f32.partialorder %v3225, 0.0
        %v3229 = vstv %s3226
        %v3230 = vmul.f32 %v3229, %v3224
        %v3231 = vmul.f32 %v3229, %v3225
        %v3232 = vsel %vm3227, %v3224, %v3230
        %v3233 = vsel %vm3228, %v3225, %v3231
        %v3234 = vld [vmem:[%s7] sm:$0xff]
        %v3235 = vld [vmem:[%s7 + $0x8] sm:$0xff]
        %3237 = vset.pattern.permute.xlu0 16
        %3238 = vperm.xlu0 %3237, %v3234
        %v3239 = vpop.permute.xlu0 %3238
        %3242 = vset.pattern.permute.xlu0 16
        %3243 = vperm.xlu0 %3242, %v3235
        %v3244 = vpop.permute.xlu0 %3243
        %v3246 = vsel %vm445, %v3234, 0
        %v3248 = vsel %vm445, %v3235, 0
        %3250 = vmatprep.subr.mxu0 0.0
        %3251 = vmatpush1.msra.mxu0 %v3232
        %3252 = vmatprep.subr.mxu0 0.0
        %3253 = vmatpush1.msra.mxu0 %v3233
        %3254 = vmatprep.subr.mxu0 0.0
        %3255 = vmatpush1.msra.mxu0 0.0
        %3256 = vmatprep.subr.mxu0 0.0
        %3257 = vmatpush1.msra.mxu0 0.0
        %3258 = vmatprep.subr.mxu0 0.0
        %3259 = vmatpush1.msra.mxu0 0.0
        %3260 = vmatprep.subr.mxu0 0.0
        %3261 = vmatpush1.msra.mxu0 0.0
        %3262 = vmatprep.subr.mxu0 0.0
        %3263 = vmatpush1.msra.mxu0 0.0
        %3264 = vmatprep.subr.mxu0 0.0
        %3265 = vmatpush1.msra.mxu0 0.0
        %3266 = vmatprep.subr.mxu0 0.0
        %3267 = vmatpush1.msra.mxu0 0.0
        %3268 = vmatprep.subr.mxu0 0.0
        %3269 = vmatpush1.msra.mxu0 0.0
        %3270 = vmatprep.subr.mxu0 0.0
        %3271 = vmatpush1.msra.mxu0 0.0
        %3272 = vmatprep.subr.mxu0 0.0
        %3273 = vmatpush1.msra.mxu0 0.0
        %3274 = vmatprep.subr.mxu0 0.0
        %3275 = vmatpush1.msra.mxu0 0.0
        %3276 = vmatprep.subr.mxu0 0.0
        %3277 = vmatpush1.msra.mxu0 0.0
        %3278 = vmatprep.subr.mxu0 0.0
        %3279 = vmatpush1.msra.mxu0 0.0
        %3280 = vmatprep.subr.mxu0 0.0
        %3281 = vmatpush1.msra.mxu0 0.0
        %3282 = vmatprep.subr.mxu0 0.0
        %3283 = vmatpush1.msra.mxu0 0.0
        %3284 = vmatprep.subr.mxu0 0.0
        %3285 = vmatpush1.msra.mxu0 0.0
        %3286 = vmatprep.subr.mxu0 0.0
        %3287 = vmatpush1.msra.mxu0 0.0
        %3288 = vmatprep.subr.mxu0 0.0
        %3289 = vmatpush1.msra.mxu0 0.0
        %3290 = vmatprep.subr.mxu0 0.0
        %3291 = vmatpush1.msra.mxu0 0.0
        %3292 = vmatprep.subr.mxu0 0.0
        %3293 = vmatpush1.msra.mxu0 0.0
        %3294 = vmatprep.subr.mxu0 0.0
        %3295 = vmatpush1.msra.mxu0 0.0
        %3296 = vmatprep.subr.mxu0 0.0
        %3297 = vmatpush1.msra.mxu0 0.0
        %3298 = vmatprep.subr.mxu0 0.0
        %3299 = vmatpush1.msra.mxu0 0.0
        %3300 = vmatprep.subr.mxu0 0.0
        %3301 = vmatpush1.msra.mxu0 0.0
        %3302 = vmatprep.subr.mxu0 0.0
        %3303 = vmatpush1.msra.mxu0 0.0
        %3304 = vmatprep.subr.mxu0 0.0
        %3305 = vmatpush1.msra.mxu0 0.0
        %3306 = vmatprep.subr.mxu0 0.0
        %3307 = vmatpush1.msra.mxu0 0.0
        %3308 = vmatprep.subr.mxu0 0.0
        %3309 = vmatpush1.msra.mxu0 0.0
        %3310 = vmatprep.subr.mxu0 0.0
        %3311 = vmatpush1.msra.mxu0 0.0
        %3312 = vmatprep.subr.mxu0 0.0
        %3313 = vmatpush1.msra.mxu0 0.0
        %3314 = vmatprep.mubr.f32.mxu0 0.0
        %3315 = vmatmul.mubr.f32.gmra.mrb[0].mxu0 %v3246
        %v3316 = vpop.f32.mrb[0].mxu0
        %v3317 = vadd.f32 %v3239, %v3316
        %v3318 = vpop.f32.mrb[0].mxu0
        %3319 = vmatprep.mubr.f32.mxu0 0.0
        %3320 = vmatmul.mubr.f32.gmra.mrb[0].mxu0 %v3248
        %v3321 = vpop.f32.mrb[0].mxu0
        %v3322 = vadd.f32 %v3244, %v3321
        %v3323 = vpop.f32.mrb[0].mxu0
        %3324 = vdwg.mxu0
        %3325 = vst [vmem:[%s339] sm:$0xff] %v3317
        %3326 = vst [vmem:[%s339 + $0x8] sm:$0xff] %v3322
        %s3327 = sand.u32 %s226, 1
        %s3328 = scalar_lea.sflag [#allocation3], %s3327
        %s3329 = sand.u32 %s226, 1
        %s3330 = smul.addr %s3329, 16
        %s3331 = scalar_lea.vmem [#allocation5], %s3330
        // Predicated region
        $region61: #{tpu_custom_call.1} parent=55 // pred_check
          %p3332 = pneg %p236
        $region62: #{tpu_custom_call.1} parent=55 // pred_check_branch
          %3334 = sbr.rel (%p3332) target = $region64
        $region63: #{tpu_custom_call.1} parent=55 // pred_region
          %s3336 = ssub.s32 256, 256
          %3337 = vsyncadd %s3328, %s3336
          %s3338 = smul.addr %s24, 2
          %s3339 = smul.addr %s3338, 128
          %s3340 = scalar_lea.hbm %s9, %s3339
          %s3341 = sshll.u32 %s3331, 4
          %s3342 = int_to_ptr.vmem [resolvable:$true] %s3341
          %3347 = dma.vmem_to_hbm [thread:$0]  %s3342, 256, %s3340, %s3328, 128, 128, 8
        $region64: #{tpu_custom_call.1} parent=55 // pred_fallthru
          _
      $region56: #{tpu_custom_call.1} parent=5 // pred_fallthru
        _
      %p3348 = scmp.le.s32.totalorder 2, %s19
      // Predicated region
      $region65: #{tpu_custom_call.1} parent=5 // pred_check
        %p3349 = pneg %p3348
      $region66: #{tpu_custom_call.1} parent=5 // pred_check_branch
        %3351 = sbr.rel (%p3349) target = $region68
      $region67: #{tpu_custom_call.1} parent=5 // pred_region
        %s3352 = ssub.s32 %s19, 2
        // Predicated region
        $region69: #{tpu_custom_call.1} parent=67 // pred_check
          %p3353 = pneg %p242
        $region70: #{tpu_custom_call.1} parent=67 // pred_check_branch
          %3355 = sbr.rel (%p3353) target = $region72
        $region71: #{tpu_custom_call.1} parent=67 // pred_region
          %s3356 = sand.u32 %s227, 1
          %s3357 = scalar_lea.sflag [#allocation3], %s3356
          %s3358 = sand.u32 %s227, 1
          %s3359 = smul.addr %s3358, 16
          %s3360 = scalar_lea.vmem [#allocation5], %s3359
          %3361 = dma.done %s3357, 256
        $region72: #{tpu_custom_call.1} parent=67 // pred_fallthru
          _
      $region68: #{tpu_custom_call.1} parent=5 // pred_fallthru
        _
    $region6: #{tpu_custom_call.1} parent=1 // loop_footer
      %s23 = sadd.s32 1, %s19
    $region7: #{tpu_custom_call.1} parent=1 // loop_footer_branch
      %18 = sbr.rel target = $region3
    $region8: #{tpu_custom_call.1} parent=1 // loop_exit
      _
    %3362 = vsyncpa [#allocation3], 1
    %s3363 = scalar_lea.sflag [#allocation3], 1
    %3364 = vsyncpa %s3363, 1
    %3365 = vsyncpa [#allocation4], 1
    %s3366 = scalar_lea.sflag [#allocation4], 1
    %3367 = vsyncpa %s3366, 1

</llo_original>
